<compile_context>
chip_gen: v6e
topology: v6e:2x2x1
jax: 0.10.0
libtpu: 0.0.40
codegen_flags: <defaults>
</compile_context>

<pallas_src>
import jax
import jax.numpy as jnp
from jax.experimental import pallas as pl
from jax.experimental.pallas import tpu as pltpu


# ----------------------------------------------------------------------------
# Pallas kernels
# ----------------------------------------------------------------------------
def _make_conv1_kernel(m, cout):
    """Dense 3x3 conv (as 9 tap GEMMs) + folded-BN bias + ReLU."""
    def kernel(taps_ref, w_ref, b_ref, o_ref):
        acc = jnp.zeros((m, cout), jnp.float32)
        for t in range(9):
            acc = acc + jnp.dot(taps_ref[t].astype(jnp.bfloat16),   # (M, Cin) bf16
                                w_ref[t],                            # (Cin, Cout) bf16
                                preferred_element_type=jnp.float32)
        o_ref[...] = jnp.maximum(acc + b_ref[...], 0.0)
    return kernel


def _make_dw_block_kernel():
    """Fused depthwise 3x3 + BN + ReLU + pointwise 1x1 + BN + ReLU."""
    def kernel(taps_ref, dww_ref, dwb_ref, pww_ref, pwb_ref, o_ref):
        # Depthwise 9-tap accumulation on the VPU (f32, BN scale folded into taps).
        acc = taps_ref[0] * dww_ref[0]                               # (M, C) * (1, C)
        for t in range(1, 9):
            acc = acc + taps_ref[t] * dww_ref[t]
        dw = jnp.maximum(acc + dwb_ref[...], 0.0)                    # dw + BN + ReLU
        # Pointwise 1x1 GEMM over all spatial positions at once (MXU).
        y = jnp.dot(dw.astype(jnp.bfloat16), pww_ref[...],
                    preferred_element_type=jnp.float32)
        o_ref[...] = jnp.maximum(y + pwb_ref[...], 0.0)              # BN + ReLU epilogue
    return kernel


# ----------------------------------------------------------------------------
# Wrapper-side tap extraction (static, contiguous-friendly slices in plain XLA)
# ----------------------------------------------------------------------------
def _extract_taps(x_nhwc, stride):
    """Build (N, 9, Ho*Wo, C) tap stack for a 3x3 conv with padding=1."""
    n, h, w, c = x_nhwc.shape
    ho = (h + 2 - 3) // stride + 1
    wo = (w + 2 - 3) // stride + 1
    xp = jnp.pad(x_nhwc, ((0, 0), (1, 1), (1, 1), (0, 0)))
    taps = []
    for kh in range(3):
        for kw in range(3):
            t = xp[:, kh:kh + stride * (ho - 1) + 1:stride,
                      kw:kw + stride * (wo - 1) + 1:stride, :]
            taps.append(t.reshape(n, ho * wo, c))
    return jnp.stack(taps, axis=1), ho, wo


# ----------------------------------------------------------------------------
# pallas_call wrappers
# ----------------------------------------------------------------------------
def conv3x3_bn_relu(x_nhwc, w_taps, bias, stride):
    """x: (N,H,W,Cin) f32; w_taps: (9,Cin,Cout) bf16 (BN folded); bias: (1,Cout) f32."""
    n, _, _, cin = x_nhwc.shape
    cout = w_taps.shape[-1]
    taps, ho, wo = _extract_taps(x_nhwc, stride)
    m = ho * wo
    y = pl.pallas_call(
        _make_conv1_kernel(m, cout),
        out_shape=jax.ShapeDtypeStruct((n, m, cout), jnp.float32),
        grid=(n,),
        in_specs=[
            pl.BlockSpec((None, 9, m, cin), lambda i: (i, 0, 0, 0)),
            pl.BlockSpec((9, cin, cout), lambda i: (0, 0, 0)),
            pl.BlockSpec((1, cout), lambda i: (0, 0)),
        ],
        out_specs=pl.BlockSpec((None, m, cout), lambda i: (i, 0, 0)),
        compiler_params=pltpu.CompilerParams(dimension_semantics=("parallel",)),
    )(taps, w_taps, bias)
    return y.reshape(n, ho, wo, cout)


def dw_separable_block(x_nhwc, dw_w_taps, dw_bias, pw_w, pw_bias, stride):
    """Fused depthwise-separable block.  dw_w_taps: (9,1,C) f32; pw_w: (C,Cout) bf16."""
    n, _, _, c = x_nhwc.shape
    cout = pw_w.shape[-1]
    taps, ho, wo = _extract_taps(x_nhwc, stride)
    m = ho * wo
    y = pl.pallas_call(
        _make_dw_block_kernel(),
        out_shape=jax.ShapeDtypeStruct((n, m, cout), jnp.float32),
        grid=(n,),
        in_specs=[
            pl.BlockSpec((None, 9, m, c), lambda i: (i, 0, 0, 0)),
            pl.BlockSpec((9, 1, c), lambda i: (0, 0, 0)),
            pl.BlockSpec((1, c), lambda i: (0, 0)),
            pl.BlockSpec((c, cout), lambda i: (0, 0)),
            pl.BlockSpec((1, cout), lambda i: (0, 0)),
        ],
        out_specs=pl.BlockSpec((None, m, cout), lambda i: (i, 0, 0)),
        compiler_params=pltpu.CompilerParams(dimension_semantics=("parallel",)),
    )(taps, dw_w_taps, dw_bias, pw_w, pw_bias)
    return y.reshape(n, ho, wo, cout)


# ----------------------------------------------------------------------------
# Plain-JAX glue (parameter folding / layout)
# ----------------------------------------------------------------------------
def fold_bn(bn, eps=1e-5):
    gamma, beta, mean, var = bn
    scale = gamma / jnp.sqrt(var + eps)
    bias = beta - mean * scale
    return scale, bias


def prepare_conv1(params):
    w = params["conv1_w"]                                   # (Cout, Cin, 3, 3)
    scale, bias = fold_bn(params["bn1"])
    # OIHW -> (KH, KW, Cin, Cout) -> (9, Cin, Cout); fold BN scale into the Cout columns.
    w9 = jnp.transpose(w, (2, 3, 1, 0)).reshape(9, w.shape[1], w.shape[0])
    w9 = (w9 * scale[None, None, :]).astype(jnp.bfloat16)
    return w9, bias.reshape(1, -1).astype(jnp.float32)


def prepare_dw_block(p):
    c = p["dw_w"].shape[0]
    cout = p["pw_w"].shape[0]
    s1, b1 = fold_bn(p["bn_dw"])
    s2, b2 = fold_bn(p["bn_pw"])
    # depthwise (C,1,3,3) -> (9,1,C), taps ordered (kh,kw); fold BN scale per channel.
    dw9 = p["dw_w"].reshape(c, 9).T.reshape(9, 1, c) * s1[None, None, :]
    # pointwise (Cout,Cin,1,1) -> (Cin,Cout); fold BN scale into the output columns.
    pw = p["pw_w"].reshape(cout, c).T * s2[None, :]
    return (dw9.astype(jnp.float32),
            b1.reshape(1, -1).astype(jnp.float32),
            pw.astype(jnp.bfloat16),
            b2.reshape(1, -1).astype(jnp.float32))


def create_params(key):
    """Deterministic synthetic parameters with PyTorch-native shapes."""
    keys = iter(jax.random.split(key, 64))

    def conv_w(shape):
        return 0.1 * jax.random.normal(next(keys), shape, jnp.float32)

    def bn_params(c):
        gamma = 1.0 + 0.1 * jax.random.normal(next(keys), (c,), jnp.float32)
        beta = 0.1 * jax.random.normal(next(keys), (c,), jnp.float32)
        mean = 0.05 * jax.random.normal(next(keys), (c,), jnp.float32)
        var = 1.0 + 0.1 * jnp.abs(jax.random.normal(next(keys), (c,), jnp.float32))
        return (gamma, beta, mean, var)

    params = {
        "conv1_w": conv_w((32, 3, 3, 3)),          # [Cout, Cin, KH, KW]
        "bn1": bn_params(32),
    }
    for name, cin, cout in [("dw1", 32, 64), ("dw2", 64, 128),
                            ("dw4", 128, 256), ("dw6", 256, 512)]:
        params[name] = {
            "dw_w": conv_w((cin, 1, 3, 3)),        # depthwise [C, 1, KH, KW]
            "bn_dw": bn_params(cin),
            "pw_w": conv_w((cout, cin, 1, 1)),     # pointwise [Cout, Cin, 1, 1]
            "bn_pw": bn_params(cout),
        }
    return params


def mobilenet_forward(x_nchw, params):
    x = jnp.transpose(x_nchw, (0, 2, 3, 1)).astype(jnp.float32)    # NHWC

    # conv1: dense 3x3, stride 2, pad 1 + BN + ReLU (single fused kernel)
    w9, b = prepare_conv1(params)
    x = conv3x3_bn_relu(x, w9, b, stride=2)

    # depthwise-separable blocks (each is a single fused kernel)
    for name, stride in [("dw1", 1), ("dw2", 2), ("dw4", 2), ("dw6", 2)]:
        dw9, b1, pw, b2 = prepare_dw_block(params[name])
        x = dw_separable_block(x, dw9, b1, pw, b2, stride)

    return jnp.transpose(x, (0, 3, 1, 2))                          # back to NCHW


if __name__ == "__main__":
    key = jax.random.PRNGKey(0)
    pkey, xkey = jax.random.split(key)
    params = create_params(pkey)

    # Small input consistent with the module: NCHW, 3 input channels.
    # 16x16 spatial -> strides (2,1,2,2,2) -> final 1x1 spatial, 512 channels.
    x = jax.random.normal(xkey, (2, 3, 16, 16), jnp.float32)

    fwd = jax.jit(mobilenet_forward)
    out = jax.block_until_ready(fwd(x, params))
    assert out.shape == (2, 512, 1, 1), out.shape
    assert bool(jnp.all(jnp.isfinite(out)))
    print("KERNEL_OK")
</pallas_src>

<mosaic_0001>
module attributes {stable_mosaic.version = 11 : i64} {
  func.func @kernel(%arg0: i32, %arg1: memref<1x9x64x3xf32, #tpu.memory_space<vmem>>, %arg2: memref<9x3x32xbf16, #tpu.memory_space<vmem>>, %arg3: memref<1x32xf32, #tpu.memory_space<vmem>>, %arg4: memref<1x64x32xf32, #tpu.memory_space<vmem>>) attributes {dimension_semantics = [#tpu.dimension_semantics<parallel>], iteration_bounds = array<i64: 2>, scalar_prefetch = 0 : i64, scratch_operands = 0 : i64, tpu.core_type = #tpu.core_type<tc>, window_params = [{transform_indices = @transform_0, window_bounds = array<i64: 1, 9, 64, 3>}, {pipeline_mode = #tpu.pipeline_mode<synchronous>, transform_indices = @transform_1, window_bounds = array<i64: 9, 3, 32>}, {pipeline_mode = #tpu.pipeline_mode<synchronous>, transform_indices = @transform_2, window_bounds = array<i64: 1, 32>}, {transform_indices = @transform_3, window_bounds = array<i64: 1, 64, 32>}]} {
    %cst = arith.constant 0.000000e+00 : f32
    %0 = vector.broadcast %cst : f32 to vector<64x32xf32>
    %c0 = arith.constant 0 : index
    %c0_0 = arith.constant 0 : index
    %c0_1 = arith.constant 0 : index
    %c0_2 = arith.constant 0 : index
    %1 = vector.load %arg1[%c0, %c0_0, %c0_1, %c0_2] : memref<1x9x64x3xf32, #tpu.memory_space<vmem>>, vector<1x1x64x3xf32>
    %2 = vector.shape_cast %1 : vector<1x1x64x3xf32> to vector<64x3xf32>
    %3 = arith.truncf %2 : vector<64x3xf32> to vector<64x3xbf16>
    %c0_3 = arith.constant 0 : index
    %c0_4 = arith.constant 0 : index
    %c0_5 = arith.constant 0 : index
    %4 = vector.load %arg2[%c0_3, %c0_4, %c0_5] : memref<9x3x32xbf16, #tpu.memory_space<vmem>>, vector<1x3x32xbf16>
    %5 = vector.shape_cast %4 : vector<1x3x32xbf16> to vector<3x32xbf16>
    %cst_6 = arith.constant dense<0.000000e+00> : vector<64x32xf32>
    %6 = tpu.matmul %3, %5, %cst_6 {dimension_numbers = #tpu.dot_dimension_numbers<[1], [0], [0], [1], [0, 0, 1, 1], [], []>} : vector<64x3xbf16>, vector<3x32xbf16>, vector<64x32xf32> -> vector<64x32xf32>
    %7 = arith.addf %0, %6 : vector<64x32xf32>
    %c0_7 = arith.constant 0 : index
    %c1 = arith.constant 1 : index
    %c0_8 = arith.constant 0 : index
    %c0_9 = arith.constant 0 : index
    %8 = vector.load %arg1[%c0_7, %c1, %c0_8, %c0_9] : memref<1x9x64x3xf32, #tpu.memory_space<vmem>>, vector<1x1x64x3xf32>
    %9 = vector.shape_cast %8 : vector<1x1x64x3xf32> to vector<64x3xf32>
    %10 = arith.truncf %9 : vector<64x3xf32> to vector<64x3xbf16>
    %c1_10 = arith.constant 1 : index
    %c0_11 = arith.constant 0 : index
    %c0_12 = arith.constant 0 : index
    %11 = vector.load %arg2[%c1_10, %c0_11, %c0_12] : memref<9x3x32xbf16, #tpu.memory_space<vmem>>, vector<1x3x32xbf16>
    %12 = vector.shape_cast %11 : vector<1x3x32xbf16> to vector<3x32xbf16>
    %cst_13 = arith.constant dense<0.000000e+00> : vector<64x32xf32>
    %13 = tpu.matmul %10, %12, %cst_13 {dimension_numbers = #tpu.dot_dimension_numbers<[1], [0], [0], [1], [0, 0, 1, 1], [], []>} : vector<64x3xbf16>, vector<3x32xbf16>, vector<64x32xf32> -> vector<64x32xf32>
    %14 = arith.addf %7, %13 : vector<64x32xf32>
    %c0_14 = arith.constant 0 : index
    %c2 = arith.constant 2 : index
    %c0_15 = arith.constant 0 : index
    %c0_16 = arith.constant 0 : index
    %15 = vector.load %arg1[%c0_14, %c2, %c0_15, %c0_16] : memref<1x9x64x3xf32, #tpu.memory_space<vmem>>, vector<1x1x64x3xf32>
    %16 = vector.shape_cast %15 : vector<1x1x64x3xf32> to vector<64x3xf32>
    %17 = arith.truncf %16 : vector<64x3xf32> to vector<64x3xbf16>
    %c2_17 = arith.constant 2 : index
    %c0_18 = arith.constant 0 : index
    %c0_19 = arith.constant 0 : index
    %18 = vector.load %arg2[%c2_17, %c0_18, %c0_19] : memref<9x3x32xbf16, #tpu.memory_space<vmem>>, vector<1x3x32xbf16>
    %19 = vector.shape_cast %18 : vector<1x3x32xbf16> to vector<3x32xbf16>
    %cst_20 = arith.constant dense<0.000000e+00> : vector<64x32xf32>
    %20 = tpu.matmul %17, %19, %cst_20 {dimension_numbers = #tpu.dot_dimension_numbers<[1], [0], [0], [1], [0, 0, 1, 1], [], []>} : vector<64x3xbf16>, vector<3x32xbf16>, vector<64x32xf32> -> vector<64x32xf32>
    %21 = arith.addf %14, %20 : vector<64x32xf32>
    %c0_21 = arith.constant 0 : index
    %c3 = arith.constant 3 : index
    %c0_22 = arith.constant 0 : index
    %c0_23 = arith.constant 0 : index
    %22 = vector.load %arg1[%c0_21, %c3, %c0_22, %c0_23] : memref<1x9x64x3xf32, #tpu.memory_space<vmem>>, vector<1x1x64x3xf32>
    %23 = vector.shape_cast %22 : vector<1x1x64x3xf32> to vector<64x3xf32>
    %24 = arith.truncf %23 : vector<64x3xf32> to vector<64x3xbf16>
    %c3_24 = arith.constant 3 : index
    %c0_25 = arith.constant 0 : index
    %c0_26 = arith.constant 0 : index
    %25 = vector.load %arg2[%c3_24, %c0_25, %c0_26] : memref<9x3x32xbf16, #tpu.memory_space<vmem>>, vector<1x3x32xbf16>
    %26 = vector.shape_cast %25 : vector<1x3x32xbf16> to vector<3x32xbf16>
    %cst_27 = arith.constant dense<0.000000e+00> : vector<64x32xf32>
    %27 = tpu.matmul %24, %26, %cst_27 {dimension_numbers = #tpu.dot_dimension_numbers<[1], [0], [0], [1], [0, 0, 1, 1], [], []>} : vector<64x3xbf16>, vector<3x32xbf16>, vector<64x32xf32> -> vector<64x32xf32>
    %28 = arith.addf %21, %27 : vector<64x32xf32>
    %c0_28 = arith.constant 0 : index
    %c4 = arith.constant 4 : index
    %c0_29 = arith.constant 0 : index
    %c0_30 = arith.constant 0 : index
    %29 = vector.load %arg1[%c0_28, %c4, %c0_29, %c0_30] : memref<1x9x64x3xf32, #tpu.memory_space<vmem>>, vector<1x1x64x3xf32>
    %30 = vector.shape_cast %29 : vector<1x1x64x3xf32> to vector<64x3xf32>
    %31 = arith.truncf %30 : vector<64x3xf32> to vector<64x3xbf16>
    %c4_31 = arith.constant 4 : index
    %c0_32 = arith.constant 0 : index
    %c0_33 = arith.constant 0 : index
    %32 = vector.load %arg2[%c4_31, %c0_32, %c0_33] : memref<9x3x32xbf16, #tpu.memory_space<vmem>>, vector<1x3x32xbf16>
    %33 = vector.shape_cast %32 : vector<1x3x32xbf16> to vector<3x32xbf16>
    %cst_34 = arith.constant dense<0.000000e+00> : vector<64x32xf32>
    %34 = tpu.matmul %31, %33, %cst_34 {dimension_numbers = #tpu.dot_dimension_numbers<[1], [0], [0], [1], [0, 0, 1, 1], [], []>} : vector<64x3xbf16>, vector<3x32xbf16>, vector<64x32xf32> -> vector<64x32xf32>
    %35 = arith.addf %28, %34 : vector<64x32xf32>
    %c0_35 = arith.constant 0 : index
    %c5 = arith.constant 5 : index
    %c0_36 = arith.constant 0 : index
    %c0_37 = arith.constant 0 : index
    %36 = vector.load %arg1[%c0_35, %c5, %c0_36, %c0_37] : memref<1x9x64x3xf32, #tpu.memory_space<vmem>>, vector<1x1x64x3xf32>
    %37 = vector.shape_cast %36 : vector<1x1x64x3xf32> to vector<64x3xf32>
    %38 = arith.truncf %37 : vector<64x3xf32> to vector<64x3xbf16>
    %c5_38 = arith.constant 5 : index
    %c0_39 = arith.constant 0 : index
    %c0_40 = arith.constant 0 : index
    %39 = vector.load %arg2[%c5_38, %c0_39, %c0_40] : memref<9x3x32xbf16, #tpu.memory_space<vmem>>, vector<1x3x32xbf16>
    %40 = vector.shape_cast %39 : vector<1x3x32xbf16> to vector<3x32xbf16>
    %cst_41 = arith.constant dense<0.000000e+00> : vector<64x32xf32>
    %41 = tpu.matmul %38, %40, %cst_41 {dimension_numbers = #tpu.dot_dimension_numbers<[1], [0], [0], [1], [0, 0, 1, 1], [], []>} : vector<64x3xbf16>, vector<3x32xbf16>, vector<64x32xf32> -> vector<64x32xf32>
    %42 = arith.addf %35, %41 : vector<64x32xf32>
    %c0_42 = arith.constant 0 : index
    %c6 = arith.constant 6 : index
    %c0_43 = arith.constant 0 : index
    %c0_44 = arith.constant 0 : index
    %43 = vector.load %arg1[%c0_42, %c6, %c0_43, %c0_44] : memref<1x9x64x3xf32, #tpu.memory_space<vmem>>, vector<1x1x64x3xf32>
    %44 = vector.shape_cast %43 : vector<1x1x64x3xf32> to vector<64x3xf32>
    %45 = arith.truncf %44 : vector<64x3xf32> to vector<64x3xbf16>
    %c6_45 = arith.constant 6 : index
    %c0_46 = arith.constant 0 : index
    %c0_47 = arith.constant 0 : index
    %46 = vector.load %arg2[%c6_45, %c0_46, %c0_47] : memref<9x3x32xbf16, #tpu.memory_space<vmem>>, vector<1x3x32xbf16>
    %47 = vector.shape_cast %46 : vector<1x3x32xbf16> to vector<3x32xbf16>
    %cst_48 = arith.constant dense<0.000000e+00> : vector<64x32xf32>
    %48 = tpu.matmul %45, %47, %cst_48 {dimension_numbers = #tpu.dot_dimension_numbers<[1], [0], [0], [1], [0, 0, 1, 1], [], []>} : vector<64x3xbf16>, vector<3x32xbf16>, vector<64x32xf32> -> vector<64x32xf32>
    %49 = arith.addf %42, %48 : vector<64x32xf32>
    %c0_49 = arith.constant 0 : index
    %c7 = arith.constant 7 : index
    %c0_50 = arith.constant 0 : index
    %c0_51 = arith.constant 0 : index
    %50 = vector.load %arg1[%c0_49, %c7, %c0_50, %c0_51] : memref<1x9x64x3xf32, #tpu.memory_space<vmem>>, vector<1x1x64x3xf32>
    %51 = vector.shape_cast %50 : vector<1x1x64x3xf32> to vector<64x3xf32>
    %52 = arith.truncf %51 : vector<64x3xf32> to vector<64x3xbf16>
    %c7_52 = arith.constant 7 : index
    %c0_53 = arith.constant 0 : index
    %c0_54 = arith.constant 0 : index
    %53 = vector.load %arg2[%c7_52, %c0_53, %c0_54] : memref<9x3x32xbf16, #tpu.memory_space<vmem>>, vector<1x3x32xbf16>
    %54 = vector.shape_cast %53 : vector<1x3x32xbf16> to vector<3x32xbf16>
    %cst_55 = arith.constant dense<0.000000e+00> : vector<64x32xf32>
    %55 = tpu.matmul %52, %54, %cst_55 {dimension_numbers = #tpu.dot_dimension_numbers<[1], [0], [0], [1], [0, 0, 1, 1], [], []>} : vector<64x3xbf16>, vector<3x32xbf16>, vector<64x32xf32> -> vector<64x32xf32>
    %56 = arith.addf %49, %55 : vector<64x32xf32>
    %c0_56 = arith.constant 0 : index
    %c8 = arith.constant 8 : index
    %c0_57 = arith.constant 0 : index
    %c0_58 = arith.constant 0 : index
    %57 = vector.load %arg1[%c0_56, %c8, %c0_57, %c0_58] : memref<1x9x64x3xf32, #tpu.memory_space<vmem>>, vector<1x1x64x3xf32>
    %58 = vector.shape_cast %57 : vector<1x1x64x3xf32> to vector<64x3xf32>
    %59 = arith.truncf %58 : vector<64x3xf32> to vector<64x3xbf16>
    %c8_59 = arith.constant 8 : index
    %c0_60 = arith.constant 0 : index
    %c0_61 = arith.constant 0 : index
    %60 = vector.load %arg2[%c8_59, %c0_60, %c0_61] : memref<9x3x32xbf16, #tpu.memory_space<vmem>>, vector<1x3x32xbf16>
    %61 = vector.shape_cast %60 : vector<1x3x32xbf16> to vector<3x32xbf16>
    %cst_62 = arith.constant dense<0.000000e+00> : vector<64x32xf32>
    %62 = tpu.matmul %59, %61, %cst_62 {dimension_numbers = #tpu.dot_dimension_numbers<[1], [0], [0], [1], [0, 0, 1, 1], [], []>} : vector<64x3xbf16>, vector<3x32xbf16>, vector<64x32xf32> -> vector<64x32xf32>
    %63 = arith.addf %56, %62 : vector<64x32xf32>
    %c0_63 = arith.constant 0 : index
    %c0_64 = arith.constant 0 : index
    %64 = vector.load %arg3[%c0_63, %c0_64] : memref<1x32xf32, #tpu.memory_space<vmem>>, vector<1x32xf32>
    %65 = vector.broadcast %64 : vector<1x32xf32> to vector<64x32xf32>
    %66 = arith.addf %63, %65 : vector<64x32xf32>
    %cst_65 = arith.constant 0.000000e+00 : f32
    %67 = vector.broadcast %cst_65 : f32 to vector<64x32xf32>
    %68 = arith.maximumf %66, %67 : vector<64x32xf32>
    %c0_66 = arith.constant 0 : index
    %c0_67 = arith.constant 0 : index
    %c0_68 = arith.constant 0 : index
    %69 = vector.load %arg4[%c0_66, %c0_67, %c0_68] : memref<1x64x32xf32, #tpu.memory_space<vmem>>, vector<1x64x32xf32>
    %70 = vector.shape_cast %69 : vector<1x64x32xf32> to vector<64x32xf32>
    %71 = vector.shape_cast %68 : vector<64x32xf32> to vector<1x64x32xf32>
    tpu.vector_store %arg4[%c0_66, %c0_67, %c0_68], %71 {strides = array<i32>} : memref<1x64x32xf32, #tpu.memory_space<vmem>>, vector<1x64x32xf32>,
    return
  }
  func.func @transform_0(%arg0: i32) -> (i32, i32, i32, i32) {
    %c0_i32 = arith.constant 0 : i32
    %c0_i32_0 = arith.constant 0 : i32
    %c0_i32_1 = arith.constant 0 : i32
    %c0_i32_2 = arith.constant 0 : i32
    return %arg0, %c0_i32, %c0_i32_0, %c0_i32_1 : i32, i32, i32, i32
  }
  func.func @transform_1(%arg0: i32) -> (i32, i32, i32) {
    %c0_i32 = arith.constant 0 : i32
    %c0_i32_0 = arith.constant 0 : i32
    %c0_i32_1 = arith.constant 0 : i32
    %c0_i32_2 = arith.constant 0 : i32
    return %c0_i32, %c0_i32_0, %c0_i32_1 : i32, i32, i32
  }
  func.func @transform_2(%arg0: i32) -> (i32, i32) {
    %c0_i32 = arith.constant 0 : i32
    %c0_i32_0 = arith.constant 0 : i32
    %c0_i32_1 = arith.constant 0 : i32
    return %c0_i32, %c0_i32_0 : i32, i32
  }
  func.func @transform_3(%arg0: i32) -> (i32, i32, i32) {
    %c0_i32 = arith.constant 0 : i32
    %c0_i32_0 = arith.constant 0 : i32
    %c0_i32_1 = arith.constant 0 : i32
    return %arg0, %c0_i32, %c0_i32_0 : i32, i32, i32
  }
}

module attributes {stable_mosaic.version = 11 : i64} {
  func.func @kernel(%arg0: i32, %arg1: memref<1x9x64x32xf32, #tpu.memory_space<vmem>>, %arg2: memref<9x1x32xf32, #tpu.memory_space<vmem>>, %arg3: memref<1x32xf32, #tpu.memory_space<vmem>>, %arg4: memref<32x64xbf16, #tpu.memory_space<vmem>>, %arg5: memref<1x64xf32, #tpu.memory_space<vmem>>, %arg6: memref<1x64x64xf32, #tpu.memory_space<vmem>>) attributes {dimension_semantics = [#tpu.dimension_semantics<parallel>], iteration_bounds = array<i64: 2>, scalar_prefetch = 0 : i64, scratch_operands = 0 : i64, tpu.core_type = #tpu.core_type<tc>, window_params = [{transform_indices = @transform_0, window_bounds = array<i64: 1, 9, 64, 32>}, {pipeline_mode = #tpu.pipeline_mode<synchronous>, transform_indices = @transform_1, window_bounds = array<i64: 9, 1, 32>}, {pipeline_mode = #tpu.pipeline_mode<synchronous>, transform_indices = @transform_2, window_bounds = array<i64: 1, 32>}, {pipeline_mode = #tpu.pipeline_mode<synchronous>, transform_indices = @transform_3, window_bounds = array<i64: 32, 64>}, {pipeline_mode = #tpu.pipeline_mode<synchronous>, transform_indices = @transform_4, window_bounds = array<i64: 1, 64>}, {transform_indices = @transform_5, window_bounds = array<i64: 1, 64, 64>}]} {
    %c0 = arith.constant 0 : index
    %c0_0 = arith.constant 0 : index
    %c0_1 = arith.constant 0 : index
    %c0_2 = arith.constant 0 : index
    %0 = vector.load %arg1[%c0, %c0_0, %c0_1, %c0_2] : memref<1x9x64x32xf32, #tpu.memory_space<vmem>>, vector<1x1x64x32xf32>
    %1 = vector.shape_cast %0 : vector<1x1x64x32xf32> to vector<64x32xf32>
    %c0_3 = arith.constant 0 : index
    %c0_4 = arith.constant 0 : index
    %c0_5 = arith.constant 0 : index
    %2 = vector.load %arg2[%c0_3, %c0_4, %c0_5] : memref<9x1x32xf32, #tpu.memory_space<vmem>>, vector<1x1x32xf32>
    %3 = vector.shape_cast %2 : vector<1x1x32xf32> to vector<1x32xf32>
    %4 = vector.broadcast %3 : vector<1x32xf32> to vector<64x32xf32>
    %5 = arith.mulf %1, %4 : vector<64x32xf32>
    %c0_6 = arith.constant 0 : index
    %c1 = arith.constant 1 : index
    %c0_7 = arith.constant 0 : index
    %c0_8 = arith.constant 0 : index
    %6 = vector.load %arg1[%c0_6, %c1, %c0_7, %c0_8] : memref<1x9x64x32xf32, #tpu.memory_space<vmem>>, vector<1x1x64x32xf32>
    %7 = vector.shape_cast %6 : vector<1x1x64x32xf32> to vector<64x32xf32>
    %c1_9 = arith.constant 1 : index
    %c0_10 = arith.constant 0 : index
    %c0_11 = arith.constant 0 : index
    %8 = vector.load %arg2[%c1_9, %c0_10, %c0_11] : memref<9x1x32xf32, #tpu.memory_space<vmem>>, vector<1x1x32xf32>
    %9 = vector.shape_cast %8 : vector<1x1x32xf32> to vector<1x32xf32>
    %10 = vector.broadcast %9 : vector<1x32xf32> to vector<64x32xf32>
    %11 = arith.mulf %7, %10 : vector<64x32xf32>
    %12 = arith.addf %5, %11 : vector<64x32xf32>
    %c0_12 = arith.constant 0 : index
    %c2 = arith.constant 2 : index
    %c0_13 = arith.constant 0 : index
    %c0_14 = arith.constant 0 : index
    %13 = vector.load %arg1[%c0_12, %c2, %c0_13, %c0_14] : memref<1x9x64x32xf32, #tpu.memory_space<vmem>>, vector<1x1x64x32xf32>
    %14 = vector.shape_cast %13 : vector<1x1x64x32xf32> to vector<64x32xf32>
    %c2_15 = arith.constant 2 : index
    %c0_16 = arith.constant 0 : index
    %c0_17 = arith.constant 0 : index
    %15 = vector.load %arg2[%c2_15, %c0_16, %c0_17] : memref<9x1x32xf32, #tpu.memory_space<vmem>>, vector<1x1x32xf32>
    %16 = vector.shape_cast %15 : vector<1x1x32xf32> to vector<1x32xf32>
    %17 = vector.broadcast %16 : vector<1x32xf32> to vector<64x32xf32>
    %18 = arith.mulf %14, %17 : vector<64x32xf32>
    %19 = arith.addf %12, %18 : vector<64x32xf32>
    %c0_18 = arith.constant 0 : index
    %c3 = arith.constant 3 : index
    %c0_19 = arith.constant 0 : index
    %c0_20 = arith.constant 0 : index
    %20 = vector.load %arg1[%c0_18, %c3, %c0_19, %c0_20] : memref<1x9x64x32xf32, #tpu.memory_space<vmem>>, vector<1x1x64x32xf32>
    %21 = vector.shape_cast %20 : vector<1x1x64x32xf32> to vector<64x32xf32>
    %c3_21 = arith.constant 3 : index
    %c0_22 = arith.constant 0 : index
    %c0_23 = arith.constant 0 : index
    %22 = vector.load %arg2[%c3_21, %c0_22, %c0_23] : memref<9x1x32xf32, #tpu.memory_space<vmem>>, vector<1x1x32xf32>
    %23 = vector.shape_cast %22 : vector<1x1x32xf32> to vector<1x32xf32>
    %24 = vector.broadcast %23 : vector<1x32xf32> to vector<64x32xf32>
    %25 = arith.mulf %21, %24 : vector<64x32xf32>
    %26 = arith.addf %19, %25 : vector<64x32xf32>
    %c0_24 = arith.constant 0 : index
    %c4 = arith.constant 4 : index
    %c0_25 = arith.constant 0 : index
    %c0_26 = arith.constant 0 : index
    %27 = vector.load %arg1[%c0_24, %c4, %c0_25, %c0_26] : memref<1x9x64x32xf32, #tpu.memory_space<vmem>>, vector<1x1x64x32xf32>
    %28 = vector.shape_cast %27 : vector<1x1x64x32xf32> to vector<64x32xf32>
    %c4_27 = arith.constant 4 : index
    %c0_28 = arith.constant 0 : index
    %c0_29 = arith.constant 0 : index
    %29 = vector.load %arg2[%c4_27, %c0_28, %c0_29] : memref<9x1x32xf32, #tpu.memory_space<vmem>>, vector<1x1x32xf32>
    %30 = vector.shape_cast %29 : vector<1x1x32xf32> to vector<1x32xf32>
    %31 = vector.broadcast %30 : vector<1x32xf32> to vector<64x32xf32>
    %32 = arith.mulf %28, %31 : vector<64x32xf32>
    %33 = arith.addf %26, %32 : vector<64x32xf32>
    %c0_30 = arith.constant 0 : index
    %c5 = arith.constant 5 : index
    %c0_31 = arith.constant 0 : index
    %c0_32 = arith.constant 0 : index
    %34 = vector.load %arg1[%c0_30, %c5, %c0_31, %c0_32] : memref<1x9x64x32xf32, #tpu.memory_space<vmem>>, vector<1x1x64x32xf32>
    %35 = vector.shape_cast %34 : vector<1x1x64x32xf32> to vector<64x32xf32>
    %c5_33 = arith.constant 5 : index
    %c0_34 = arith.constant 0 : index
    %c0_35 = arith.constant 0 : index
    %36 = vector.load %arg2[%c5_33, %c0_34, %c0_35] : memref<9x1x32xf32, #tpu.memory_space<vmem>>, vector<1x1x32xf32>
    %37 = vector.shape_cast %36 : vector<1x1x32xf32> to vector<1x32xf32>
    %38 = vector.broadcast %37 : vector<1x32xf32> to vector<64x32xf32>
    %39 = arith.mulf %35, %38 : vector<64x32xf32>
    %40 = arith.addf %33, %39 : vector<64x32xf32>
    %c0_36 = arith.constant 0 : index
    %c6 = arith.constant 6 : index
    %c0_37 = arith.constant 0 : index
    %c0_38 = arith.constant 0 : index
    %41 = vector.load %arg1[%c0_36, %c6, %c0_37, %c0_38] : memref<1x9x64x32xf32, #tpu.memory_space<vmem>>, vector<1x1x64x32xf32>
    %42 = vector.shape_cast %41 : vector<1x1x64x32xf32> to vector<64x32xf32>
    %c6_39 = arith.constant 6 : index
    %c0_40 = arith.constant 0 : index
    %c0_41 = arith.constant 0 : index
    %43 = vector.load %arg2[%c6_39, %c0_40, %c0_41] : memref<9x1x32xf32, #tpu.memory_space<vmem>>, vector<1x1x32xf32>
    %44 = vector.shape_cast %43 : vector<1x1x32xf32> to vector<1x32xf32>
    %45 = vector.broadcast %44 : vector<1x32xf32> to vector<64x32xf32>
    %46 = arith.mulf %42, %45 : vector<64x32xf32>
    %47 = arith.addf %40, %46 : vector<64x32xf32>
    %c0_42 = arith.constant 0 : index
    %c7 = arith.constant 7 : index
    %c0_43 = arith.constant 0 : index
    %c0_44 = arith.constant 0 : index
    %48 = vector.load %arg1[%c0_42, %c7, %c0_43, %c0_44] : memref<1x9x64x32xf32, #tpu.memory_space<vmem>>, vector<1x1x64x32xf32>
    %49 = vector.shape_cast %48 : vector<1x1x64x32xf32> to vector<64x32xf32>
    %c7_45 = arith.constant 7 : index
    %c0_46 = arith.constant 0 : index
    %c0_47 = arith.constant 0 : index
    %50 = vector.load %arg2[%c7_45, %c0_46, %c0_47] : memref<9x1x32xf32, #tpu.memory_space<vmem>>, vector<1x1x32xf32>
    %51 = vector.shape_cast %50 : vector<1x1x32xf32> to vector<1x32xf32>
    %52 = vector.broadcast %51 : vector<1x32xf32> to vector<64x32xf32>
    %53 = arith.mulf %49, %52 : vector<64x32xf32>
    %54 = arith.addf %47, %53 : vector<64x32xf32>
    %c0_48 = arith.constant 0 : index
    %c8 = arith.constant 8 : index
    %c0_49 = arith.constant 0 : index
    %c0_50 = arith.constant 0 : index
    %55 = vector.load %arg1[%c0_48, %c8, %c0_49, %c0_50] : memref<1x9x64x32xf32, #tpu.memory_space<vmem>>, vector<1x1x64x32xf32>
    %56 = vector.shape_cast %55 : vector<1x1x64x32xf32> to vector<64x32xf32>
    %c8_51 = arith.constant 8 : index
    %c0_52 = arith.constant 0 : index
    %c0_53 = arith.constant 0 : index
    %57 = vector.load %arg2[%c8_51, %c0_52, %c0_53] : memref<9x1x32xf32, #tpu.memory_space<vmem>>, vector<1x1x32xf32>
    %58 = vector.shape_cast %57 : vector<1x1x32xf32> to vector<1x32xf32>
    %59 = vector.broadcast %58 : vector<1x32xf32> to vector<64x32xf32>
    %60 = arith.mulf %56, %59 : vector<64x32xf32>
    %61 = arith.addf %54, %60 : vector<64x32xf32>
    %c0_54 = arith.constant 0 : index
    %c0_55 = arith.constant 0 : index
    %62 = vector.load %arg3[%c0_54, %c0_55] : memref<1x32xf32, #tpu.memory_space<vmem>>, vector<1x32xf32>
    %63 = vector.broadcast %62 : vector<1x32xf32> to vector<64x32xf32>
    %64 = arith.addf %61, %63 : vector<64x32xf32>
    %cst = arith.constant 0.000000e+00 : f32
    %65 = vector.broadcast %cst : f32 to vector<64x32xf32>
    %66 = arith.maximumf %64, %65 : vector<64x32xf32>
    %67 = arith.truncf %66 : vector<64x32xf32> to vector<64x32xbf16>
    %c0_56 = arith.constant 0 : index
    %c0_57 = arith.constant 0 : index
    %68 = vector.load %arg4[%c0_56, %c0_57] : memref<32x64xbf16, #tpu.memory_space<vmem>>, vector<32x64xbf16>
    %cst_58 = arith.constant dense<0.000000e+00> : vector<64x64xf32>
    %69 = tpu.matmul %67, %68, %cst_58 {dimension_numbers = #tpu.dot_dimension_numbers<[1], [0], [0], [1], [0, 0, 1, 1], [], []>} : vector<64x32xbf16>, vector<32x64xbf16>, vector<64x64xf32> -> vector<64x64xf32>
    %c0_59 = arith.constant 0 : index
    %c0_60 = arith.constant 0 : index
    %70 = vector.load %arg5[%c0_59, %c0_60] : memref<1x64xf32, #tpu.memory_space<vmem>>, vector<1x64xf32>
    %71 = vector.broadcast %70 : vector<1x64xf32> to vector<64x64xf32>
    %72 = arith.addf %69, %71 : vector<64x64xf32>
    %cst_61 = arith.constant 0.000000e+00 : f32
    %73 = vector.broadcast %cst_61 : f32 to vector<64x64xf32>
    %74 = arith.maximumf %72, %73 : vector<64x64xf32>
    %c0_62 = arith.constant 0 : index
    %c0_63 = arith.constant 0 : index
    %c0_64 = arith.constant 0 : index
    %75 = vector.load %arg6[%c0_62, %c0_63, %c0_64] : memref<1x64x64xf32, #tpu.memory_space<vmem>>, vector<1x64x64xf32>
    %76 = vector.shape_cast %75 : vector<1x64x64xf32> to vector<64x64xf32>
    %77 = vector.shape_cast %74 : vector<64x64xf32> to vector<1x64x64xf32>
    tpu.vector_store %arg6[%c0_62, %c0_63, %c0_64], %77 {strides = array<i32>} : memref<1x64x64xf32, #tpu.memory_space<vmem>>, vector<1x64x64xf32>,
    return
  }
  func.func @transform_0(%arg0: i32) -> (i32, i32, i32, i32) {
    %c0_i32 = arith.constant 0 : i32
    %c0_i32_0 = arith.constant 0 : i32
    %c0_i32_1 = arith.constant 0 : i32
    %c0_i32_2 = arith.constant 0 : i32
    return %arg0, %c0_i32, %c0_i32_0, %c0_i32_1 : i32, i32, i32, i32
  }
  func.func @transform_1(%arg0: i32) -> (i32, i32, i32) {
    %c0_i32 = arith.constant 0 : i32
    %c0_i32_0 = arith.constant 0 : i32
    %c0_i32_1 = arith.constant 0 : i32
    %c0_i32_2 = arith.constant 0 : i32
    return %c0_i32, %c0_i32_0, %c0_i32_1 : i32, i32, i32
  }
  func.func @transform_2(%arg0: i32) -> (i32, i32) {
    %c0_i32 = arith.constant 0 : i32
    %c0_i32_0 = arith.constant 0 : i32
    %c0_i32_1 = arith.constant 0 : i32
    return %c0_i32, %c0_i32_0 : i32, i32
  }
  func.func @transform_3(%arg0: i32) -> (i32, i32) {
    %c0_i32 = arith.constant 0 : i32
    %c0_i32_0 = arith.constant 0 : i32
    %c0_i32_1 = arith.constant 0 : i32
    return %c0_i32, %c0_i32_0 : i32, i32
  }
  func.func @transform_4(%arg0: i32) -> (i32, i32) {
    %c0_i32 = arith.constant 0 : i32
    %c0_i32_0 = arith.constant 0 : i32
    %c0_i32_1 = arith.constant 0 : i32
    return %c0_i32, %c0_i32_0 : i32, i32
  }
  func.func @transform_5(%arg0: i32) -> (i32, i32, i32) {
    %c0_i32 = arith.constant 0 : i32
    %c0_i32_0 = arith.constant 0 : i32
    %c0_i32_1 = arith.constant 0 : i32
    return %arg0, %c0_i32, %c0_i32_0 : i32, i32, i32
  }
}

module attributes {stable_mosaic.version = 11 : i64} {
  func.func @kernel(%arg0: i32, %arg1: memref<1x9x16x64xf32, #tpu.memory_space<vmem>>, %arg2: memref<9x1x64xf32, #tpu.memory_space<vmem>>, %arg3: memref<1x64xf32, #tpu.memory_space<vmem>>, %arg4: memref<64x128xbf16, #tpu.memory_space<vmem>>, %arg5: memref<1x128xf32, #tpu.memory_space<vmem>>, %arg6: memref<1x16x128xf32, #tpu.memory_space<vmem>>) attributes {dimension_semantics = [#tpu.dimension_semantics<parallel>], iteration_bounds = array<i64: 2>, scalar_prefetch = 0 : i64, scratch_operands = 0 : i64, tpu.core_type = #tpu.core_type<tc>, window_params = [{transform_indices = @transform_0, window_bounds = array<i64: 1, 9, 16, 64>}, {pipeline_mode = #tpu.pipeline_mode<synchronous>, transform_indices = @transform_1, window_bounds = array<i64: 9, 1, 64>}, {pipeline_mode = #tpu.pipeline_mode<synchronous>, transform_indices = @transform_2, window_bounds = array<i64: 1, 64>}, {pipeline_mode = #tpu.pipeline_mode<synchronous>, transform_indices = @transform_3, window_bounds = array<i64: 64, 128>}, {pipeline_mode = #tpu.pipeline_mode<synchronous>, transform_indices = @transform_4, window_bounds = array<i64: 1, 128>}, {transform_indices = @transform_5, window_bounds = array<i64: 1, 16, 128>}]} {
    %c0 = arith.constant 0 : index
    %c0_0 = arith.constant 0 : index
    %c0_1 = arith.constant 0 : index
    %c0_2 = arith.constant 0 : index
    %0 = vector.load %arg1[%c0, %c0_0, %c0_1, %c0_2] : memref<1x9x16x64xf32, #tpu.memory_space<vmem>>, vector<1x1x16x64xf32>
    %1 = vector.shape_cast %0 : vector<1x1x16x64xf32> to vector<16x64xf32>
    %c0_3 = arith.constant 0 : index
    %c0_4 = arith.constant 0 : index
    %c0_5 = arith.constant 0 : index
    %2 = vector.load %arg2[%c0_3, %c0_4, %c0_5] : memref<9x1x64xf32, #tpu.memory_space<vmem>>, vector<1x1x64xf32>
    %3 = vector.shape_cast %2 : vector<1x1x64xf32> to vector<1x64xf32>
    %4 = vector.broadcast %3 : vector<1x64xf32> to vector<16x64xf32>
    %5 = arith.mulf %1, %4 : vector<16x64xf32>
    %c0_6 = arith.constant 0 : index
    %c1 = arith.constant 1 : index
    %c0_7 = arith.constant 0 : index
    %c0_8 = arith.constant 0 : index
    %6 = vector.load %arg1[%c0_6, %c1, %c0_7, %c0_8] : memref<1x9x16x64xf32, #tpu.memory_space<vmem>>, vector<1x1x16x64xf32>
    %7 = vector.shape_cast %6 : vector<1x1x16x64xf32> to vector<16x64xf32>
    %c1_9 = arith.constant 1 : index
    %c0_10 = arith.constant 0 : index
    %c0_11 = arith.constant 0 : index
    %8 = vector.load %arg2[%c1_9, %c0_10, %c0_11] : memref<9x1x64xf32, #tpu.memory_space<vmem>>, vector<1x1x64xf32>
    %9 = vector.shape_cast %8 : vector<1x1x64xf32> to vector<1x64xf32>
    %10 = vector.broadcast %9 : vector<1x64xf32> to vector<16x64xf32>
    %11 = arith.mulf %7, %10 : vector<16x64xf32>
    %12 = arith.addf %5, %11 : vector<16x64xf32>
    %c0_12 = arith.constant 0 : index
    %c2 = arith.constant 2 : index
    %c0_13 = arith.constant 0 : index
    %c0_14 = arith.constant 0 : index
    %13 = vector.load %arg1[%c0_12, %c2, %c0_13, %c0_14] : memref<1x9x16x64xf32, #tpu.memory_space<vmem>>, vector<1x1x16x64xf32>
    %14 = vector.shape_cast %13 : vector<1x1x16x64xf32> to vector<16x64xf32>
    %c2_15 = arith.constant 2 : index
    %c0_16 = arith.constant 0 : index
    %c0_17 = arith.constant 0 : index
    %15 = vector.load %arg2[%c2_15, %c0_16, %c0_17] : memref<9x1x64xf32, #tpu.memory_space<vmem>>, vector<1x1x64xf32>
    %16 = vector.shape_cast %15 : vector<1x1x64xf32> to vector<1x64xf32>
    %17 = vector.broadcast %16 : vector<1x64xf32> to vector<16x64xf32>
    %18 = arith.mulf %14, %17 : vector<16x64xf32>
    %19 = arith.addf %12, %18 : vector<16x64xf32>
    %c0_18 = arith.constant 0 : index
    %c3 = arith.constant 3 : index
    %c0_19 = arith.constant 0 : index
    %c0_20 = arith.constant 0 : index
    %20 = vector.load %arg1[%c0_18, %c3, %c0_19, %c0_20] : memref<1x9x16x64xf32, #tpu.memory_space<vmem>>, vector<1x1x16x64xf32>
    %21 = vector.shape_cast %20 : vector<1x1x16x64xf32> to vector<16x64xf32>
    %c3_21 = arith.constant 3 : index
    %c0_22 = arith.constant 0 : index
    %c0_23 = arith.constant 0 : index
    %22 = vector.load %arg2[%c3_21, %c0_22, %c0_23] : memref<9x1x64xf32, #tpu.memory_space<vmem>>, vector<1x1x64xf32>
    %23 = vector.shape_cast %22 : vector<1x1x64xf32> to vector<1x64xf32>
    %24 = vector.broadcast %23 : vector<1x64xf32> to vector<16x64xf32>
    %25 = arith.mulf %21, %24 : vector<16x64xf32>
    %26 = arith.addf %19, %25 : vector<16x64xf32>
    %c0_24 = arith.constant 0 : index
    %c4 = arith.constant 4 : index
    %c0_25 = arith.constant 0 : index
    %c0_26 = arith.constant 0 : index
    %27 = vector.load %arg1[%c0_24, %c4, %c0_25, %c0_26] : memref<1x9x16x64xf32, #tpu.memory_space<vmem>>, vector<1x1x16x64xf32>
    %28 = vector.shape_cast %27 : vector<1x1x16x64xf32> to vector<16x64xf32>
    %c4_27 = arith.constant 4 : index
    %c0_28 = arith.constant 0 : index
    %c0_29 = arith.constant 0 : index
    %29 = vector.load %arg2[%c4_27, %c0_28, %c0_29] : memref<9x1x64xf32, #tpu.memory_space<vmem>>, vector<1x1x64xf32>
    %30 = vector.shape_cast %29 : vector<1x1x64xf32> to vector<1x64xf32>
    %31 = vector.broadcast %30 : vector<1x64xf32> to vector<16x64xf32>
    %32 = arith.mulf %28, %31 : vector<16x64xf32>
    %33 = arith.addf %26, %32 : vector<16x64xf32>
    %c0_30 = arith.constant 0 : index
    %c5 = arith.constant 5 : index
    %c0_31 = arith.constant 0 : index
    %c0_32 = arith.constant 0 : index
    %34 = vector.load %arg1[%c0_30, %c5, %c0_31, %c0_32] : memref<1x9x16x64xf32, #tpu.memory_space<vmem>>, vector<1x1x16x64xf32>
    %35 = vector.shape_cast %34 : vector<1x1x16x64xf32> to vector<16x64xf32>
    %c5_33 = arith.constant 5 : index
    %c0_34 = arith.constant 0 : index
    %c0_35 = arith.constant 0 : index
    %36 = vector.load %arg2[%c5_33, %c0_34, %c0_35] : memref<9x1x64xf32, #tpu.memory_space<vmem>>, vector<1x1x64xf32>
    %37 = vector.shape_cast %36 : vector<1x1x64xf32> to vector<1x64xf32>
    %38 = vector.broadcast %37 : vector<1x64xf32> to vector<16x64xf32>
    %39 = arith.mulf %35, %38 : vector<16x64xf32>
    %40 = arith.addf %33, %39 : vector<16x64xf32>
    %c0_36 = arith.constant 0 : index
    %c6 = arith.constant 6 : index
    %c0_37 = arith.constant 0 : index
    %c0_38 = arith.constant 0 : index
    %41 = vector.load %arg1[%c0_36, %c6, %c0_37, %c0_38] : memref<1x9x16x64xf32, #tpu.memory_space<vmem>>, vector<1x1x16x64xf32>
    %42 = vector.shape_cast %41 : vector<1x1x16x64xf32> to vector<16x64xf32>
    %c6_39 = arith.constant 6 : index
    %c0_40 = arith.constant 0 : index
    %c0_41 = arith.constant 0 : index
    %43 = vector.load %arg2[%c6_39, %c0_40, %c0_41] : memref<9x1x64xf32, #tpu.memory_space<vmem>>, vector<1x1x64xf32>
    %44 = vector.shape_cast %43 : vector<1x1x64xf32> to vector<1x64xf32>
    %45 = vector.broadcast %44 : vector<1x64xf32> to vector<16x64xf32>
    %46 = arith.mulf %42, %45 : vector<16x64xf32>
    %47 = arith.addf %40, %46 : vector<16x64xf32>
    %c0_42 = arith.constant 0 : index
    %c7 = arith.constant 7 : index
    %c0_43 = arith.constant 0 : index
    %c0_44 = arith.constant 0 : index
    %48 = vector.load %arg1[%c0_42, %c7, %c0_43, %c0_44] : memref<1x9x16x64xf32, #tpu.memory_space<vmem>>, vector<1x1x16x64xf32>
    %49 = vector.shape_cast %48 : vector<1x1x16x64xf32> to vector<16x64xf32>
    %c7_45 = arith.constant 7 : index
    %c0_46 = arith.constant 0 : index
    %c0_47 = arith.constant 0 : index
    %50 = vector.load %arg2[%c7_45, %c0_46, %c0_47] : memref<9x1x64xf32, #tpu.memory_space<vmem>>, vector<1x1x64xf32>
    %51 = vector.shape_cast %50 : vector<1x1x64xf32> to vector<1x64xf32>
    %52 = vector.broadcast %51 : vector<1x64xf32> to vector<16x64xf32>
    %53 = arith.mulf %49, %52 : vector<16x64xf32>
    %54 = arith.addf %47, %53 : vector<16x64xf32>
    %c0_48 = arith.constant 0 : index
    %c8 = arith.constant 8 : index
    %c0_49 = arith.constant 0 : index
    %c0_50 = arith.constant 0 : index
    %55 = vector.load %arg1[%c0_48, %c8, %c0_49, %c0_50] : memref<1x9x16x64xf32, #tpu.memory_space<vmem>>, vector<1x1x16x64xf32>
    %56 = vector.shape_cast %55 : vector<1x1x16x64xf32> to vector<16x64xf32>
    %c8_51 = arith.constant 8 : index
    %c0_52 = arith.constant 0 : index
    %c0_53 = arith.constant 0 : index
    %57 = vector.load %arg2[%c8_51, %c0_52, %c0_53] : memref<9x1x64xf32, #tpu.memory_space<vmem>>, vector<1x1x64xf32>
    %58 = vector.shape_cast %57 : vector<1x1x64xf32> to vector<1x64xf32>
    %59 = vector.broadcast %58 : vector<1x64xf32> to vector<16x64xf32>
    %60 = arith.mulf %56, %59 : vector<16x64xf32>
    %61 = arith.addf %54, %60 : vector<16x64xf32>
    %c0_54 = arith.constant 0 : index
    %c0_55 = arith.constant 0 : index
    %62 = vector.load %arg3[%c0_54, %c0_55] : memref<1x64xf32, #tpu.memory_space<vmem>>, vector<1x64xf32>
    %63 = vector.broadcast %62 : vector<1x64xf32> to vector<16x64xf32>
    %64 = arith.addf %61, %63 : vector<16x64xf32>
    %cst = arith.constant 0.000000e+00 : f32
    %65 = vector.broadcast %cst : f32 to vector<16x64xf32>
    %66 = arith.maximumf %64, %65 : vector<16x64xf32>
    %67 = arith.truncf %66 : vector<16x64xf32> to vector<16x64xbf16>
    %c0_56 = arith.constant 0 : index
    %c0_57 = arith.constant 0 : index
    %68 = vector.load %arg4[%c0_56, %c0_57] : memref<64x128xbf16, #tpu.memory_space<vmem>>, vector<64x128xbf16>
    %cst_58 = arith.constant dense<0.000000e+00> : vector<16x128xf32>
    %69 = tpu.matmul %67, %68, %cst_58 {dimension_numbers = #tpu.dot_dimension_numbers<[1], [0], [0], [1], [0, 0, 1, 1], [], []>} : vector<16x64xbf16>, vector<64x128xbf16>, vector<16x128xf32> -> vector<16x128xf32>
    %c0_59 = arith.constant 0 : index
    %c0_60 = arith.constant 0 : index
    %70 = vector.load %arg5[%c0_59, %c0_60] : memref<1x128xf32, #tpu.memory_space<vmem>>, vector<1x128xf32>
    %71 = vector.broadcast %70 : vector<1x128xf32> to vector<16x128xf32>
    %72 = arith.addf %69, %71 : vector<16x128xf32>
    %cst_61 = arith.constant 0.000000e+00 : f32
    %73 = vector.broadcast %cst_61 : f32 to vector<16x128xf32>
    %74 = arith.maximumf %72, %73 : vector<16x128xf32>
    %c0_62 = arith.constant 0 : index
    %c0_63 = arith.constant 0 : index
    %c0_64 = arith.constant 0 : index
    %75 = vector.load %arg6[%c0_62, %c0_63, %c0_64] : memref<1x16x128xf32, #tpu.memory_space<vmem>>, vector<1x16x128xf32>
    %76 = vector.shape_cast %75 : vector<1x16x128xf32> to vector<16x128xf32>
    %77 = vector.shape_cast %74 : vector<16x128xf32> to vector<1x16x128xf32>
    tpu.vector_store %arg6[%c0_62, %c0_63, %c0_64], %77 {strides = array<i32>} : memref<1x16x128xf32, #tpu.memory_space<vmem>>, vector<1x16x128xf32>,
    return
  }
  func.func @transform_0(%arg0: i32) -> (i32, i32, i32, i32) {
    %c0_i32 = arith.constant 0 : i32
    %c0_i32_0 = arith.constant 0 : i32
    %c0_i32_1 = arith.constant 0 : i32
    %c0_i32_2 = arith.constant 0 : i32
    return %arg0, %c0_i32, %c0_i32_0, %c0_i32_1 : i32, i32, i32, i32
  }
  func.func @transform_1(%arg0: i32) -> (i32, i32, i32) {
    %c0_i32 = arith.constant 0 : i32
    %c0_i32_0 = arith.constant 0 : i32
    %c0_i32_1 = arith.constant 0 : i32
    %c0_i32_2 = arith.constant 0 : i32
    return %c0_i32, %c0_i32_0, %c0_i32_1 : i32, i32, i32
  }
  func.func @transform_2(%arg0: i32) -> (i32, i32) {
    %c0_i32 = arith.constant 0 : i32
    %c0_i32_0 = arith.constant 0 : i32
    %c0_i32_1 = arith.constant 0 : i32
    return %c0_i32, %c0_i32_0 : i32, i32
  }
  func.func @transform_3(%arg0: i32) -> (i32, i32) {
    %c0_i32 = arith.constant 0 : i32
    %c0_i32_0 = arith.constant 0 : i32
    %c0_i32_1 = arith.constant 0 : i32
    return %c0_i32, %c0_i32_0 : i32, i32
  }
  func.func @transform_4(%arg0: i32) -> (i32, i32) {
    %c0_i32 = arith.constant 0 : i32
    %c0_i32_0 = arith.constant 0 : i32
    %c0_i32_1 = arith.constant 0 : i32
    return %c0_i32, %c0_i32_0 : i32, i32
  }
  func.func @transform_5(%arg0: i32) -> (i32, i32, i32) {
    %c0_i32 = arith.constant 0 : i32
    %c0_i32_0 = arith.constant 0 : i32
    %c0_i32_1 = arith.constant 0 : i32
    return %arg0, %c0_i32, %c0_i32_0 : i32, i32, i32
  }
}

module attributes {stable_mosaic.version = 11 : i64} {
  func.func @kernel(%arg0: i32, %arg1: memref<1x9x4x128xf32, #tpu.memory_space<vmem>>, %arg2: memref<9x1x128xf32, #tpu.memory_space<vmem>>, %arg3: memref<1x128xf32, #tpu.memory_space<vmem>>, %arg4: memref<128x256xbf16, #tpu.memory_space<vmem>>, %arg5: memref<1x256xf32, #tpu.memory_space<vmem>>, %arg6: memref<1x4x256xf32, #tpu.memory_space<vmem>>) attributes {dimension_semantics = [#tpu.dimension_semantics<parallel>], iteration_bounds = array<i64: 2>, scalar_prefetch = 0 : i64, scratch_operands = 0 : i64, tpu.core_type = #tpu.core_type<tc>, window_params = [{transform_indices = @transform_0, window_bounds = array<i64: 1, 9, 4, 128>}, {pipeline_mode = #tpu.pipeline_mode<synchronous>, transform_indices = @transform_1, window_bounds = array<i64: 9, 1, 128>}, {pipeline_mode = #tpu.pipeline_mode<synchronous>, transform_indices = @transform_2, window_bounds = array<i64: 1, 128>}, {pipeline_mode = #tpu.pipeline_mode<synchronous>, transform_indices = @transform_3, window_bounds = array<i64: 128, 256>}, {pipeline_mode = #tpu.pipeline_mode<synchronous>, transform_indices = @transform_4, window_bounds = array<i64: 1, 256>}, {transform_indices = @transform_5, window_bounds = array<i64: 1, 4, 256>}]} {
    %c0 = arith.constant 0 : index
    %c0_0 = arith.constant 0 : index
    %c0_1 = arith.constant 0 : index
    %c0_2 = arith.constant 0 : index
    %0 = vector.load %arg1[%c0, %c0_0, %c0_1, %c0_2] : memref<1x9x4x128xf32, #tpu.memory_space<vmem>>, vector<1x1x4x128xf32>
    %1 = vector.shape_cast %0 : vector<1x1x4x128xf32> to vector<4x128xf32>
    %c0_3 = arith.constant 0 : index
    %c0_4 = arith.constant 0 : index
    %c0_5 = arith.constant 0 : index
    %2 = vector.load %arg2[%c0_3, %c0_4, %c0_5] : memref<9x1x128xf32, #tpu.memory_space<vmem>>, vector<1x1x128xf32>
    %3 = vector.shape_cast %2 : vector<1x1x128xf32> to vector<1x128xf32>
    %4 = vector.broadcast %3 : vector<1x128xf32> to vector<4x128xf32>
    %5 = arith.mulf %1, %4 : vector<4x128xf32>
    %c0_6 = arith.constant 0 : index
    %c1 = arith.constant 1 : index
    %c0_7 = arith.constant 0 : index
    %c0_8 = arith.constant 0 : index
    %6 = vector.load %arg1[%c0_6, %c1, %c0_7, %c0_8] : memref<1x9x4x128xf32, #tpu.memory_space<vmem>>, vector<1x1x4x128xf32>
    %7 = vector.shape_cast %6 : vector<1x1x4x128xf32> to vector<4x128xf32>
    %c1_9 = arith.constant 1 : index
    %c0_10 = arith.constant 0 : index
    %c0_11 = arith.constant 0 : index
    %8 = vector.load %arg2[%c1_9, %c0_10, %c0_11] : memref<9x1x128xf32, #tpu.memory_space<vmem>>, vector<1x1x128xf32>
    %9 = vector.shape_cast %8 : vector<1x1x128xf32> to vector<1x128xf32>
    %10 = vector.broadcast %9 : vector<1x128xf32> to vector<4x128xf32>
    %11 = arith.mulf %7, %10 : vector<4x128xf32>
    %12 = arith.addf %5, %11 : vector<4x128xf32>
    %c0_12 = arith.constant 0 : index
    %c2 = arith.constant 2 : index
    %c0_13 = arith.constant 0 : index
    %c0_14 = arith.constant 0 : index
    %13 = vector.load %arg1[%c0_12, %c2, %c0_13, %c0_14] : memref<1x9x4x128xf32, #tpu.memory_space<vmem>>, vector<1x1x4x128xf32>
    %14 = vector.shape_cast %13 : vector<1x1x4x128xf32> to vector<4x128xf32>
    %c2_15 = arith.constant 2 : index
    %c0_16 = arith.constant 0 : index
    %c0_17 = arith.constant 0 : index
    %15 = vector.load %arg2[%c2_15, %c0_16, %c0_17] : memref<9x1x128xf32, #tpu.memory_space<vmem>>, vector<1x1x128xf32>
    %16 = vector.shape_cast %15 : vector<1x1x128xf32> to vector<1x128xf32>
    %17 = vector.broadcast %16 : vector<1x128xf32> to vector<4x128xf32>
    %18 = arith.mulf %14, %17 : vector<4x128xf32>
    %19 = arith.addf %12, %18 : vector<4x128xf32>
    %c0_18 = arith.constant 0 : index
    %c3 = arith.constant 3 : index
    %c0_19 = arith.constant 0 : index
    %c0_20 = arith.constant 0 : index
    %20 = vector.load %arg1[%c0_18, %c3, %c0_19, %c0_20] : memref<1x9x4x128xf32, #tpu.memory_space<vmem>>, vector<1x1x4x128xf32>
    %21 = vector.shape_cast %20 : vector<1x1x4x128xf32> to vector<4x128xf32>
    %c3_21 = arith.constant 3 : index
    %c0_22 = arith.constant 0 : index
    %c0_23 = arith.constant 0 : index
    %22 = vector.load %arg2[%c3_21, %c0_22, %c0_23] : memref<9x1x128xf32, #tpu.memory_space<vmem>>, vector<1x1x128xf32>
    %23 = vector.shape_cast %22 : vector<1x1x128xf32> to vector<1x128xf32>
    %24 = vector.broadcast %23 : vector<1x128xf32> to vector<4x128xf32>
    %25 = arith.mulf %21, %24 : vector<4x128xf32>
    %26 = arith.addf %19, %25 : vector<4x128xf32>
    %c0_24 = arith.constant 0 : index
    %c4 = arith.constant 4 : index
    %c0_25 = arith.constant 0 : index
    %c0_26 = arith.constant 0 : index
    %27 = vector.load %arg1[%c0_24, %c4, %c0_25, %c0_26] : memref<1x9x4x128xf32, #tpu.memory_space<vmem>>, vector<1x1x4x128xf32>
    %28 = vector.shape_cast %27 : vector<1x1x4x128xf32> to vector<4x128xf32>
    %c4_27 = arith.constant 4 : index
    %c0_28 = arith.constant 0 : index
    %c0_29 = arith.constant 0 : index
    %29 = vector.load %arg2[%c4_27, %c0_28, %c0_29] : memref<9x1x128xf32, #tpu.memory_space<vmem>>, vector<1x1x128xf32>
    %30 = vector.shape_cast %29 : vector<1x1x128xf32> to vector<1x128xf32>
    %31 = vector.broadcast %30 : vector<1x128xf32> to vector<4x128xf32>
    %32 = arith.mulf %28, %31 : vector<4x128xf32>
    %33 = arith.addf %26, %32 : vector<4x128xf32>
    %c0_30 = arith.constant 0 : index
    %c5 = arith.constant 5 : index
    %c0_31 = arith.constant 0 : index
    %c0_32 = arith.constant 0 : index
    %34 = vector.load %arg1[%c0_30, %c5, %c0_31, %c0_32] : memref<1x9x4x128xf32, #tpu.memory_space<vmem>>, vector<1x1x4x128xf32>
    %35 = vector.shape_cast %34 : vector<1x1x4x128xf32> to vector<4x128xf32>
    %c5_33 = arith.constant 5 : index
    %c0_34 = arith.constant 0 : index
    %c0_35 = arith.constant 0 : index
    %36 = vector.load %arg2[%c5_33, %c0_34, %c0_35] : memref<9x1x128xf32, #tpu.memory_space<vmem>>, vector<1x1x128xf32>
    %37 = vector.shape_cast %36 : vector<1x1x128xf32> to vector<1x128xf32>
    %38 = vector.broadcast %37 : vector<1x128xf32> to vector<4x128xf32>
    %39 = arith.mulf %35, %38 : vector<4x128xf32>
    %40 = arith.addf %33, %39 : vector<4x128xf32>
    %c0_36 = arith.constant 0 : index
    %c6 = arith.constant 6 : index
    %c0_37 = arith.constant 0 : index
    %c0_38 = arith.constant 0 : index
    %41 = vector.load %arg1[%c0_36, %c6, %c0_37, %c0_38] : memref<1x9x4x128xf32, #tpu.memory_space<vmem>>, vector<1x1x4x128xf32>
    %42 = vector.shape_cast %41 : vector<1x1x4x128xf32> to vector<4x128xf32>
    %c6_39 = arith.constant 6 : index
    %c0_40 = arith.constant 0 : index
    %c0_41 = arith.constant 0 : index
    %43 = vector.load %arg2[%c6_39, %c0_40, %c0_41] : memref<9x1x128xf32, #tpu.memory_space<vmem>>, vector<1x1x128xf32>
    %44 = vector.shape_cast %43 : vector<1x1x128xf32> to vector<1x128xf32>
    %45 = vector.broadcast %44 : vector<1x128xf32> to vector<4x128xf32>
    %46 = arith.mulf %42, %45 : vector<4x128xf32>
    %47 = arith.addf %40, %46 : vector<4x128xf32>
    %c0_42 = arith.constant 0 : index
    %c7 = arith.constant 7 : index
    %c0_43 = arith.constant 0 : index
    %c0_44 = arith.constant 0 : index
    %48 = vector.load %arg1[%c0_42, %c7, %c0_43, %c0_44] : memref<1x9x4x128xf32, #tpu.memory_space<vmem>>, vector<1x1x4x128xf32>
    %49 = vector.shape_cast %48 : vector<1x1x4x128xf32> to vector<4x128xf32>
    %c7_45 = arith.constant 7 : index
    %c0_46 = arith.constant 0 : index
    %c0_47 = arith.constant 0 : index
    %50 = vector.load %arg2[%c7_45, %c0_46, %c0_47] : memref<9x1x128xf32, #tpu.memory_space<vmem>>, vector<1x1x128xf32>
    %51 = vector.shape_cast %50 : vector<1x1x128xf32> to vector<1x128xf32>
    %52 = vector.broadcast %51 : vector<1x128xf32> to vector<4x128xf32>
    %53 = arith.mulf %49, %52 : vector<4x128xf32>
    %54 = arith.addf %47, %53 : vector<4x128xf32>
    %c0_48 = arith.constant 0 : index
    %c8 = arith.constant 8 : index
    %c0_49 = arith.constant 0 : index
    %c0_50 = arith.constant 0 : index
    %55 = vector.load %arg1[%c0_48, %c8, %c0_49, %c0_50] : memref<1x9x4x128xf32, #tpu.memory_space<vmem>>, vector<1x1x4x128xf32>
    %56 = vector.shape_cast %55 : vector<1x1x4x128xf32> to vector<4x128xf32>
    %c8_51 = arith.constant 8 : index
    %c0_52 = arith.constant 0 : index
    %c0_53 = arith.constant 0 : index
    %57 = vector.load %arg2[%c8_51, %c0_52, %c0_53] : memref<9x1x128xf32, #tpu.memory_space<vmem>>, vector<1x1x128xf32>
    %58 = vector.shape_cast %57 : vector<1x1x128xf32> to vector<1x128xf32>
    %59 = vector.broadcast %58 : vector<1x128xf32> to vector<4x128xf32>
    %60 = arith.mulf %56, %59 : vector<4x128xf32>
    %61 = arith.addf %54, %60 : vector<4x128xf32>
    %c0_54 = arith.constant 0 : index
    %c0_55 = arith.constant 0 : index
    %62 = vector.load %arg3[%c0_54, %c0_55] : memref<1x128xf32, #tpu.memory_space<vmem>>, vector<1x128xf32>
    %63 = vector.broadcast %62 : vector<1x128xf32> to vector<4x128xf32>
    %64 = arith.addf %61, %63 : vector<4x128xf32>
    %cst = arith.constant 0.000000e+00 : f32
    %65 = vector.broadcast %cst : f32 to vector<4x128xf32>
    %66 = arith.maximumf %64, %65 : vector<4x128xf32>
    %67 = arith.truncf %66 : vector<4x128xf32> to vector<4x128xbf16>
    %c0_56 = arith.constant 0 : index
    %c0_57 = arith.constant 0 : index
    %68 = vector.load %arg4[%c0_56, %c0_57] : memref<128x256xbf16, #tpu.memory_space<vmem>>, vector<128x256xbf16>
    %cst_58 = arith.constant dense<0.000000e+00> : vector<4x256xf32>
    %69 = tpu.matmul %67, %68, %cst_58 {dimension_numbers = #tpu.dot_dimension_numbers<[1], [0], [0], [1], [0, 0, 1, 1], [], []>} : vector<4x128xbf16>, vector<128x256xbf16>, vector<4x256xf32> -> vector<4x256xf32>
    %c0_59 = arith.constant 0 : index
    %c0_60 = arith.constant 0 : index
    %70 = vector.load %arg5[%c0_59, %c0_60] : memref<1x256xf32, #tpu.memory_space<vmem>>, vector<1x256xf32>
    %71 = vector.broadcast %70 : vector<1x256xf32> to vector<4x256xf32>
    %72 = arith.addf %69, %71 : vector<4x256xf32>
    %cst_61 = arith.constant 0.000000e+00 : f32
    %73 = vector.broadcast %cst_61 : f32 to vector<4x256xf32>
    %74 = arith.maximumf %72, %73 : vector<4x256xf32>
    %c0_62 = arith.constant 0 : index
    %c0_63 = arith.constant 0 : index
    %c0_64 = arith.constant 0 : index
    %75 = vector.load %arg6[%c0_62, %c0_63, %c0_64] : memref<1x4x256xf32, #tpu.memory_space<vmem>>, vector<1x4x256xf32>
    %76 = vector.shape_cast %75 : vector<1x4x256xf32> to vector<4x256xf32>
    %77 = vector.shape_cast %74 : vector<4x256xf32> to vector<1x4x256xf32>
    tpu.vector_store %arg6[%c0_62, %c0_63, %c0_64], %77 {strides = array<i32>} : memref<1x4x256xf32, #tpu.memory_space<vmem>>, vector<1x4x256xf32>,
    return
  }
  func.func @transform_0(%arg0: i32) -> (i32, i32, i32, i32) {
    %c0_i32 = arith.constant 0 : i32
    %c0_i32_0 = arith.constant 0 : i32
    %c0_i32_1 = arith.constant 0 : i32
    %c0_i32_2 = arith.constant 0 : i32
    return %arg0, %c0_i32, %c0_i32_0, %c0_i32_1 : i32, i32, i32, i32
  }
  func.func @transform_1(%arg0: i32) -> (i32, i32, i32) {
    %c0_i32 = arith.constant 0 : i32
    %c0_i32_0 = arith.constant 0 : i32
    %c0_i32_1 = arith.constant 0 : i32
    %c0_i32_2 = arith.constant 0 : i32
    return %c0_i32, %c0_i32_0, %c0_i32_1 : i32, i32, i32
  }
  func.func @transform_2(%arg0: i32) -> (i32, i32) {
    %c0_i32 = arith.constant 0 : i32
    %c0_i32_0 = arith.constant 0 : i32
    %c0_i32_1 = arith.constant 0 : i32
    return %c0_i32, %c0_i32_0 : i32, i32
  }
  func.func @transform_3(%arg0: i32) -> (i32, i32) {
    %c0_i32 = arith.constant 0 : i32
    %c0_i32_0 = arith.constant 0 : i32
    %c0_i32_1 = arith.constant 0 : i32
    return %c0_i32, %c0_i32_0 : i32, i32
  }
  func.func @transform_4(%arg0: i32) -> (i32, i32) {
    %c0_i32 = arith.constant 0 : i32
    %c0_i32_0 = arith.constant 0 : i32
    %c0_i32_1 = arith.constant 0 : i32
    return %c0_i32, %c0_i32_0 : i32, i32
  }
  func.func @transform_5(%arg0: i32) -> (i32, i32, i32) {
    %c0_i32 = arith.constant 0 : i32
    %c0_i32_0 = arith.constant 0 : i32
    %c0_i32_1 = arith.constant 0 : i32
    return %arg0, %c0_i32, %c0_i32_0 : i32, i32, i32
  }
}

module attributes {stable_mosaic.version = 11 : i64} {
  func.func @kernel(%arg0: i32, %arg1: memref<1x9x1x256xf32, #tpu.memory_space<vmem>>, %arg2: memref<9x1x256xf32, #tpu.memory_space<vmem>>, %arg3: memref<1x256xf32, #tpu.memory_space<vmem>>, %arg4: memref<256x512xbf16, #tpu.memory_space<vmem>>, %arg5: memref<1x512xf32, #tpu.memory_space<vmem>>, %arg6: memref<1x1x512xf32, #tpu.memory_space<vmem>>) attributes {dimension_semantics = [#tpu.dimension_semantics<parallel>], iteration_bounds = array<i64: 2>, scalar_prefetch = 0 : i64, scratch_operands = 0 : i64, tpu.core_type = #tpu.core_type<tc>, window_params = [{transform_indices = @transform_0, window_bounds = array<i64: 1, 9, 1, 256>}, {pipeline_mode = #tpu.pipeline_mode<synchronous>, transform_indices = @transform_1, window_bounds = array<i64: 9, 1, 256>}, {pipeline_mode = #tpu.pipeline_mode<synchronous>, transform_indices = @transform_2, window_bounds = array<i64: 1, 256>}, {pipeline_mode = #tpu.pipeline_mode<synchronous>, transform_indices = @transform_3, window_bounds = array<i64: 256, 512>}, {pipeline_mode = #tpu.pipeline_mode<synchronous>, transform_indices = @transform_4, window_bounds = array<i64: 1, 512>}, {transform_indices = @transform_5, window_bounds = array<i64: 1, 1, 512>}]} {
    %c0 = arith.constant 0 : index
    %c0_0 = arith.constant 0 : index
    %c0_1 = arith.constant 0 : index
    %c0_2 = arith.constant 0 : index
    %0 = vector.load %arg1[%c0, %c0_0, %c0_1, %c0_2] : memref<1x9x1x256xf32, #tpu.memory_space<vmem>>, vector<1x1x1x256xf32>
    %1 = vector.shape_cast %0 : vector<1x1x1x256xf32> to vector<1x256xf32>
    %c0_3 = arith.constant 0 : index
    %c0_4 = arith.constant 0 : index
    %c0_5 = arith.constant 0 : index
    %2 = vector.load %arg2[%c0_3, %c0_4, %c0_5] : memref<9x1x256xf32, #tpu.memory_space<vmem>>, vector<1x1x256xf32>
    %3 = vector.shape_cast %2 : vector<1x1x256xf32> to vector<1x256xf32>
    %4 = arith.mulf %1, %3 : vector<1x256xf32>
    %c0_6 = arith.constant 0 : index
    %c1 = arith.constant 1 : index
    %c0_7 = arith.constant 0 : index
    %c0_8 = arith.constant 0 : index
    %5 = vector.load %arg1[%c0_6, %c1, %c0_7, %c0_8] : memref<1x9x1x256xf32, #tpu.memory_space<vmem>>, vector<1x1x1x256xf32>
    %6 = vector.shape_cast %5 : vector<1x1x1x256xf32> to vector<1x256xf32>
    %c1_9 = arith.constant 1 : index
    %c0_10 = arith.constant 0 : index
    %c0_11 = arith.constant 0 : index
    %7 = vector.load %arg2[%c1_9, %c0_10, %c0_11] : memref<9x1x256xf32, #tpu.memory_space<vmem>>, vector<1x1x256xf32>
    %8 = vector.shape_cast %7 : vector<1x1x256xf32> to vector<1x256xf32>
    %9 = arith.mulf %6, %8 : vector<1x256xf32>
    %10 = arith.addf %4, %9 : vector<1x256xf32>
    %c0_12 = arith.constant 0 : index
    %c2 = arith.constant 2 : index
    %c0_13 = arith.constant 0 : index
    %c0_14 = arith.constant 0 : index
    %11 = vector.load %arg1[%c0_12, %c2, %c0_13, %c0_14] : memref<1x9x1x256xf32, #tpu.memory_space<vmem>>, vector<1x1x1x256xf32>
    %12 = vector.shape_cast %11 : vector<1x1x1x256xf32> to vector<1x256xf32>
    %c2_15 = arith.constant 2 : index
    %c0_16 = arith.constant 0 : index
    %c0_17 = arith.constant 0 : index
    %13 = vector.load %arg2[%c2_15, %c0_16, %c0_17] : memref<9x1x256xf32, #tpu.memory_space<vmem>>, vector<1x1x256xf32>
    %14 = vector.shape_cast %13 : vector<1x1x256xf32> to vector<1x256xf32>
    %15 = arith.mulf %12, %14 : vector<1x256xf32>
    %16 = arith.addf %10, %15 : vector<1x256xf32>
    %c0_18 = arith.constant 0 : index
    %c3 = arith.constant 3 : index
    %c0_19 = arith.constant 0 : index
    %c0_20 = arith.constant 0 : index
    %17 = vector.load %arg1[%c0_18, %c3, %c0_19, %c0_20] : memref<1x9x1x256xf32, #tpu.memory_space<vmem>>, vector<1x1x1x256xf32>
    %18 = vector.shape_cast %17 : vector<1x1x1x256xf32> to vector<1x256xf32>
    %c3_21 = arith.constant 3 : index
    %c0_22 = arith.constant 0 : index
    %c0_23 = arith.constant 0 : index
    %19 = vector.load %arg2[%c3_21, %c0_22, %c0_23] : memref<9x1x256xf32, #tpu.memory_space<vmem>>, vector<1x1x256xf32>
    %20 = vector.shape_cast %19 : vector<1x1x256xf32> to vector<1x256xf32>
    %21 = arith.mulf %18, %20 : vector<1x256xf32>
    %22 = arith.addf %16, %21 : vector<1x256xf32>
    %c0_24 = arith.constant 0 : index
    %c4 = arith.constant 4 : index
    %c0_25 = arith.constant 0 : index
    %c0_26 = arith.constant 0 : index
    %23 = vector.load %arg1[%c0_24, %c4, %c0_25, %c0_26] : memref<1x9x1x256xf32, #tpu.memory_space<vmem>>, vector<1x1x1x256xf32>
    %24 = vector.shape_cast %23 : vector<1x1x1x256xf32> to vector<1x256xf32>
    %c4_27 = arith.constant 4 : index
    %c0_28 = arith.constant 0 : index
    %c0_29 = arith.constant 0 : index
    %25 = vector.load %arg2[%c4_27, %c0_28, %c0_29] : memref<9x1x256xf32, #tpu.memory_space<vmem>>, vector<1x1x256xf32>
    %26 = vector.shape_cast %25 : vector<1x1x256xf32> to vector<1x256xf32>
    %27 = arith.mulf %24, %26 : vector<1x256xf32>
    %28 = arith.addf %22, %27 : vector<1x256xf32>
    %c0_30 = arith.constant 0 : index
    %c5 = arith.constant 5 : index
    %c0_31 = arith.constant 0 : index
    %c0_32 = arith.constant 0 : index
    %29 = vector.load %arg1[%c0_30, %c5, %c0_31, %c0_32] : memref<1x9x1x256xf32, #tpu.memory_space<vmem>>, vector<1x1x1x256xf32>
    %30 = vector.shape_cast %29 : vector<1x1x1x256xf32> to vector<1x256xf32>
    %c5_33 = arith.constant 5 : index
    %c0_34 = arith.constant 0 : index
    %c0_35 = arith.constant 0 : index
    %31 = vector.load %arg2[%c5_33, %c0_34, %c0_35] : memref<9x1x256xf32, #tpu.memory_space<vmem>>, vector<1x1x256xf32>
    %32 = vector.shape_cast %31 : vector<1x1x256xf32> to vector<1x256xf32>
    %33 = arith.mulf %30, %32 : vector<1x256xf32>
    %34 = arith.addf %28, %33 : vector<1x256xf32>
    %c0_36 = arith.constant 0 : index
    %c6 = arith.constant 6 : index
    %c0_37 = arith.constant 0 : index
    %c0_38 = arith.constant 0 : index
    %35 = vector.load %arg1[%c0_36, %c6, %c0_37, %c0_38] : memref<1x9x1x256xf32, #tpu.memory_space<vmem>>, vector<1x1x1x256xf32>
    %36 = vector.shape_cast %35 : vector<1x1x1x256xf32> to vector<1x256xf32>
    %c6_39 = arith.constant 6 : index
    %c0_40 = arith.constant 0 : index
    %c0_41 = arith.constant 0 : index
    %37 = vector.load %arg2[%c6_39, %c0_40, %c0_41] : memref<9x1x256xf32, #tpu.memory_space<vmem>>, vector<1x1x256xf32>
    %38 = vector.shape_cast %37 : vector<1x1x256xf32> to vector<1x256xf32>
    %39 = arith.mulf %36, %38 : vector<1x256xf32>
    %40 = arith.addf %34, %39 : vector<1x256xf32>
    %c0_42 = arith.constant 0 : index
    %c7 = arith.constant 7 : index
    %c0_43 = arith.constant 0 : index
    %c0_44 = arith.constant 0 : index
    %41 = vector.load %arg1[%c0_42, %c7, %c0_43, %c0_44] : memref<1x9x1x256xf32, #tpu.memory_space<vmem>>, vector<1x1x1x256xf32>
    %42 = vector.shape_cast %41 : vector<1x1x1x256xf32> to vector<1x256xf32>
    %c7_45 = arith.constant 7 : index
    %c0_46 = arith.constant 0 : index
    %c0_47 = arith.constant 0 : index
    %43 = vector.load %arg2[%c7_45, %c0_46, %c0_47] : memref<9x1x256xf32, #tpu.memory_space<vmem>>, vector<1x1x256xf32>
    %44 = vector.shape_cast %43 : vector<1x1x256xf32> to vector<1x256xf32>
    %45 = arith.mulf %42, %44 : vector<1x256xf32>
    %46 = arith.addf %40, %45 : vector<1x256xf32>
    %c0_48 = arith.constant 0 : index
    %c8 = arith.constant 8 : index
    %c0_49 = arith.constant 0 : index
    %c0_50 = arith.constant 0 : index
    %47 = vector.load %arg1[%c0_48, %c8, %c0_49, %c0_50] : memref<1x9x1x256xf32, #tpu.memory_space<vmem>>, vector<1x1x1x256xf32>
    %48 = vector.shape_cast %47 : vector<1x1x1x256xf32> to vector<1x256xf32>
    %c8_51 = arith.constant 8 : index
    %c0_52 = arith.constant 0 : index
    %c0_53 = arith.constant 0 : index
    %49 = vector.load %arg2[%c8_51, %c0_52, %c0_53] : memref<9x1x256xf32, #tpu.memory_space<vmem>>, vector<1x1x256xf32>
    %50 = vector.shape_cast %49 : vector<1x1x256xf32> to vector<1x256xf32>
    %51 = arith.mulf %48, %50 : vector<1x256xf32>
    %52 = arith.addf %46, %51 : vector<1x256xf32>
    %c0_54 = arith.constant 0 : index
    %c0_55 = arith.constant 0 : index
    %53 = vector.load %arg3[%c0_54, %c0_55] : memref<1x256xf32, #tpu.memory_space<vmem>>, vector<1x256xf32>
    %54 = arith.addf %52, %53 : vector<1x256xf32>
    %cst = arith.constant 0.000000e+00 : f32
    %55 = vector.broadcast %cst : f32 to vector<1x256xf32>
    %56 = arith.maximumf %54, %55 : vector<1x256xf32>
    %57 = arith.truncf %56 : vector<1x256xf32> to vector<1x256xbf16>
    %c0_56 = arith.constant 0 : index
    %c0_57 = arith.constant 0 : index
    %58 = vector.load %arg4[%c0_56, %c0_57] : memref<256x512xbf16, #tpu.memory_space<vmem>>, vector<256x512xbf16>
    %cst_58 = arith.constant dense<0.000000e+00> : vector<1x512xf32>
    %59 = tpu.matmul %57, %58, %cst_58 {dimension_numbers = #tpu.dot_dimension_numbers<[1], [0], [0], [1], [0, 0, 1, 1], [], []>} : vector<1x256xbf16>, vector<256x512xbf16>, vector<1x512xf32> -> vector<1x512xf32>
    %c0_59 = arith.constant 0 : index
    %c0_60 = arith.constant 0 : index
    %60 = vector.load %arg5[%c0_59, %c0_60] : memref<1x512xf32, #tpu.memory_space<vmem>>, vector<1x512xf32>
    %61 = arith.addf %59, %60 : vector<1x512xf32>
    %cst_61 = arith.constant 0.000000e+00 : f32
    %62 = vector.broadcast %cst_61 : f32 to vector<1x512xf32>
    %63 = arith.maximumf %61, %62 : vector<1x512xf32>
    %c0_62 = arith.constant 0 : index
    %c0_63 = arith.constant 0 : index
    %c0_64 = arith.constant 0 : index
    %64 = vector.load %arg6[%c0_62, %c0_63, %c0_64] : memref<1x1x512xf32, #tpu.memory_space<vmem>>, vector<1x1x512xf32>
    %65 = vector.shape_cast %64 : vector<1x1x512xf32> to vector<1x512xf32>
    %66 = vector.shape_cast %63 : vector<1x512xf32> to vector<1x1x512xf32>
    tpu.vector_store %arg6[%c0_62, %c0_63, %c0_64], %66 {strides = array<i32>} : memref<1x1x512xf32, #tpu.memory_space<vmem>>, vector<1x1x512xf32>,
    return
  }
  func.func @transform_0(%arg0: i32) -> (i32, i32, i32, i32) {
    %c0_i32 = arith.constant 0 : i32
    %c0_i32_0 = arith.constant 0 : i32
    %c0_i32_1 = arith.constant 0 : i32
    %c0_i32_2 = arith.constant 0 : i32
    return %arg0, %c0_i32, %c0_i32_0, %c0_i32_1 : i32, i32, i32, i32
  }
  func.func @transform_1(%arg0: i32) -> (i32, i32, i32) {
    %c0_i32 = arith.constant 0 : i32
    %c0_i32_0 = arith.constant 0 : i32
    %c0_i32_1 = arith.constant 0 : i32
    %c0_i32_2 = arith.constant 0 : i32
    return %c0_i32, %c0_i32_0, %c0_i32_1 : i32, i32, i32
  }
  func.func @transform_2(%arg0: i32) -> (i32, i32) {
    %c0_i32 = arith.constant 0 : i32
    %c0_i32_0 = arith.constant 0 : i32
    %c0_i32_1 = arith.constant 0 : i32
    return %c0_i32, %c0_i32_0 : i32, i32
  }
  func.func @transform_3(%arg0: i32) -> (i32, i32) {
    %c0_i32 = arith.constant 0 : i32
    %c0_i32_0 = arith.constant 0 : i32
    %c0_i32_1 = arith.constant 0 : i32
    return %c0_i32, %c0_i32_0 : i32, i32
  }
  func.func @transform_4(%arg0: i32) -> (i32, i32) {
    %c0_i32 = arith.constant 0 : i32
    %c0_i32_0 = arith.constant 0 : i32
    %c0_i32_1 = arith.constant 0 : i32
    return %c0_i32, %c0_i32_0 : i32, i32
  }
  func.func @transform_5(%arg0: i32) -> (i32, i32, i32) {
    %c0_i32 = arith.constant 0 : i32
    %c0_i32_0 = arith.constant 0 : i32
    %c0_i32_1 = arith.constant 0 : i32
    return %arg0, %c0_i32, %c0_i32_0 : i32, i32, i32
  }
}

</mosaic_0001>

<llo_original>
// kernel: mobilenet_forward.5
$region0: #{mobilenet_forward.5}
  #allocation0 [shape = 'u32[]', space=smem, size = 0x4, offset = 0x4, fixed_abs, tag = 'smem constant byte address 0x4 - core index']
  #allocation1 [shape = 'u32[144,128]{1,0:T(1,128)}', space=vmem, size = 0x12000, scoped, tag = 'internal scratch']
  %s0 = inlined_call_operand.vmem [shape: f32[2,9,64,3], index: 0, kind: input, shape index: {}]
  %s1 = inlined_call_operand.vmem [shape: bf16[9,3,32], index: 1, kind: input, shape index: {}]
  %s2 = inlined_call_operand.vmem [shape: f32[1,32], index: 2, kind: input, shape index: {}]
  %s3 = inlined_call_operand.vmem [shape: f32[2,64,32], index: 3, kind: output, shape index: {}]
  %s4 = sld [smem:[#allocation0]]
  $region45: #{mobilenet_forward.5} parent=0
    _
  %s6 = ssub.s32 1, %s4
  %s7 = scalar_select 0, %s6, %s4
  loop: start=0, step=1, limit=4
  $region2: #{mobilenet_forward.5} parent=0 // loop_pre_header
    _
  $region3: #{mobilenet_forward.5} parent=0 // loop_header
    %s9 = sphi 0, %s13
    %p10 = scmp.ge.s32.totalorder %s9, 4
    %s19 = sphi 0, %s21
    %s22 = sphi 0, %s19
    %s23 = sphi 0, %s22
    %s39 = sphi 0, %s23
    %s43 = sphi 0, %s43
    %s45 = sphi 0, %s43
    %s46 = sphi 0, %s45
    %s60 = sphi 0, %s46
    %s64 = sphi 0, %s64
    %s66 = sphi 0, %s64
    %s67 = sphi 0, %s66
    %s81 = sphi 0, %s67
    %s87 = sphi 0, %s89
    %s90 = sphi 0, %s87
    %s91 = sphi 0, %s90
    %s107 = sphi 0, %s91
  $region4: #{mobilenet_forward.5} parent=0 // loop_header_branch
    %12 = sbr.rel (%p10) target = $region8
  $region5: #{mobilenet_forward.5} parent=0 // loop_body
    %s14 = ssub.s32 %s9, 1
    %s15 = ssub.s32 %s9, 2
    %s16 = sadd.s32 %s9, 1
    %s17 = ssub.s32 %s9, %s16
    %p18 = scmp.eq.s32.totalorder %s17, 0
    %s20 = sadd.s32 %s19, 1
    %s21 = scalar_select %p18, %s19, %s20
    %p24 = pneg %p18
    %p25 = scmp.eq.s32.totalorder %s9, 1
    %p26 = por %p24, %p25
    %p27 = scmp.ne.s32.totalorder %s19, %s22
    %p28 = scmp.eq.s32.totalorder %s9, 0
    %p29 = por %p27, %p28
    %p30 = scmp.ne.s32.totalorder %s19, %s22
    %p31 = scmp.eq.s32.totalorder %s14, 1
    %p32 = por %p30, %p31
    %p33 = scmp.ne.s32.totalorder %s22, %s23
    %p34 = scmp.eq.s32.totalorder %s14, 0
    %p35 = por %p33, %p34
    %p36 = scmp.ne.s32.totalorder %s22, %s23
    %p37 = scmp.eq.s32.totalorder %s15, 1
    %p38 = por %p36, %p37
    %p40 = scmp.ne.s32.totalorder %s23, %s39
    %p41 = scmp.eq.s32.totalorder %s15, 0
    %p42 = por %p40, %p41
    %s44 = sadd.s32 %s43, 1
    %p47 = scmp.eq.s32.totalorder %s9, 1
    %p48 = scmp.ne.s32.totalorder %s43, %s45
    %p49 = scmp.eq.s32.totalorder %s9, 0
    %p50 = por %p48, %p49
    %p51 = scmp.ne.s32.totalorder %s43, %s45
    %p52 = scmp.eq.s32.totalorder %s14, 1
    %p53 = por %p51, %p52
    %p54 = scmp.ne.s32.totalorder %s45, %s46
    %p55 = scmp.eq.s32.totalorder %s14, 0
    %p56 = por %p54, %p55
    %p57 = scmp.ne.s32.totalorder %s45, %s46
    %p58 = scmp.eq.s32.totalorder %s15, 1
    %p59 = por %p57, %p58
    %p61 = scmp.ne.s32.totalorder %s46, %s60
    %p62 = scmp.eq.s32.totalorder %s15, 0
    %p63 = por %p61, %p62
    %s65 = sadd.s32 %s64, 1
    %p68 = scmp.eq.s32.totalorder %s9, 1
    %p69 = scmp.ne.s32.totalorder %s64, %s66
    %p70 = scmp.eq.s32.totalorder %s9, 0
    %p71 = por %p69, %p70
    %p72 = scmp.ne.s32.totalorder %s64, %s66
    %p73 = scmp.eq.s32.totalorder %s14, 1
    %p74 = por %p72, %p73
    %p75 = scmp.ne.s32.totalorder %s66, %s67
    %p76 = scmp.eq.s32.totalorder %s14, 0
    %p77 = por %p75, %p76
    %p78 = scmp.ne.s32.totalorder %s66, %s67
    %p79 = scmp.eq.s32.totalorder %s15, 1
    %p80 = por %p78, %p79
    %p82 = scmp.ne.s32.totalorder %s67, %s81
    %p83 = scmp.eq.s32.totalorder %s15, 0
    %p84 = por %p82, %p83
    %s85 = ssub.s32 %s9, %s16
    %p86 = scmp.eq.s32.totalorder %s85, 0
    %s88 = sadd.s32 %s87, 1
    %s89 = scalar_select %p86, %s87, %s88
    %p92 = pneg %p86
    %p93 = scmp.eq.s32.totalorder %s9, 1
    %p94 = por %p92, %p93
    %p95 = scmp.ne.s32.totalorder %s87, %s90
    %p96 = scmp.eq.s32.totalorder %s9, 0
    %p97 = por %p95, %p96
    %p98 = scmp.ne.s32.totalorder %s87, %s90
    %p99 = scmp.eq.s32.totalorder %s14, 1
    %p100 = por %p98, %p99
    %p101 = scmp.ne.s32.totalorder %s90, %s91
    %p102 = scmp.eq.s32.totalorder %s14, 0
    %p103 = por %p101, %p102
    %p104 = scmp.ne.s32.totalorder %s90, %s91
    %p105 = scmp.eq.s32.totalorder %s15, 1
    %p106 = por %p104, %p105
    %p108 = scmp.ne.s32.totalorder %s91, %s107
    %p109 = scmp.eq.s32.totalorder %s15, 0
    %p110 = por %p108, %p109
    %p111 = scmp.le.s32.totalorder 1, %s9
    %p112 = scmp.lt.s32.totalorder %s9, 3
    %p113 = pnand %p111, %p112
    %p114 = pneg %p113
    // Predicated region
    $region9: #{mobilenet_forward.5} parent=5 // pred_check
      _
    $region10: #{mobilenet_forward.5} parent=5 // pred_check_branch
      %116 = sbr.rel (%p113) target = $region12
    $region11: #{mobilenet_forward.5} parent=5 // pred_region
      %s117 = ssub.s32 %s9, 1
      // Predicated region
      $region13: #{mobilenet_forward.5} parent=11 // pred_check
        %p118 = pneg %p56
      $region14: #{mobilenet_forward.5} parent=11 // pred_check_branch
        %120 = sbr.rel (%p118) target = $region16
      $region15: #{mobilenet_forward.5} parent=11 // pred_region
        _
      $region16: #{mobilenet_forward.5} parent=11 // pred_fallthru
        _
      // Predicated region
      $region17: #{mobilenet_forward.5} parent=11 // pred_check
        %p121 = pneg %p77
      $region18: #{mobilenet_forward.5} parent=11 // pred_check_branch
        %123 = sbr.rel (%p121) target = $region20
      $region19: #{mobilenet_forward.5} parent=11 // pred_region
        _
      $region20: #{mobilenet_forward.5} parent=11 // pred_fallthru
        _
    $region12: #{mobilenet_forward.5} parent=5 // pred_fallthru
      _
    %p124 = scmp.lt.s32.totalorder %s9, 2
    // Predicated region
    $region21: #{mobilenet_forward.5} parent=5 // pred_check
      %p125 = pneg %p124
    $region22: #{mobilenet_forward.5} parent=5 // pred_check_branch
      %127 = sbr.rel (%p125) target = $region24
    $region23: #{mobilenet_forward.5} parent=5 // pred_region
      // Predicated region
      $region25: #{mobilenet_forward.5} parent=23 // pred_check
        %p128 = pneg %p29
      $region26: #{mobilenet_forward.5} parent=23 // pred_check_branch
        %130 = sbr.rel (%p128) target = $region28
      $region27: #{mobilenet_forward.5} parent=23 // pred_region
        %p131 = scmp.lt.s32.totalorder %s9, 1
        %s132 = scalar_select %p131, %s9, 1
        %s133 = smul.addr %s132, 72
        %s134 = smul.addr %s133, 8
        %s135 = scalar_lea.vmem %s0, %s134
      $region28: #{mobilenet_forward.5} parent=23 // pred_fallthru
        _
    $region24: #{mobilenet_forward.5} parent=5 // pred_fallthru
      _
    %p136 = scmp.le.s32.totalorder 1, %s9
    %p137 = scmp.lt.s32.totalorder %s9, 3
    %p138 = pnand %p136, %p137
    %p139 = pneg %p138
    // Predicated region
    $region29: #{mobilenet_forward.5} parent=5 // pred_check
      _
    $region30: #{mobilenet_forward.5} parent=5 // pred_check_branch
      %141 = sbr.rel (%p138) target = $region32
    $region31: #{mobilenet_forward.5} parent=5 // pred_region
      %s142 = ssub.s32 %s9, 1
      %p143 = scmp.lt.s32.totalorder %s14, 1
      %s144 = scalar_select %p143, %s14, 1
      %s145 = smul.addr %s144, 72
      %s146 = smul.addr %s145, 8
      %s147 = scalar_lea.vmem %s0, %s146
      %p148 = pneg %p35
      %p149 = pneg %p32
      %p150 = pneg %p56
      %p151 = pneg %p53
      %p152 = pneg %p77
      %p153 = pneg %p74
      %p154 = pneg %p103
      %p155 = pneg %p100
      %p156 = scmp.lt.s32.totalorder %s14, 1
      %s157 = scalar_select %p156, %s14, 1
      %s158 = smul.addr %s157, 8
      %s159 = smul.addr %s158, 8
      %s160 = scalar_lea.vmem %s3, %s159
      %p161 = scmp.lt.s32.totalorder %s14, 1
      %s162 = scalar_select %p161, %s14, 1
      %s163 = smul.addr %s162, 72
      %s164 = smul.addr %s163, 8
      %s165 = scalar_lea.vmem %s0, %s164
      %p166 = scmp.lt.s32.totalorder %s14, 1
      %s167 = scalar_select %p166, %s14, 1
      %s168 = smul.addr %s167, 8
      %s169 = smul.addr %s168, 8
      %s170 = scalar_lea.vmem %s3, %s169
      %v172 = vld [vmem:[%s165] sm:$0xff]
      %v173 = vld [vmem:[%s165 + $0x8] sm:$0xff]
      %v174 = vld [vmem:[%s165 + $0x10] sm:$0xff]
      %v175 = vld [vmem:[%s165 + $0x18] sm:$0xff]
      %v176 = vld [vmem:[%s165 + $0x20] sm:$0xff]
      %v177 = vld [vmem:[%s165 + $0x28] sm:$0xff]
      %v178 = vld [vmem:[%s165 + $0x30] sm:$0xff]
      %v179 = vld [vmem:[%s165 + $0x38] sm:$0xff]
      %v180 = vpack.c.bf16 %v173, %v172
      %v181 = vpack.c.bf16 %v175, %v174
      %v182 = vpack.c.bf16 %v177, %v176
      %v183 = vpack.c.bf16 %v179, %v178
      %v184 = vld [vmem:[%s1] sm:$0x3]
      %s185 = scalar_lea.vmem %s165, 64
      %v186 = vld [vmem:[%s185] sm:$0xff]
      %v187 = vld [vmem:[%s185 + $0x8] sm:$0xff]
      %v188 = vld [vmem:[%s185 + $0x10] sm:$0xff]
      %v189 = vld [vmem:[%s185 + $0x18] sm:$0xff]
      %v190 = vld [vmem:[%s185 + $0x20] sm:$0xff]
      %v191 = vld [vmem:[%s185 + $0x28] sm:$0xff]
      %v192 = vld [vmem:[%s185 + $0x30] sm:$0xff]
      %v193 = vld [vmem:[%s185 + $0x38] sm:$0xff]
      %v194 = vpack.c.bf16 %v187, %v186
      %v195 = vpack.c.bf16 %v189, %v188
      %v196 = vpack.c.bf16 %v191, %v190
      %v197 = vpack.c.bf16 %v193, %v192
      %s198 = scalar_lea.vmem %s1, 2
      %v199 = vld [vmem:[%s198] sm:$0x3]
      %vm200 = vcmask 23552
      %v202 = vsel %vm200, %v194, 0
      %v205 = vsel %vm200, %v195, 0
      %v208 = vsel %vm200, %v196, 0
      %v211 = vsel %vm200, %v197, 0
      %vm213 = vcmask 1040384
      %vm214 = vcmask 1041408
      %v215 = vsel %vm213, 4294967295, 65535
      %v216 = vsel %vm214, %v215, 0
      %v218 = vand.u32 %v199, %v216
      %220 = vmatprep.subr.bf16.mxu0 0
      %221 = vmatpush1.bf16.msra.mxu0 0
      %222 = vmatprep.subr.bf16.mxu0 0
      %223 = vmatpush1.bf16.msra.mxu0 0
      %224 = vmatprep.subr.bf16.mxu0 0
      %225 = vmatpush1.bf16.msra.mxu0 0
      %226 = vmatprep.subr.bf16.mxu0 0
      %227 = vmatpush1.bf16.msra.mxu0 0
      %228 = vmatprep.subr.bf16.mxu0 0
      %229 = vmatpush1.bf16.msra.mxu0 0
      %230 = vmatprep.subr.bf16.mxu0 0
      %231 = vmatpush1.bf16.msra.mxu0 0
      %232 = vmatprep.subr.bf16.mxu0 0
      %233 = vmatpush1.bf16.msra.mxu0 0
      %234 = vmatprep.subr.bf16.mxu0 0
      %235 = vmatpush1.bf16.msra.mxu0 %v218
      %236 = vmatprep.subr.bf16.mxu0 0
      %237 = vmatpush2.bf16.msra.mxu0 0
      %238 = vmatprep.subr.bf16.mxu0 0
      %239 = vmatpush2.bf16.msra.mxu0 0
      %240 = vmatprep.subr.bf16.mxu0 0
      %241 = vmatpush2.bf16.msra.mxu0 0
      %242 = vmatprep.subr.bf16.mxu0 0
      %243 = vmatpush2.bf16.msra.mxu0 0
      %244 = vmatprep.subr.bf16.mxu0 0
      %245 = vmatpush2.bf16.msra.mxu0 0
      %246 = vmatprep.subr.bf16.mxu0 0
      %247 = vmatpush2.bf16.msra.mxu0 0
      %248 = vmatprep.subr.bf16.mxu0 0
      %249 = vmatpush2.bf16.msra.mxu0 0
      %250 = vmatprep.subr.bf16.mxu0 0
      %251 = vmatpush2.bf16.msra.mxu0 0
      %252 = vmatprep.mubr.bf16.mxu0 0
      %253 = vmatmul.mubr.bf16.gmra.mxu0 %v202
      %v254 = vpop.f32.mrf.mxu0
      %v255 = vadd.f32 0.0, %v254
      %v256 = vpop.f32.mrf.mxu0
      %v257 = vpop.f32.mrf.mxu0
      %v258 = vadd.f32 0.0, %v257
      %v259 = vpop.f32.mrf.mxu0
      %260 = vmatprep.mubr.bf16.mxu0 0
      %261 = vmatmul.mubr.bf16.gmra.mxu0 %v205
      %v262 = vpop.f32.mrf.mxu0
      %v263 = vadd.f32 0.0, %v262
      %v264 = vpop.f32.mrf.mxu0
      %v265 = vpop.f32.mrf.mxu0
      %v266 = vadd.f32 0.0, %v265
      %v267 = vpop.f32.mrf.mxu0
      %268 = vmatprep.mubr.bf16.mxu0 0
      %269 = vmatmul.mubr.bf16.gmra.mxu0 %v208
      %v270 = vpop.f32.mrf.mxu0
      %v271 = vadd.f32 0.0, %v270
      %v272 = vpop.f32.mrf.mxu0
      %v273 = vpop.f32.mrf.mxu0
      %v274 = vadd.f32 0.0, %v273
      %v275 = vpop.f32.mrf.mxu0
      %276 = vmatprep.mubr.bf16.mxu0 0
      %277 = vmatmul.mubr.bf16.gmra.mxu0 %v211
      %v278 = vpop.f32.mrf.mxu0
      %v279 = vadd.f32 0.0, %v278
      %v280 = vpop.f32.mrf.mxu0
      %v281 = vpop.f32.mrf.mxu0
      %v282 = vadd.f32 0.0, %v281
      %v283 = vpop.f32.mrf.mxu0
      %284 = vdwg.mxu0
      %v286 = vsel %vm200, %v180, 0
      %v289 = vsel %vm200, %v181, 0
      %v292 = vsel %vm200, %v182, 0
      %v295 = vsel %vm200, %v183, 0
      %v298 = vand.u32 %v184, %v216
      %300 = vmatprep.subr.bf16.mxu0 0
      %301 = vmatpush1.bf16.msra.mxu0 0
      %302 = vmatprep.subr.bf16.mxu0 0
      %303 = vmatpush1.bf16.msra.mxu0 0
      %304 = vmatprep.subr.bf16.mxu0 0
      %305 = vmatpush1.bf16.msra.mxu0 0
      %306 = vmatprep.subr.bf16.mxu0 0
      %307 = vmatpush1.bf16.msra.mxu0 0
      %308 = vmatprep.subr.bf16.mxu0 0
      %309 = vmatpush1.bf16.msra.mxu0 0
      %310 = vmatprep.subr.bf16.mxu0 0
      %311 = vmatpush1.bf16.msra.mxu0 0
      %312 = vmatprep.subr.bf16.mxu0 0
      %313 = vmatpush1.bf16.msra.mxu0 0
      %314 = vmatprep.subr.bf16.mxu0 0
      %315 = vmatpush1.bf16.msra.mxu0 %v298
      %316 = vmatprep.subr.bf16.mxu0 0
      %317 = vmatpush2.bf16.msra.mxu0 0
      %318 = vmatprep.subr.bf16.mxu0 0
      %319 = vmatpush2.bf16.msra.mxu0 0
      %320 = vmatprep.subr.bf16.mxu0 0
      %321 = vmatpush2.bf16.msra.mxu0 0
      %322 = vmatprep.subr.bf16.mxu0 0
      %323 = vmatpush2.bf16.msra.mxu0 0
      %324 = vmatprep.subr.bf16.mxu0 0
      %325 = vmatpush2.bf16.msra.mxu0 0
      %326 = vmatprep.subr.bf16.mxu0 0
      %327 = vmatpush2.bf16.msra.mxu0 0
      %328 = vmatprep.subr.bf16.mxu0 0
      %329 = vmatpush2.bf16.msra.mxu0 0
      %330 = vmatprep.subr.bf16.mxu0 0
      %331 = vmatpush2.bf16.msra.mxu0 0
      %332 = vmatprep.mubr.bf16.mxu0 0
      %333 = vmatmul.mubr.bf16.gmra.mxu0 %v286
      %v334 = vpop.f32.mrf.mxu0
      %v335 = vadd.f32 %v255, %v334
      %v336 = vpop.f32.mrf.mxu0
      %v337 = vpop.f32.mrf.mxu0
      %v338 = vadd.f32 %v258, %v337
      %v339 = vpop.f32.mrf.mxu0
      %340 = vmatprep.mubr.bf16.mxu0 0
      %341 = vmatmul.mubr.bf16.gmra.mxu0 %v289
      %v342 = vpop.f32.mrf.mxu0
      %v343 = vadd.f32 %v263, %v342
      %v344 = vpop.f32.mrf.mxu0
      %v345 = vpop.f32.mrf.mxu0
      %v346 = vadd.f32 %v266, %v345
      %v347 = vpop.f32.mrf.mxu0
      %348 = vmatprep.mubr.bf16.mxu0 0
      %349 = vmatmul.mubr.bf16.gmra.mxu0 %v292
      %v350 = vpop.f32.mrf.mxu0
      %v351 = vadd.f32 %v271, %v350
      %v352 = vpop.f32.mrf.mxu0
      %v353 = vpop.f32.mrf.mxu0
      %v354 = vadd.f32 %v274, %v353
      %v355 = vpop.f32.mrf.mxu0
      %356 = vmatprep.mubr.bf16.mxu0 0
      %357 = vmatmul.mubr.bf16.gmra.mxu0 %v295
      %v358 = vpop.f32.mrf.mxu0
      %v359 = vadd.f32 %v279, %v358
      %v360 = vpop.f32.mrf.mxu0
      %v361 = vpop.f32.mrf.mxu0
      %v362 = vadd.f32 %v282, %v361
      %v363 = vpop.f32.mrf.mxu0
      %364 = vdwg.mxu0
      %s365 = scalar_lea.vmem %s165, 128
      %v366 = vld [vmem:[%s365] sm:$0xff]
      %v367 = vld [vmem:[%s365 + $0x8] sm:$0xff]
      %v368 = vld [vmem:[%s365 + $0x10] sm:$0xff]
      %v369 = vld [vmem:[%s365 + $0x18] sm:$0xff]
      %v370 = vld [vmem:[%s365 + $0x20] sm:$0xff]
      %v371 = vld [vmem:[%s365 + $0x28] sm:$0xff]
      %v372 = vld [vmem:[%s365 + $0x30] sm:$0xff]
      %v373 = vld [vmem:[%s365 + $0x38] sm:$0xff]
      %v374 = vpack.c.bf16 %v367, %v366
      %v375 = vpack.c.bf16 %v369, %v368
      %v376 = vpack.c.bf16 %v371, %v370
      %v377 = vpack.c.bf16 %v373, %v372
      %s378 = scalar_lea.vmem %s1, 4
      %v379 = vld [vmem:[%s378] sm:$0x3]
      %v381 = vsel %vm200, %v374, 0
      %v384 = vsel %vm200, %v375, 0
      %v387 = vsel %vm200, %v376, 0
      %v390 = vsel %vm200, %v377, 0
      %v393 = vand.u32 %v379, %v216
      %395 = vmatprep.subr.bf16.mxu0 0
      %396 = vmatpush1.bf16.msra.mxu0 0
      %397 = vmatprep.subr.bf16.mxu0 0
      %398 = vmatpush1.bf16.msra.mxu0 0
      %399 = vmatprep.subr.bf16.mxu0 0
      %400 = vmatpush1.bf16.msra.mxu0 0
      %401 = vmatprep.subr.bf16.mxu0 0
      %402 = vmatpush1.bf16.msra.mxu0 0
      %403 = vmatprep.subr.bf16.mxu0 0
      %404 = vmatpush1.bf16.msra.mxu0 0
      %405 = vmatprep.subr.bf16.mxu0 0
      %406 = vmatpush1.bf16.msra.mxu0 0
      %407 = vmatprep.subr.bf16.mxu0 0
      %408 = vmatpush1.bf16.msra.mxu0 0
      %409 = vmatprep.subr.bf16.mxu0 0
      %410 = vmatpush1.bf16.msra.mxu0 %v393
      %411 = vmatprep.subr.bf16.mxu0 0
      %412 = vmatpush2.bf16.msra.mxu0 0
      %413 = vmatprep.subr.bf16.mxu0 0
      %414 = vmatpush2.bf16.msra.mxu0 0
      %415 = vmatprep.subr.bf16.mxu0 0
      %416 = vmatpush2.bf16.msra.mxu0 0
      %417 = vmatprep.subr.bf16.mxu0 0
      %418 = vmatpush2.bf16.msra.mxu0 0
      %419 = vmatprep.subr.bf16.mxu0 0
      %420 = vmatpush2.bf16.msra.mxu0 0
      %421 = vmatprep.subr.bf16.mxu0 0
      %422 = vmatpush2.bf16.msra.mxu0 0
      %423 = vmatprep.subr.bf16.mxu0 0
      %424 = vmatpush2.bf16.msra.mxu0 0
      %425 = vmatprep.subr.bf16.mxu0 0
      %426 = vmatpush2.bf16.msra.mxu0 0
      %427 = vmatprep.mubr.bf16.mxu0 0
      %428 = vmatmul.mubr.bf16.gmra.mxu0 %v381
      %v429 = vpop.f32.mrf.mxu0
      %v430 = vadd.f32 0.0, %v429
      %v431 = vpop.f32.mrf.mxu0
      %v432 = vpop.f32.mrf.mxu0
      %v433 = vadd.f32 0.0, %v432
      %v434 = vpop.f32.mrf.mxu0
      %435 = vmatprep.mubr.bf16.mxu0 0
      %436 = vmatmul.mubr.bf16.gmra.mxu0 %v384
      %v437 = vpop.f32.mrf.mxu0
      %v438 = vadd.f32 0.0, %v437
      %v439 = vpop.f32.mrf.mxu0
      %v440 = vpop.f32.mrf.mxu0
      %v441 = vadd.f32 0.0, %v440
      %v442 = vpop.f32.mrf.mxu0
      %443 = vmatprep.mubr.bf16.mxu0 0
      %444 = vmatmul.mubr.bf16.gmra.mxu0 %v387
      %v445 = vpop.f32.mrf.mxu0
      %v446 = vadd.f32 0.0, %v445
      %v447 = vpop.f32.mrf.mxu0
      %v448 = vpop.f32.mrf.mxu0
      %v449 = vadd.f32 0.0, %v448
      %v450 = vpop.f32.mrf.mxu0
      %451 = vmatprep.mubr.bf16.mxu0 0
      %452 = vmatmul.mubr.bf16.gmra.mxu0 %v390
      %v453 = vpop.f32.mrf.mxu0
      %v454 = vadd.f32 0.0, %v453
      %v455 = vpop.f32.mrf.mxu0
      %v456 = vpop.f32.mrf.mxu0
      %v457 = vadd.f32 0.0, %v456
      %v458 = vpop.f32.mrf.mxu0
      %459 = vdwg.mxu0
      %v460 = vadd.f32 %v335, %v430
      %v461 = vadd.f32 %v338, %v433
      %v462 = vadd.f32 %v343, %v438
      %v463 = vadd.f32 %v346, %v441
      %v464 = vadd.f32 %v351, %v446
      %v465 = vadd.f32 %v354, %v449
      %v466 = vadd.f32 %v359, %v454
      %v467 = vadd.f32 %v362, %v457
      %s468 = scalar_lea.vmem %s165, 192
      %v469 = vld [vmem:[%s468] sm:$0xff]
      %v470 = vld [vmem:[%s468 + $0x8] sm:$0xff]
      %v471 = vld [vmem:[%s468 + $0x10] sm:$0xff]
      %v472 = vld [vmem:[%s468 + $0x18] sm:$0xff]
      %v473 = vld [vmem:[%s468 + $0x20] sm:$0xff]
      %v474 = vld [vmem:[%s468 + $0x28] sm:$0xff]
      %v475 = vld [vmem:[%s468 + $0x30] sm:$0xff]
      %v476 = vld [vmem:[%s468 + $0x38] sm:$0xff]
      %v477 = vpack.c.bf16 %v470, %v469
      %v478 = vpack.c.bf16 %v472, %v471
      %v479 = vpack.c.bf16 %v474, %v473
      %v480 = vpack.c.bf16 %v476, %v475
      %s481 = scalar_lea.vmem %s1, 6
      %v482 = vld [vmem:[%s481] sm:$0x3]
      %v484 = vsel %vm200, %v477, 0
      %v487 = vsel %vm200, %v478, 0
      %v490 = vsel %vm200, %v479, 0
      %v493 = vsel %vm200, %v480, 0
      %v496 = vand.u32 %v482, %v216
      %498 = vmatprep.subr.bf16.mxu0 0
      %499 = vmatpush1.bf16.msra.mxu0 0
      %500 = vmatprep.subr.bf16.mxu0 0
      %501 = vmatpush1.bf16.msra.mxu0 0
      %502 = vmatprep.subr.bf16.mxu0 0
      %503 = vmatpush1.bf16.msra.mxu0 0
      %504 = vmatprep.subr.bf16.mxu0 0
      %505 = vmatpush1.bf16.msra.mxu0 0
      %506 = vmatprep.subr.bf16.mxu0 0
      %507 = vmatpush1.bf16.msra.mxu0 0
      %508 = vmatprep.subr.bf16.mxu0 0
      %509 = vmatpush1.bf16.msra.mxu0 0
      %510 = vmatprep.subr.bf16.mxu0 0
      %511 = vmatpush1.bf16.msra.mxu0 0
      %512 = vmatprep.subr.bf16.mxu0 0
      %513 = vmatpush1.bf16.msra.mxu0 %v496
      %514 = vmatprep.subr.bf16.mxu0 0
      %515 = vmatpush2.bf16.msra.mxu0 0
      %516 = vmatprep.subr.bf16.mxu0 0
      %517 = vmatpush2.bf16.msra.mxu0 0
      %518 = vmatprep.subr.bf16.mxu0 0
      %519 = vmatpush2.bf16.msra.mxu0 0
      %520 = vmatprep.subr.bf16.mxu0 0
      %521 = vmatpush2.bf16.msra.mxu0 0
      %522 = vmatprep.subr.bf16.mxu0 0
      %523 = vmatpush2.bf16.msra.mxu0 0
      %524 = vmatprep.subr.bf16.mxu0 0
      %525 = vmatpush2.bf16.msra.mxu0 0
      %526 = vmatprep.subr.bf16.mxu0 0
      %527 = vmatpush2.bf16.msra.mxu0 0
      %528 = vmatprep.subr.bf16.mxu0 0
      %529 = vmatpush2.bf16.msra.mxu0 0
      %530 = vmatprep.mubr.bf16.mxu0 0
      %531 = vmatmul.mubr.bf16.gmra.mxu0 %v484
      %v532 = vpop.f32.mrf.mxu0
      %v533 = vadd.f32 0.0, %v532
      %v534 = vpop.f32.mrf.mxu0
      %v535 = vpop.f32.mrf.mxu0
      %v536 = vadd.f32 0.0, %v535
      %v537 = vpop.f32.mrf.mxu0
      %538 = vmatprep.mubr.bf16.mxu0 0
      %539 = vmatmul.mubr.bf16.gmra.mxu0 %v487
      %v540 = vpop.f32.mrf.mxu0
      %v541 = vadd.f32 0.0, %v540
      %v542 = vpop.f32.mrf.mxu0
      %v543 = vpop.f32.mrf.mxu0
      %v544 = vadd.f32 0.0, %v543
      %v545 = vpop.f32.mrf.mxu0
      %546 = vmatprep.mubr.bf16.mxu0 0
      %547 = vmatmul.mubr.bf16.gmra.mxu0 %v490
      %v548 = vpop.f32.mrf.mxu0
      %v549 = vadd.f32 0.0, %v548
      %v550 = vpop.f32.mrf.mxu0
      %v551 = vpop.f32.mrf.mxu0
      %v552 = vadd.f32 0.0, %v551
      %v553 = vpop.f32.mrf.mxu0
      %554 = vmatprep.mubr.bf16.mxu0 0
      %555 = vmatmul.mubr.bf16.gmra.mxu0 %v493
      %v556 = vpop.f32.mrf.mxu0
      %v557 = vadd.f32 0.0, %v556
      %v558 = vpop.f32.mrf.mxu0
      %v559 = vpop.f32.mrf.mxu0
      %v560 = vadd.f32 0.0, %v559
      %v561 = vpop.f32.mrf.mxu0
      %562 = vdwg.mxu0
      %v563 = vadd.f32 %v460, %v533
      %v564 = vadd.f32 %v461, %v536
      %v565 = vadd.f32 %v462, %v541
      %v566 = vadd.f32 %v463, %v544
      %v567 = vadd.f32 %v464, %v549
      %v568 = vadd.f32 %v465, %v552
      %v569 = vadd.f32 %v466, %v557
      %v570 = vadd.f32 %v467, %v560
      %s571 = scalar_lea.vmem %s165, 256
      %v572 = vld [vmem:[%s571] sm:$0xff]
      %v573 = vld [vmem:[%s571 + $0x8] sm:$0xff]
      %v574 = vld [vmem:[%s571 + $0x10] sm:$0xff]
      %v575 = vld [vmem:[%s571 + $0x18] sm:$0xff]
      %v576 = vld [vmem:[%s571 + $0x20] sm:$0xff]
      %v577 = vld [vmem:[%s571 + $0x28] sm:$0xff]
      %v578 = vld [vmem:[%s571 + $0x30] sm:$0xff]
      %v579 = vld [vmem:[%s571 + $0x38] sm:$0xff]
      %v580 = vpack.c.bf16 %v573, %v572
      %v581 = vpack.c.bf16 %v575, %v574
      %v582 = vpack.c.bf16 %v577, %v576
      %v583 = vpack.c.bf16 %v579, %v578
      %s584 = scalar_lea.vmem %s1, 8
      %v585 = vld [vmem:[%s584] sm:$0x3]
      %v587 = vsel %vm200, %v580, 0
      %v590 = vsel %vm200, %v581, 0
      %v593 = vsel %vm200, %v582, 0
      %v596 = vsel %vm200, %v583, 0
      %v599 = vand.u32 %v585, %v216
      %601 = vmatprep.subr.bf16.mxu0 0
      %602 = vmatpush1.bf16.msra.mxu0 0
      %603 = vmatprep.subr.bf16.mxu0 0
      %604 = vmatpush1.bf16.msra.mxu0 0
      %605 = vmatprep.subr.bf16.mxu0 0
      %606 = vmatpush1.bf16.msra.mxu0 0
      %607 = vmatprep.subr.bf16.mxu0 0
      %608 = vmatpush1.bf16.msra.mxu0 0
      %609 = vmatprep.subr.bf16.mxu0 0
      %610 = vmatpush1.bf16.msra.mxu0 0
      %611 = vmatprep.subr.bf16.mxu0 0
      %612 = vmatpush1.bf16.msra.mxu0 0
      %613 = vmatprep.subr.bf16.mxu0 0
      %614 = vmatpush1.bf16.msra.mxu0 0
      %615 = vmatprep.subr.bf16.mxu0 0
      %616 = vmatpush1.bf16.msra.mxu0 %v599
      %617 = vmatprep.subr.bf16.mxu0 0
      %618 = vmatpush2.bf16.msra.mxu0 0
      %619 = vmatprep.subr.bf16.mxu0 0
      %620 = vmatpush2.bf16.msra.mxu0 0
      %621 = vmatprep.subr.bf16.mxu0 0
      %622 = vmatpush2.bf16.msra.mxu0 0
      %623 = vmatprep.subr.bf16.mxu0 0
      %624 = vmatpush2.bf16.msra.mxu0 0
      %625 = vmatprep.subr.bf16.mxu0 0
      %626 = vmatpush2.bf16.msra.mxu0 0
      %627 = vmatprep.subr.bf16.mxu0 0
      %628 = vmatpush2.bf16.msra.mxu0 0
      %629 = vmatprep.subr.bf16.mxu0 0
      %630 = vmatpush2.bf16.msra.mxu0 0
      %631 = vmatprep.subr.bf16.mxu0 0
      %632 = vmatpush2.bf16.msra.mxu0 0
      %633 = vmatprep.mubr.bf16.mxu0 0
      %634 = vmatmul.mubr.bf16.gmra.mxu0 %v587
      %v635 = vpop.f32.mrf.mxu0
      %v636 = vadd.f32 0.0, %v635
      %v637 = vpop.f32.mrf.mxu0
      %v638 = vpop.f32.mrf.mxu0
      %v639 = vadd.f32 0.0, %v638
      %v640 = vpop.f32.mrf.mxu0
      %641 = vmatprep.mubr.bf16.mxu0 0
      %642 = vmatmul.mubr.bf16.gmra.mxu0 %v590
      %v643 = vpop.f32.mrf.mxu0
      %v644 = vadd.f32 0.0, %v643
      %v645 = vpop.f32.mrf.mxu0
      %v646 = vpop.f32.mrf.mxu0
      %v647 = vadd.f32 0.0, %v646
      %v648 = vpop.f32.mrf.mxu0
      %649 = vmatprep.mubr.bf16.mxu0 0
      %650 = vmatmul.mubr.bf16.gmra.mxu0 %v593
      %v651 = vpop.f32.mrf.mxu0
      %v652 = vadd.f32 0.0, %v651
      %v653 = vpop.f32.mrf.mxu0
      %v654 = vpop.f32.mrf.mxu0
      %v655 = vadd.f32 0.0, %v654
      %v656 = vpop.f32.mrf.mxu0
      %657 = vmatprep.mubr.bf16.mxu0 0
      %658 = vmatmul.mubr.bf16.gmra.mxu0 %v596
      %v659 = vpop.f32.mrf.mxu0
      %v660 = vadd.f32 0.0, %v659
      %v661 = vpop.f32.mrf.mxu0
      %v662 = vpop.f32.mrf.mxu0
      %v663 = vadd.f32 0.0, %v662
      %v664 = vpop.f32.mrf.mxu0
      %665 = vdwg.mxu0
      %v666 = vadd.f32 %v563, %v636
      %v667 = vadd.f32 %v564, %v639
      %v668 = vadd.f32 %v565, %v644
      %v669 = vadd.f32 %v566, %v647
      %v670 = vadd.f32 %v567, %v652
      %v671 = vadd.f32 %v568, %v655
      %v672 = vadd.f32 %v569, %v660
      %v673 = vadd.f32 %v570, %v663
      %s674 = scalar_lea.vmem %s165, 320
      %v675 = vld [vmem:[%s674] sm:$0xff]
      %v676 = vld [vmem:[%s674 + $0x8] sm:$0xff]
      %v677 = vld [vmem:[%s674 + $0x10] sm:$0xff]
      %v678 = vld [vmem:[%s674 + $0x18] sm:$0xff]
      %v679 = vld [vmem:[%s674 + $0x20] sm:$0xff]
      %v680 = vld [vmem:[%s674 + $0x28] sm:$0xff]
      %v681 = vld [vmem:[%s674 + $0x30] sm:$0xff]
      %v682 = vld [vmem:[%s674 + $0x38] sm:$0xff]
      %v683 = vpack.c.bf16 %v676, %v675
      %v684 = vpack.c.bf16 %v678, %v677
      %v685 = vpack.c.bf16 %v680, %v679
      %v686 = vpack.c.bf16 %v682, %v681
      %s687 = scalar_lea.vmem %s1, 10
      %v688 = vld [vmem:[%s687] sm:$0x3]
      %v690 = vsel %vm200, %v683, 0
      %v693 = vsel %vm200, %v684, 0
      %v696 = vsel %vm200, %v685, 0
      %v699 = vsel %vm200, %v686, 0
      %v702 = vand.u32 %v688, %v216
      %704 = vmatprep.subr.bf16.mxu0 0
      %705 = vmatpush1.bf16.msra.mxu0 0
      %706 = vmatprep.subr.bf16.mxu0 0
      %707 = vmatpush1.bf16.msra.mxu0 0
      %708 = vmatprep.subr.bf16.mxu0 0
      %709 = vmatpush1.bf16.msra.mxu0 0
      %710 = vmatprep.subr.bf16.mxu0 0
      %711 = vmatpush1.bf16.msra.mxu0 0
      %712 = vmatprep.subr.bf16.mxu0 0
      %713 = vmatpush1.bf16.msra.mxu0 0
      %714 = vmatprep.subr.bf16.mxu0 0
      %715 = vmatpush1.bf16.msra.mxu0 0
      %716 = vmatprep.subr.bf16.mxu0 0
      %717 = vmatpush1.bf16.msra.mxu0 0
      %718 = vmatprep.subr.bf16.mxu0 0
      %719 = vmatpush1.bf16.msra.mxu0 %v702
      %720 = vmatprep.subr.bf16.mxu0 0
      %721 = vmatpush2.bf16.msra.mxu0 0
      %722 = vmatprep.subr.bf16.mxu0 0
      %723 = vmatpush2.bf16.msra.mxu0 0
      %724 = vmatprep.subr.bf16.mxu0 0
      %725 = vmatpush2.bf16.msra.mxu0 0
      %726 = vmatprep.subr.bf16.mxu0 0
      %727 = vmatpush2.bf16.msra.mxu0 0
      %728 = vmatprep.subr.bf16.mxu0 0
      %729 = vmatpush2.bf16.msra.mxu0 0
      %730 = vmatprep.subr.bf16.mxu0 0
      %731 = vmatpush2.bf16.msra.mxu0 0
      %732 = vmatprep.subr.bf16.mxu0 0
      %733 = vmatpush2.bf16.msra.mxu0 0
      %734 = vmatprep.subr.bf16.mxu0 0
      %735 = vmatpush2.bf16.msra.mxu0 0
      %736 = vmatprep.mubr.bf16.mxu0 0
      %737 = vmatmul.mubr.bf16.gmra.mxu0 %v690
      %v738 = vpop.f32.mrf.mxu0
      %v739 = vadd.f32 0.0, %v738
      %v740 = vpop.f32.mrf.mxu0
      %v741 = vpop.f32.mrf.mxu0
      %v742 = vadd.f32 0.0, %v741
      %v743 = vpop.f32.mrf.mxu0
      %744 = vmatprep.mubr.bf16.mxu0 0
      %745 = vmatmul.mubr.bf16.gmra.mxu0 %v693
      %v746 = vpop.f32.mrf.mxu0
      %v747 = vadd.f32 0.0, %v746
      %v748 = vpop.f32.mrf.mxu0
      %v749 = vpop.f32.mrf.mxu0
      %v750 = vadd.f32 0.0, %v749
      %v751 = vpop.f32.mrf.mxu0
      %752 = vmatprep.mubr.bf16.mxu0 0
      %753 = vmatmul.mubr.bf16.gmra.mxu0 %v696
      %v754 = vpop.f32.mrf.mxu0
      %v755 = vadd.f32 0.0, %v754
      %v756 = vpop.f32.mrf.mxu0
      %v757 = vpop.f32.mrf.mxu0
      %v758 = vadd.f32 0.0, %v757
      %v759 = vpop.f32.mrf.mxu0
      %760 = vmatprep.mubr.bf16.mxu0 0
      %761 = vmatmul.mubr.bf16.gmra.mxu0 %v699
      %v762 = vpop.f32.mrf.mxu0
      %v763 = vadd.f32 0.0, %v762
      %v764 = vpop.f32.mrf.mxu0
      %v765 = vpop.f32.mrf.mxu0
      %v766 = vadd.f32 0.0, %v765
      %v767 = vpop.f32.mrf.mxu0
      %768 = vdwg.mxu0
      %v769 = vadd.f32 %v666, %v739
      %v770 = vadd.f32 %v667, %v742
      %v771 = vadd.f32 %v668, %v747
      %v772 = vadd.f32 %v669, %v750
      %v773 = vadd.f32 %v670, %v755
      %v774 = vadd.f32 %v671, %v758
      %v775 = vadd.f32 %v672, %v763
      %v776 = vadd.f32 %v673, %v766
      %s777 = scalar_lea.vmem %s165, 384
      %v778 = vld [vmem:[%s777] sm:$0xff]
      %v779 = vld [vmem:[%s777 + $0x8] sm:$0xff]
      %v780 = vld [vmem:[%s777 + $0x10] sm:$0xff]
      %v781 = vld [vmem:[%s777 + $0x18] sm:$0xff]
      %v782 = vld [vmem:[%s777 + $0x20] sm:$0xff]
      %v783 = vld [vmem:[%s777 + $0x28] sm:$0xff]
      %v784 = vld [vmem:[%s777 + $0x30] sm:$0xff]
      %v785 = vld [vmem:[%s777 + $0x38] sm:$0xff]
      %v786 = vpack.c.bf16 %v779, %v778
      %v787 = vpack.c.bf16 %v781, %v780
      %v788 = vpack.c.bf16 %v783, %v782
      %v789 = vpack.c.bf16 %v785, %v784
      %s790 = scalar_lea.vmem %s1, 12
      %v791 = vld [vmem:[%s790] sm:$0x3]
      %v793 = vsel %vm200, %v786, 0
      %v796 = vsel %vm200, %v787, 0
      %v799 = vsel %vm200, %v788, 0
      %v802 = vsel %vm200, %v789, 0
      %v805 = vand.u32 %v791, %v216
      %807 = vmatprep.subr.bf16.mxu0 0
      %808 = vmatpush1.bf16.msra.mxu0 0
      %809 = vmatprep.subr.bf16.mxu0 0
      %810 = vmatpush1.bf16.msra.mxu0 0
      %811 = vmatprep.subr.bf16.mxu0 0
      %812 = vmatpush1.bf16.msra.mxu0 0
      %813 = vmatprep.subr.bf16.mxu0 0
      %814 = vmatpush1.bf16.msra.mxu0 0
      %815 = vmatprep.subr.bf16.mxu0 0
      %816 = vmatpush1.bf16.msra.mxu0 0
      %817 = vmatprep.subr.bf16.mxu0 0
      %818 = vmatpush1.bf16.msra.mxu0 0
      %819 = vmatprep.subr.bf16.mxu0 0
      %820 = vmatpush1.bf16.msra.mxu0 0
      %821 = vmatprep.subr.bf16.mxu0 0
      %822 = vmatpush1.bf16.msra.mxu0 %v805
      %823 = vmatprep.subr.bf16.mxu0 0
      %824 = vmatpush2.bf16.msra.mxu0 0
      %825 = vmatprep.subr.bf16.mxu0 0
      %826 = vmatpush2.bf16.msra.mxu0 0
      %827 = vmatprep.subr.bf16.mxu0 0
      %828 = vmatpush2.bf16.msra.mxu0 0
      %829 = vmatprep.subr.bf16.mxu0 0
      %830 = vmatpush2.bf16.msra.mxu0 0
      %831 = vmatprep.subr.bf16.mxu0 0
      %832 = vmatpush2.bf16.msra.mxu0 0
      %833 = vmatprep.subr.bf16.mxu0 0
      %834 = vmatpush2.bf16.msra.mxu0 0
      %835 = vmatprep.subr.bf16.mxu0 0
      %836 = vmatpush2.bf16.msra.mxu0 0
      %837 = vmatprep.subr.bf16.mxu0 0
      %838 = vmatpush2.bf16.msra.mxu0 0
      %839 = vmatprep.mubr.bf16.mxu0 0
      %840 = vmatmul.mubr.bf16.gmra.mxu0 %v793
      %v841 = vpop.f32.mrf.mxu0
      %v842 = vadd.f32 0.0, %v841
      %v843 = vpop.f32.mrf.mxu0
      %v844 = vpop.f32.mrf.mxu0
      %v845 = vadd.f32 0.0, %v844
      %v846 = vpop.f32.mrf.mxu0
      %847 = vmatprep.mubr.bf16.mxu0 0
      %848 = vmatmul.mubr.bf16.gmra.mxu0 %v796
      %v849 = vpop.f32.mrf.mxu0
      %v850 = vadd.f32 0.0, %v849
      %v851 = vpop.f32.mrf.mxu0
      %v852 = vpop.f32.mrf.mxu0
      %v853 = vadd.f32 0.0, %v852
      %v854 = vpop.f32.mrf.mxu0
      %855 = vmatprep.mubr.bf16.mxu0 0
      %856 = vmatmul.mubr.bf16.gmra.mxu0 %v799
      %v857 = vpop.f32.mrf.mxu0
      %v858 = vadd.f32 0.0, %v857
      %v859 = vpop.f32.mrf.mxu0
      %v860 = vpop.f32.mrf.mxu0
      %v861 = vadd.f32 0.0, %v860
      %v862 = vpop.f32.mrf.mxu0
      %863 = vmatprep.mubr.bf16.mxu0 0
      %864 = vmatmul.mubr.bf16.gmra.mxu0 %v802
      %v865 = vpop.f32.mrf.mxu0
      %v866 = vadd.f32 0.0, %v865
      %v867 = vpop.f32.mrf.mxu0
      %v868 = vpop.f32.mrf.mxu0
      %v869 = vadd.f32 0.0, %v868
      %v870 = vpop.f32.mrf.mxu0
      %871 = vdwg.mxu0
      %v872 = vadd.f32 %v769, %v842
      %v873 = vadd.f32 %v770, %v845
      %v874 = vadd.f32 %v771, %v850
      %v875 = vadd.f32 %v772, %v853
      %v876 = vadd.f32 %v773, %v858
      %v877 = vadd.f32 %v774, %v861
      %v878 = vadd.f32 %v775, %v866
      %v879 = vadd.f32 %v776, %v869
      %s880 = scalar_lea.vmem %s165, 448
      %v881 = vld [vmem:[%s880] sm:$0xff]
      %v882 = vld [vmem:[%s880 + $0x8] sm:$0xff]
      %v883 = vld [vmem:[%s880 + $0x10] sm:$0xff]
      %v884 = vld [vmem:[%s880 + $0x18] sm:$0xff]
      %v885 = vld [vmem:[%s880 + $0x20] sm:$0xff]
      %v886 = vld [vmem:[%s880 + $0x28] sm:$0xff]
      %v887 = vld [vmem:[%s880 + $0x30] sm:$0xff]
      %v888 = vld [vmem:[%s880 + $0x38] sm:$0xff]
      %v889 = vpack.c.bf16 %v882, %v881
      %v890 = vpack.c.bf16 %v884, %v883
      %v891 = vpack.c.bf16 %v886, %v885
      %v892 = vpack.c.bf16 %v888, %v887
      %s893 = scalar_lea.vmem %s1, 14
      %v894 = vld [vmem:[%s893] sm:$0x3]
      %v896 = vsel %vm200, %v889, 0
      %v899 = vsel %vm200, %v890, 0
      %v902 = vsel %vm200, %v891, 0
      %v905 = vsel %vm200, %v892, 0
      %v908 = vand.u32 %v894, %v216
      %910 = vmatprep.subr.bf16.mxu0 0
      %911 = vmatpush1.bf16.msra.mxu0 0
      %912 = vmatprep.subr.bf16.mxu0 0
      %913 = vmatpush1.bf16.msra.mxu0 0
      %914 = vmatprep.subr.bf16.mxu0 0
      %915 = vmatpush1.bf16.msra.mxu0 0
      %916 = vmatprep.subr.bf16.mxu0 0
      %917 = vmatpush1.bf16.msra.mxu0 0
      %918 = vmatprep.subr.bf16.mxu0 0
      %919 = vmatpush1.bf16.msra.mxu0 0
      %920 = vmatprep.subr.bf16.mxu0 0
      %921 = vmatpush1.bf16.msra.mxu0 0
      %922 = vmatprep.subr.bf16.mxu0 0
      %923 = vmatpush1.bf16.msra.mxu0 0
      %924 = vmatprep.subr.bf16.mxu0 0
      %925 = vmatpush1.bf16.msra.mxu0 %v908
      %926 = vmatprep.subr.bf16.mxu0 0
      %927 = vmatpush2.bf16.msra.mxu0 0
      %928 = vmatprep.subr.bf16.mxu0 0
      %929 = vmatpush2.bf16.msra.mxu0 0
      %930 = vmatprep.subr.bf16.mxu0 0
      %931 = vmatpush2.bf16.msra.mxu0 0
      %932 = vmatprep.subr.bf16.mxu0 0
      %933 = vmatpush2.bf16.msra.mxu0 0
      %934 = vmatprep.subr.bf16.mxu0 0
      %935 = vmatpush2.bf16.msra.mxu0 0
      %936 = vmatprep.subr.bf16.mxu0 0
      %937 = vmatpush2.bf16.msra.mxu0 0
      %938 = vmatprep.subr.bf16.mxu0 0
      %939 = vmatpush2.bf16.msra.mxu0 0
      %940 = vmatprep.subr.bf16.mxu0 0
      %941 = vmatpush2.bf16.msra.mxu0 0
      %942 = vmatprep.mubr.bf16.mxu0 0
      %943 = vmatmul.mubr.bf16.gmra.mxu0 %v896
      %v944 = vpop.f32.mrf.mxu0
      %v945 = vadd.f32 0.0, %v944
      %v946 = vpop.f32.mrf.mxu0
      %v947 = vpop.f32.mrf.mxu0
      %v948 = vadd.f32 0.0, %v947
      %v949 = vpop.f32.mrf.mxu0
      %950 = vmatprep.mubr.bf16.mxu0 0
      %951 = vmatmul.mubr.bf16.gmra.mxu0 %v899
      %v952 = vpop.f32.mrf.mxu0
      %v953 = vadd.f32 0.0, %v952
      %v954 = vpop.f32.mrf.mxu0
      %v955 = vpop.f32.mrf.mxu0
      %v956 = vadd.f32 0.0, %v955
      %v957 = vpop.f32.mrf.mxu0
      %958 = vmatprep.mubr.bf16.mxu0 0
      %959 = vmatmul.mubr.bf16.gmra.mxu0 %v902
      %v960 = vpop.f32.mrf.mxu0
      %v961 = vadd.f32 0.0, %v960
      %v962 = vpop.f32.mrf.mxu0
      %v963 = vpop.f32.mrf.mxu0
      %v964 = vadd.f32 0.0, %v963
      %v965 = vpop.f32.mrf.mxu0
      %966 = vmatprep.mubr.bf16.mxu0 0
      %967 = vmatmul.mubr.bf16.gmra.mxu0 %v905
      %v968 = vpop.f32.mrf.mxu0
      %v969 = vadd.f32 0.0, %v968
      %v970 = vpop.f32.mrf.mxu0
      %v971 = vpop.f32.mrf.mxu0
      %v972 = vadd.f32 0.0, %v971
      %v973 = vpop.f32.mrf.mxu0
      %974 = vdwg.mxu0
      %v975 = vadd.f32 %v872, %v945
      %v976 = vadd.f32 %v873, %v948
      %v977 = vadd.f32 %v874, %v953
      %v978 = vadd.f32 %v875, %v956
      %v979 = vadd.f32 %v876, %v961
      %v980 = vadd.f32 %v877, %v964
      %v981 = vadd.f32 %v878, %v969
      %v982 = vadd.f32 %v879, %v972
      %s983 = scalar_lea.vmem %s165, 512
      %v984 = vld [vmem:[%s983] sm:$0xff]
      %v985 = vld [vmem:[%s983 + $0x8] sm:$0xff]
      %v986 = vld [vmem:[%s983 + $0x10] sm:$0xff]
      %v987 = vld [vmem:[%s983 + $0x18] sm:$0xff]
      %v988 = vld [vmem:[%s983 + $0x20] sm:$0xff]
      %v989 = vld [vmem:[%s983 + $0x28] sm:$0xff]
      %v990 = vld [vmem:[%s983 + $0x30] sm:$0xff]
      %v991 = vld [vmem:[%s983 + $0x38] sm:$0xff]
      %v992 = vpack.c.bf16 %v985, %v984
      %v993 = vpack.c.bf16 %v987, %v986
      %v994 = vpack.c.bf16 %v989, %v988
      %v995 = vpack.c.bf16 %v991, %v990
      %s996 = scalar_lea.vmem %s1, 16
      %v997 = vld [vmem:[%s996] sm:$0x3]
      %v999 = vsel %vm200, %v992, 0
      %v1002 = vsel %vm200, %v993, 0
      %v1005 = vsel %vm200, %v994, 0
      %v1008 = vsel %vm200, %v995, 0
      %v1011 = vand.u32 %v997, %v216
      %1013 = vmatprep.subr.bf16.mxu0 0
      %1014 = vmatpush1.bf16.msra.mxu0 0
      %1015 = vmatprep.subr.bf16.mxu0 0
      %1016 = vmatpush1.bf16.msra.mxu0 0
      %1017 = vmatprep.subr.bf16.mxu0 0
      %1018 = vmatpush1.bf16.msra.mxu0 0
      %1019 = vmatprep.subr.bf16.mxu0 0
      %1020 = vmatpush1.bf16.msra.mxu0 0
      %1021 = vmatprep.subr.bf16.mxu0 0
      %1022 = vmatpush1.bf16.msra.mxu0 0
      %1023 = vmatprep.subr.bf16.mxu0 0
      %1024 = vmatpush1.bf16.msra.mxu0 0
      %1025 = vmatprep.subr.bf16.mxu0 0
      %1026 = vmatpush1.bf16.msra.mxu0 0
      %1027 = vmatprep.subr.bf16.mxu0 0
      %1028 = vmatpush1.bf16.msra.mxu0 %v1011
      %1029 = vmatprep.subr.bf16.mxu0 0
      %1030 = vmatpush2.bf16.msra.mxu0 0
      %1031 = vmatprep.subr.bf16.mxu0 0
      %1032 = vmatpush2.bf16.msra.mxu0 0
      %1033 = vmatprep.subr.bf16.mxu0 0
      %1034 = vmatpush2.bf16.msra.mxu0 0
      %1035 = vmatprep.subr.bf16.mxu0 0
      %1036 = vmatpush2.bf16.msra.mxu0 0
      %1037 = vmatprep.subr.bf16.mxu0 0
      %1038 = vmatpush2.bf16.msra.mxu0 0
      %1039 = vmatprep.subr.bf16.mxu0 0
      %1040 = vmatpush2.bf16.msra.mxu0 0
      %1041 = vmatprep.subr.bf16.mxu0 0
      %1042 = vmatpush2.bf16.msra.mxu0 0
      %1043 = vmatprep.subr.bf16.mxu0 0
      %1044 = vmatpush2.bf16.msra.mxu0 0
      %1045 = vmatprep.mubr.bf16.mxu0 0
      %1046 = vmatmul.mubr.bf16.gmra.mxu0 %v999
      %v1047 = vpop.f32.mrf.mxu0
      %v1048 = vadd.f32 0.0, %v1047
      %v1049 = vpop.f32.mrf.mxu0
      %v1050 = vpop.f32.mrf.mxu0
      %v1051 = vadd.f32 0.0, %v1050
      %v1052 = vpop.f32.mrf.mxu0
      %1053 = vmatprep.mubr.bf16.mxu0 0
      %1054 = vmatmul.mubr.bf16.gmra.mxu0 %v1002
      %v1055 = vpop.f32.mrf.mxu0
      %v1056 = vadd.f32 0.0, %v1055
      %v1057 = vpop.f32.mrf.mxu0
      %v1058 = vpop.f32.mrf.mxu0
      %v1059 = vadd.f32 0.0, %v1058
      %v1060 = vpop.f32.mrf.mxu0
      %1061 = vmatprep.mubr.bf16.mxu0 0
      %1062 = vmatmul.mubr.bf16.gmra.mxu0 %v1005
      %v1063 = vpop.f32.mrf.mxu0
      %v1064 = vadd.f32 0.0, %v1063
      %v1065 = vpop.f32.mrf.mxu0
      %v1066 = vpop.f32.mrf.mxu0
      %v1067 = vadd.f32 0.0, %v1066
      %v1068 = vpop.f32.mrf.mxu0
      %1069 = vmatprep.mubr.bf16.mxu0 0
      %1070 = vmatmul.mubr.bf16.gmra.mxu0 %v1008
      %v1071 = vpop.f32.mrf.mxu0
      %v1072 = vadd.f32 0.0, %v1071
      %v1073 = vpop.f32.mrf.mxu0
      %v1074 = vpop.f32.mrf.mxu0
      %v1075 = vadd.f32 0.0, %v1074
      %v1076 = vpop.f32.mrf.mxu0
      %1077 = vdwg.mxu0
      %v1078 = vadd.f32 %v975, %v1048
      %v1079 = vadd.f32 %v976, %v1051
      %v1080 = vadd.f32 %v977, %v1056
      %v1081 = vadd.f32 %v978, %v1059
      %v1082 = vadd.f32 %v979, %v1064
      %v1083 = vadd.f32 %v980, %v1067
      %v1084 = vadd.f32 %v981, %v1072
      %v1085 = vadd.f32 %v982, %v1075
      %v1086 = vld [vmem:[%s2] sm:$0x1]
      %v1088 = vlaneseq
      %v1089 = vshrl.u32 %v1088, 7
      %v1090 = vsub.s32 0, %v1089
      %v1091 = vrot.slane %v1086, %v1090
      %v1093 = vadd.f32 %v1078, %v1091
      %v1094 = vadd.f32 %v1079, %v1091
      %v1095 = vadd.f32 %v1080, %v1091
      %v1096 = vadd.f32 %v1081, %v1091
      %v1097 = vadd.f32 %v1082, %v1091
      %v1098 = vadd.f32 %v1083, %v1091
      %v1099 = vadd.f32 %v1084, %v1091
      %v1100 = vadd.f32 %v1085, %v1091
      %v1101 = vmax.f32 %v1093, 0.0
      %v1102 = vmax.f32 %v1094, 0.0
      %v1103 = vmax.f32 %v1095, 0.0
      %v1104 = vmax.f32 %v1096, 0.0
      %v1105 = vmax.f32 %v1097, 0.0
      %v1106 = vmax.f32 %v1098, 0.0
      %v1107 = vmax.f32 %v1099, 0.0
      %v1108 = vmax.f32 %v1100, 0.0
      %vm1109 = vcmask 261120
      %1110 = vst.msk [vmem:[%s170] sm:$0xff] %vm1109, %v1101
      %1111 = vst.msk [vmem:[%s170 + $0x8] sm:$0xff] %vm1109, %v1102
      %1112 = vst.msk [vmem:[%s170 + $0x10] sm:$0xff] %vm1109, %v1103
      %1113 = vst.msk [vmem:[%s170 + $0x18] sm:$0xff] %vm1109, %v1104
      %1114 = vst.msk [vmem:[%s170 + $0x20] sm:$0xff] %vm1109, %v1105
      %1115 = vst.msk [vmem:[%s170 + $0x28] sm:$0xff] %vm1109, %v1106
      %1116 = vst.msk [vmem:[%s170 + $0x30] sm:$0xff] %vm1109, %v1107
      %1117 = vst.msk [vmem:[%s170 + $0x38] sm:$0xff] %vm1109, %v1108
      %p1118 = scmp.lt.s32.totalorder %s14, 1
      %s1119 = scalar_select %p1118, %s14, 1
      %s1120 = smul.addr %s1119, 8
      %s1121 = smul.addr %s1120, 8
      %s1122 = scalar_lea.vmem %s3, %s1121
      // Predicated region
      $region33: #{mobilenet_forward.5} parent=31 // pred_check
        %p1123 = pneg %p100
      $region34: #{mobilenet_forward.5} parent=31 // pred_check_branch
        %1125 = sbr.rel (%p1123) target = $region36
      $region35: #{mobilenet_forward.5} parent=31 // pred_region
        _
      $region36: #{mobilenet_forward.5} parent=31 // pred_fallthru
        _
    $region32: #{mobilenet_forward.5} parent=5 // pred_fallthru
      _
    %p1126 = scmp.le.s32.totalorder 2, %s9
    // Predicated region
    $region37: #{mobilenet_forward.5} parent=5 // pred_check
      %p1127 = pneg %p1126
    $region38: #{mobilenet_forward.5} parent=5 // pred_check_branch
      %1129 = sbr.rel (%p1127) target = $region40
    $region39: #{mobilenet_forward.5} parent=5 // pred_region
      %s1130 = ssub.s32 %s9, 2
      // Predicated region
      $region41: #{mobilenet_forward.5} parent=39 // pred_check
        %p1131 = pneg %p106
      $region42: #{mobilenet_forward.5} parent=39 // pred_check_branch
        %1133 = sbr.rel (%p1131) target = $region44
      $region43: #{mobilenet_forward.5} parent=39 // pred_region
        %p1134 = scmp.lt.s32.totalorder %s15, 1
        %s1135 = scalar_select %p1134, %s15, 1
        %s1136 = smul.addr %s1135, 8
        %s1137 = smul.addr %s1136, 8
        %s1138 = scalar_lea.vmem %s3, %s1137
      $region44: #{mobilenet_forward.5} parent=39 // pred_fallthru
        _
    $region40: #{mobilenet_forward.5} parent=5 // pred_fallthru
      _
  $region6: #{mobilenet_forward.5} parent=0 // loop_footer
    %s13 = sadd.s32 1, %s9
  $region7: #{mobilenet_forward.5} parent=0 // loop_footer_branch
    %8 = sbr.rel target = $region3
  $region8: #{mobilenet_forward.5} parent=0 // loop_exit
    _

// kernel: mobilenet_forward.6
$region0: #{mobilenet_forward.6}
  #allocation0 [shape = 'u32[]', space=smem, size = 0x4, offset = 0x4, fixed_abs, tag = 'smem constant byte address 0x4 - core index']
  #allocation1 [shape = 'u32[144,128]{1,0:T(1,128)}', space=vmem, size = 0x12000, scoped, tag = 'internal scratch']
  %s0 = inlined_call_operand.vmem [shape: f32[2,9,64,32], index: 0, kind: input, shape index: {}]
  %s1 = inlined_call_operand.vmem [shape: f32[9,1,32], index: 1, kind: input, shape index: {}]
  %s2 = inlined_call_operand.vmem [shape: f32[1,32], index: 2, kind: input, shape index: {}]
  %s3 = inlined_call_operand.vmem [shape: bf16[32,64], index: 3, kind: input, shape index: {}]
  %s4 = inlined_call_operand.vmem [shape: f32[1,64], index: 4, kind: input, shape index: {}]
  %s5 = inlined_call_operand.vmem [shape: f32[2,64,64], index: 5, kind: output, shape index: {}]
  %s6 = sld [smem:[#allocation0]]
  $region53: #{mobilenet_forward.6} parent=0
    _
  %s8 = ssub.s32 1, %s6
  %s9 = scalar_select 0, %s8, %s6
  loop: start=0, step=1, limit=4
  $region2: #{mobilenet_forward.6} parent=0 // loop_pre_header
    _
  $region3: #{mobilenet_forward.6} parent=0 // loop_header
    %s11 = sphi 0, %s15
    %p12 = scmp.ge.s32.totalorder %s11, 4
    %s21 = sphi 0, %s23
    %s24 = sphi 0, %s21
    %s25 = sphi 0, %s24
    %s41 = sphi 0, %s25
    %s45 = sphi 0, %s45
    %s47 = sphi 0, %s45
    %s48 = sphi 0, %s47
    %s62 = sphi 0, %s48
    %s66 = sphi 0, %s66
    %s68 = sphi 0, %s66
    %s69 = sphi 0, %s68
    %s83 = sphi 0, %s69
    %s87 = sphi 0, %s87
    %s89 = sphi 0, %s87
    %s90 = sphi 0, %s89
    %s104 = sphi 0, %s90
    %s108 = sphi 0, %s108
    %s110 = sphi 0, %s108
    %s111 = sphi 0, %s110
    %s125 = sphi 0, %s111
    %s131 = sphi 0, %s133
    %s134 = sphi 0, %s131
    %s135 = sphi 0, %s134
    %s151 = sphi 0, %s135
  $region4: #{mobilenet_forward.6} parent=0 // loop_header_branch
    %14 = sbr.rel (%p12) target = $region8
  $region5: #{mobilenet_forward.6} parent=0 // loop_body
    %s16 = ssub.s32 %s11, 1
    %s17 = ssub.s32 %s11, 2
    %s18 = sadd.s32 %s11, 1
    %s19 = ssub.s32 %s11, %s18
    %p20 = scmp.eq.s32.totalorder %s19, 0
    %s22 = sadd.s32 %s21, 1
    %s23 = scalar_select %p20, %s21, %s22
    %p26 = pneg %p20
    %p27 = scmp.eq.s32.totalorder %s11, 1
    %p28 = por %p26, %p27
    %p29 = scmp.ne.s32.totalorder %s21, %s24
    %p30 = scmp.eq.s32.totalorder %s11, 0
    %p31 = por %p29, %p30
    %p32 = scmp.ne.s32.totalorder %s21, %s24
    %p33 = scmp.eq.s32.totalorder %s16, 1
    %p34 = por %p32, %p33
    %p35 = scmp.ne.s32.totalorder %s24, %s25
    %p36 = scmp.eq.s32.totalorder %s16, 0
    %p37 = por %p35, %p36
    %p38 = scmp.ne.s32.totalorder %s24, %s25
    %p39 = scmp.eq.s32.totalorder %s17, 1
    %p40 = por %p38, %p39
    %p42 = scmp.ne.s32.totalorder %s25, %s41
    %p43 = scmp.eq.s32.totalorder %s17, 0
    %p44 = por %p42, %p43
    %s46 = sadd.s32 %s45, 1
    %p49 = scmp.eq.s32.totalorder %s11, 1
    %p50 = scmp.ne.s32.totalorder %s45, %s47
    %p51 = scmp.eq.s32.totalorder %s11, 0
    %p52 = por %p50, %p51
    %p53 = scmp.ne.s32.totalorder %s45, %s47
    %p54 = scmp.eq.s32.totalorder %s16, 1
    %p55 = por %p53, %p54
    %p56 = scmp.ne.s32.totalorder %s47, %s48
    %p57 = scmp.eq.s32.totalorder %s16, 0
    %p58 = por %p56, %p57
    %p59 = scmp.ne.s32.totalorder %s47, %s48
    %p60 = scmp.eq.s32.totalorder %s17, 1
    %p61 = por %p59, %p60
    %p63 = scmp.ne.s32.totalorder %s48, %s62
    %p64 = scmp.eq.s32.totalorder %s17, 0
    %p65 = por %p63, %p64
    %s67 = sadd.s32 %s66, 1
    %p70 = scmp.eq.s32.totalorder %s11, 1
    %p71 = scmp.ne.s32.totalorder %s66, %s68
    %p72 = scmp.eq.s32.totalorder %s11, 0
    %p73 = por %p71, %p72
    %p74 = scmp.ne.s32.totalorder %s66, %s68
    %p75 = scmp.eq.s32.totalorder %s16, 1
    %p76 = por %p74, %p75
    %p77 = scmp.ne.s32.totalorder %s68, %s69
    %p78 = scmp.eq.s32.totalorder %s16, 0
    %p79 = por %p77, %p78
    %p80 = scmp.ne.s32.totalorder %s68, %s69
    %p81 = scmp.eq.s32.totalorder %s17, 1
    %p82 = por %p80, %p81
    %p84 = scmp.ne.s32.totalorder %s69, %s83
    %p85 = scmp.eq.s32.totalorder %s17, 0
    %p86 = por %p84, %p85
    %s88 = sadd.s32 %s87, 1
    %p91 = scmp.eq.s32.totalorder %s11, 1
    %p92 = scmp.ne.s32.totalorder %s87, %s89
    %p93 = scmp.eq.s32.totalorder %s11, 0
    %p94 = por %p92, %p93
    %p95 = scmp.ne.s32.totalorder %s87, %s89
    %p96 = scmp.eq.s32.totalorder %s16, 1
    %p97 = por %p95, %p96
    %p98 = scmp.ne.s32.totalorder %s89, %s90
    %p99 = scmp.eq.s32.totalorder %s16, 0
    %p100 = por %p98, %p99
    %p101 = scmp.ne.s32.totalorder %s89, %s90
    %p102 = scmp.eq.s32.totalorder %s17, 1
    %p103 = por %p101, %p102
    %p105 = scmp.ne.s32.totalorder %s90, %s104
    %p106 = scmp.eq.s32.totalorder %s17, 0
    %p107 = por %p105, %p106
    %s109 = sadd.s32 %s108, 1
    %p112 = scmp.eq.s32.totalorder %s11, 1
    %p113 = scmp.ne.s32.totalorder %s108, %s110
    %p114 = scmp.eq.s32.totalorder %s11, 0
    %p115 = por %p113, %p114
    %p116 = scmp.ne.s32.totalorder %s108, %s110
    %p117 = scmp.eq.s32.totalorder %s16, 1
    %p118 = por %p116, %p117
    %p119 = scmp.ne.s32.totalorder %s110, %s111
    %p120 = scmp.eq.s32.totalorder %s16, 0
    %p121 = por %p119, %p120
    %p122 = scmp.ne.s32.totalorder %s110, %s111
    %p123 = scmp.eq.s32.totalorder %s17, 1
    %p124 = por %p122, %p123
    %p126 = scmp.ne.s32.totalorder %s111, %s125
    %p127 = scmp.eq.s32.totalorder %s17, 0
    %p128 = por %p126, %p127
    %s129 = ssub.s32 %s11, %s18
    %p130 = scmp.eq.s32.totalorder %s129, 0
    %s132 = sadd.s32 %s131, 1
    %s133 = scalar_select %p130, %s131, %s132
    %p136 = pneg %p130
    %p137 = scmp.eq.s32.totalorder %s11, 1
    %p138 = por %p136, %p137
    %p139 = scmp.ne.s32.totalorder %s131, %s134
    %p140 = scmp.eq.s32.totalorder %s11, 0
    %p141 = por %p139, %p140
    %p142 = scmp.ne.s32.totalorder %s131, %s134
    %p143 = scmp.eq.s32.totalorder %s16, 1
    %p144 = por %p142, %p143
    %p145 = scmp.ne.s32.totalorder %s134, %s135
    %p146 = scmp.eq.s32.totalorder %s16, 0
    %p147 = por %p145, %p146
    %p148 = scmp.ne.s32.totalorder %s134, %s135
    %p149 = scmp.eq.s32.totalorder %s17, 1
    %p150 = por %p148, %p149
    %p152 = scmp.ne.s32.totalorder %s135, %s151
    %p153 = scmp.eq.s32.totalorder %s17, 0
    %p154 = por %p152, %p153
    %p155 = scmp.le.s32.totalorder 1, %s11
    %p156 = scmp.lt.s32.totalorder %s11, 3
    %p157 = pnand %p155, %p156
    %p158 = pneg %p157
    // Predicated region
    $region9: #{mobilenet_forward.6} parent=5 // pred_check
      _
    $region10: #{mobilenet_forward.6} parent=5 // pred_check_branch
      %160 = sbr.rel (%p157) target = $region12
    $region11: #{mobilenet_forward.6} parent=5 // pred_region
      %s161 = ssub.s32 %s11, 1
      // Predicated region
      $region13: #{mobilenet_forward.6} parent=11 // pred_check
        %p162 = pneg %p58
      $region14: #{mobilenet_forward.6} parent=11 // pred_check_branch
        %164 = sbr.rel (%p162) target = $region16
      $region15: #{mobilenet_forward.6} parent=11 // pred_region
        _
      $region16: #{mobilenet_forward.6} parent=11 // pred_fallthru
        _
      // Predicated region
      $region17: #{mobilenet_forward.6} parent=11 // pred_check
        %p165 = pneg %p79
      $region18: #{mobilenet_forward.6} parent=11 // pred_check_branch
        %167 = sbr.rel (%p165) target = $region20
      $region19: #{mobilenet_forward.6} parent=11 // pred_region
        _
      $region20: #{mobilenet_forward.6} parent=11 // pred_fallthru
        _
      // Predicated region
      $region21: #{mobilenet_forward.6} parent=11 // pred_check
        %p168 = pneg %p100
      $region22: #{mobilenet_forward.6} parent=11 // pred_check_branch
        %170 = sbr.rel (%p168) target = $region24
      $region23: #{mobilenet_forward.6} parent=11 // pred_region
        _
      $region24: #{mobilenet_forward.6} parent=11 // pred_fallthru
        _
      // Predicated region
      $region25: #{mobilenet_forward.6} parent=11 // pred_check
        %p171 = pneg %p121
      $region26: #{mobilenet_forward.6} parent=11 // pred_check_branch
        %173 = sbr.rel (%p171) target = $region28
      $region27: #{mobilenet_forward.6} parent=11 // pred_region
        _
      $region28: #{mobilenet_forward.6} parent=11 // pred_fallthru
        _
    $region12: #{mobilenet_forward.6} parent=5 // pred_fallthru
      _
    %p174 = scmp.lt.s32.totalorder %s11, 2
    // Predicated region
    $region29: #{mobilenet_forward.6} parent=5 // pred_check
      %p175 = pneg %p174
    $region30: #{mobilenet_forward.6} parent=5 // pred_check_branch
      %177 = sbr.rel (%p175) target = $region32
    $region31: #{mobilenet_forward.6} parent=5 // pred_region
      // Predicated region
      $region33: #{mobilenet_forward.6} parent=31 // pred_check
        %p178 = pneg %p31
      $region34: #{mobilenet_forward.6} parent=31 // pred_check_branch
        %180 = sbr.rel (%p178) target = $region36
      $region35: #{mobilenet_forward.6} parent=31 // pred_region
        %p181 = scmp.lt.s32.totalorder %s11, 1
        %s182 = scalar_select %p181, %s11, 1
        %s183 = smul.addr %s182, 72
        %s184 = smul.addr %s183, 8
        %s185 = scalar_lea.vmem %s0, %s184
      $region36: #{mobilenet_forward.6} parent=31 // pred_fallthru
        _
    $region32: #{mobilenet_forward.6} parent=5 // pred_fallthru
      _
    %p186 = scmp.le.s32.totalorder 1, %s11
    %p187 = scmp.lt.s32.totalorder %s11, 3
    %p188 = pnand %p186, %p187
    %p189 = pneg %p188
    // Predicated region
    $region37: #{mobilenet_forward.6} parent=5 // pred_check
      _
    $region38: #{mobilenet_forward.6} parent=5 // pred_check_branch
      %191 = sbr.rel (%p188) target = $region40
    $region39: #{mobilenet_forward.6} parent=5 // pred_region
      %s192 = ssub.s32 %s11, 1
      %p193 = scmp.lt.s32.totalorder %s16, 1
      %s194 = scalar_select %p193, %s16, 1
      %s195 = smul.addr %s194, 72
      %s196 = smul.addr %s195, 8
      %s197 = scalar_lea.vmem %s0, %s196
      %p198 = pneg %p37
      %p199 = pneg %p34
      %p200 = pneg %p58
      %p201 = pneg %p55
      %p202 = pneg %p79
      %p203 = pneg %p76
      %p204 = pneg %p100
      %p205 = pneg %p97
      %p206 = pneg %p121
      %p207 = pneg %p118
      %p208 = pneg %p147
      %p209 = pneg %p144
      %p210 = scmp.lt.s32.totalorder %s16, 1
      %s211 = scalar_select %p210, %s16, 1
      %s212 = smul.addr %s211, 8
      %s213 = smul.addr %s212, 8
      %s214 = scalar_lea.vmem %s5, %s213
      %p215 = scmp.lt.s32.totalorder %s16, 1
      %s216 = scalar_select %p215, %s16, 1
      %s217 = smul.addr %s216, 72
      %s218 = smul.addr %s217, 8
      %s219 = scalar_lea.vmem %s0, %s218
      %p220 = scmp.lt.s32.totalorder %s16, 1
      %s221 = scalar_select %p220, %s16, 1
      %s222 = smul.addr %s221, 8
      %s223 = smul.addr %s222, 8
      %s224 = scalar_lea.vmem %s5, %s223
      %v226 = vld [vmem:[%s219] sm:$0xff]
      %v227 = vld [vmem:[%s219 + $0x8] sm:$0xff]
      %v228 = vld [vmem:[%s219 + $0x10] sm:$0xff]
      %v229 = vld [vmem:[%s219 + $0x18] sm:$0xff]
      %v230 = vld [vmem:[%s219 + $0x20] sm:$0xff]
      %v231 = vld [vmem:[%s219 + $0x28] sm:$0xff]
      %v232 = vld [vmem:[%s219 + $0x30] sm:$0xff]
      %v233 = vld [vmem:[%s219 + $0x38] sm:$0xff]
      %v234 = vld [vmem:[%s1] sm:$0x1]
      %v236 = vlaneseq
      %v237 = vshrl.u32 %v236, 7
      %v238 = vsub.s32 0, %v237
      %v239 = vrot.slane %v234, %v238
      %v241 = vmul.f32 %v226, %v239
      %v242 = vmul.f32 %v227, %v239
      %v243 = vmul.f32 %v228, %v239
      %v244 = vmul.f32 %v229, %v239
      %v245 = vmul.f32 %v230, %v239
      %v246 = vmul.f32 %v231, %v239
      %v247 = vmul.f32 %v232, %v239
      %v248 = vmul.f32 %v233, %v239
      %s249 = scalar_lea.vmem %s219, 64
      %v250 = vld [vmem:[%s249] sm:$0xff]
      %v251 = vld [vmem:[%s249 + $0x8] sm:$0xff]
      %v252 = vld [vmem:[%s249 + $0x10] sm:$0xff]
      %v253 = vld [vmem:[%s249 + $0x18] sm:$0xff]
      %v254 = vld [vmem:[%s249 + $0x20] sm:$0xff]
      %v255 = vld [vmem:[%s249 + $0x28] sm:$0xff]
      %v256 = vld [vmem:[%s249 + $0x30] sm:$0xff]
      %v257 = vld [vmem:[%s249 + $0x38] sm:$0xff]
      %s258 = scalar_lea.vmem %s1, 1
      %v259 = vld [vmem:[%s258] sm:$0x1]
      %v261 = vlaneseq
      %v262 = vshrl.u32 %v261, 7
      %v263 = vsub.s32 0, %v262
      %v264 = vrot.slane %v259, %v263
      %v266 = vmul.f32 %v250, %v264
      %v267 = vmul.f32 %v251, %v264
      %v268 = vmul.f32 %v252, %v264
      %v269 = vmul.f32 %v253, %v264
      %v270 = vmul.f32 %v254, %v264
      %v271 = vmul.f32 %v255, %v264
      %v272 = vmul.f32 %v256, %v264
      %v273 = vmul.f32 %v257, %v264
      %v274 = vadd.f32 %v241, %v266
      %v275 = vadd.f32 %v242, %v267
      %v276 = vadd.f32 %v243, %v268
      %v277 = vadd.f32 %v244, %v269
      %v278 = vadd.f32 %v245, %v270
      %v279 = vadd.f32 %v246, %v271
      %v280 = vadd.f32 %v247, %v272
      %v281 = vadd.f32 %v248, %v273
      %s282 = scalar_lea.vmem %s219, 128
      %v283 = vld [vmem:[%s282] sm:$0xff]
      %v284 = vld [vmem:[%s282 + $0x8] sm:$0xff]
      %v285 = vld [vmem:[%s282 + $0x10] sm:$0xff]
      %v286 = vld [vmem:[%s282 + $0x18] sm:$0xff]
      %v287 = vld [vmem:[%s282 + $0x20] sm:$0xff]
      %v288 = vld [vmem:[%s282 + $0x28] sm:$0xff]
      %v289 = vld [vmem:[%s282 + $0x30] sm:$0xff]
      %v290 = vld [vmem:[%s282 + $0x38] sm:$0xff]
      %s291 = scalar_lea.vmem %s1, 2
      %v292 = vld [vmem:[%s291] sm:$0x1]
      %v294 = vlaneseq
      %v295 = vshrl.u32 %v294, 7
      %v296 = vsub.s32 0, %v295
      %v297 = vrot.slane %v292, %v296
      %v299 = vmul.f32 %v283, %v297
      %v300 = vmul.f32 %v284, %v297
      %v301 = vmul.f32 %v285, %v297
      %v302 = vmul.f32 %v286, %v297
      %v303 = vmul.f32 %v287, %v297
      %v304 = vmul.f32 %v288, %v297
      %v305 = vmul.f32 %v289, %v297
      %v306 = vmul.f32 %v290, %v297
      %v307 = vadd.f32 %v274, %v299
      %v308 = vadd.f32 %v275, %v300
      %v309 = vadd.f32 %v276, %v301
      %v310 = vadd.f32 %v277, %v302
      %v311 = vadd.f32 %v278, %v303
      %v312 = vadd.f32 %v279, %v304
      %v313 = vadd.f32 %v280, %v305
      %v314 = vadd.f32 %v281, %v306
      %s315 = scalar_lea.vmem %s219, 192
      %v316 = vld [vmem:[%s315] sm:$0xff]
      %v317 = vld [vmem:[%s315 + $0x8] sm:$0xff]
      %v318 = vld [vmem:[%s315 + $0x10] sm:$0xff]
      %v319 = vld [vmem:[%s315 + $0x18] sm:$0xff]
      %v320 = vld [vmem:[%s315 + $0x20] sm:$0xff]
      %v321 = vld [vmem:[%s315 + $0x28] sm:$0xff]
      %v322 = vld [vmem:[%s315 + $0x30] sm:$0xff]
      %v323 = vld [vmem:[%s315 + $0x38] sm:$0xff]
      %s324 = scalar_lea.vmem %s1, 3
      %v325 = vld [vmem:[%s324] sm:$0x1]
      %v327 = vlaneseq
      %v328 = vshrl.u32 %v327, 7
      %v329 = vsub.s32 0, %v328
      %v330 = vrot.slane %v325, %v329
      %v332 = vmul.f32 %v316, %v330
      %v333 = vmul.f32 %v317, %v330
      %v334 = vmul.f32 %v318, %v330
      %v335 = vmul.f32 %v319, %v330
      %v336 = vmul.f32 %v320, %v330
      %v337 = vmul.f32 %v321, %v330
      %v338 = vmul.f32 %v322, %v330
      %v339 = vmul.f32 %v323, %v330
      %v340 = vadd.f32 %v307, %v332
      %v341 = vadd.f32 %v308, %v333
      %v342 = vadd.f32 %v309, %v334
      %v343 = vadd.f32 %v310, %v335
      %v344 = vadd.f32 %v311, %v336
      %v345 = vadd.f32 %v312, %v337
      %v346 = vadd.f32 %v313, %v338
      %v347 = vadd.f32 %v314, %v339
      %s348 = scalar_lea.vmem %s219, 256
      %v349 = vld [vmem:[%s348] sm:$0xff]
      %v350 = vld [vmem:[%s348 + $0x8] sm:$0xff]
      %v351 = vld [vmem:[%s348 + $0x10] sm:$0xff]
      %v352 = vld [vmem:[%s348 + $0x18] sm:$0xff]
      %v353 = vld [vmem:[%s348 + $0x20] sm:$0xff]
      %v354 = vld [vmem:[%s348 + $0x28] sm:$0xff]
      %v355 = vld [vmem:[%s348 + $0x30] sm:$0xff]
      %v356 = vld [vmem:[%s348 + $0x38] sm:$0xff]
      %s357 = scalar_lea.vmem %s1, 4
      %v358 = vld [vmem:[%s357] sm:$0x1]
      %v360 = vlaneseq
      %v361 = vshrl.u32 %v360, 7
      %v362 = vsub.s32 0, %v361
      %v363 = vrot.slane %v358, %v362
      %v365 = vmul.f32 %v349, %v363
      %v366 = vmul.f32 %v350, %v363
      %v367 = vmul.f32 %v351, %v363
      %v368 = vmul.f32 %v352, %v363
      %v369 = vmul.f32 %v353, %v363
      %v370 = vmul.f32 %v354, %v363
      %v371 = vmul.f32 %v355, %v363
      %v372 = vmul.f32 %v356, %v363
      %v373 = vadd.f32 %v340, %v365
      %v374 = vadd.f32 %v341, %v366
      %v375 = vadd.f32 %v342, %v367
      %v376 = vadd.f32 %v343, %v368
      %v377 = vadd.f32 %v344, %v369
      %v378 = vadd.f32 %v345, %v370
      %v379 = vadd.f32 %v346, %v371
      %v380 = vadd.f32 %v347, %v372
      %s381 = scalar_lea.vmem %s219, 320
      %v382 = vld [vmem:[%s381] sm:$0xff]
      %v383 = vld [vmem:[%s381 + $0x8] sm:$0xff]
      %v384 = vld [vmem:[%s381 + $0x10] sm:$0xff]
      %v385 = vld [vmem:[%s381 + $0x18] sm:$0xff]
      %v386 = vld [vmem:[%s381 + $0x20] sm:$0xff]
      %v387 = vld [vmem:[%s381 + $0x28] sm:$0xff]
      %v388 = vld [vmem:[%s381 + $0x30] sm:$0xff]
      %v389 = vld [vmem:[%s381 + $0x38] sm:$0xff]
      %s390 = scalar_lea.vmem %s1, 5
      %v391 = vld [vmem:[%s390] sm:$0x1]
      %v393 = vlaneseq
      %v394 = vshrl.u32 %v393, 7
      %v395 = vsub.s32 0, %v394
      %v396 = vrot.slane %v391, %v395
      %v398 = vmul.f32 %v382, %v396
      %v399 = vmul.f32 %v383, %v396
      %v400 = vmul.f32 %v384, %v396
      %v401 = vmul.f32 %v385, %v396
      %v402 = vmul.f32 %v386, %v396
      %v403 = vmul.f32 %v387, %v396
      %v404 = vmul.f32 %v388, %v396
      %v405 = vmul.f32 %v389, %v396
      %v406 = vadd.f32 %v373, %v398
      %v407 = vadd.f32 %v374, %v399
      %v408 = vadd.f32 %v375, %v400
      %v409 = vadd.f32 %v376, %v401
      %v410 = vadd.f32 %v377, %v402
      %v411 = vadd.f32 %v378, %v403
      %v412 = vadd.f32 %v379, %v404
      %v413 = vadd.f32 %v380, %v405
      %s414 = scalar_lea.vmem %s219, 384
      %v415 = vld [vmem:[%s414] sm:$0xff]
      %v416 = vld [vmem:[%s414 + $0x8] sm:$0xff]
      %v417 = vld [vmem:[%s414 + $0x10] sm:$0xff]
      %v418 = vld [vmem:[%s414 + $0x18] sm:$0xff]
      %v419 = vld [vmem:[%s414 + $0x20] sm:$0xff]
      %v420 = vld [vmem:[%s414 + $0x28] sm:$0xff]
      %v421 = vld [vmem:[%s414 + $0x30] sm:$0xff]
      %v422 = vld [vmem:[%s414 + $0x38] sm:$0xff]
      %s423 = scalar_lea.vmem %s1, 6
      %v424 = vld [vmem:[%s423] sm:$0x1]
      %v426 = vlaneseq
      %v427 = vshrl.u32 %v426, 7
      %v428 = vsub.s32 0, %v427
      %v429 = vrot.slane %v424, %v428
      %v431 = vmul.f32 %v415, %v429
      %v432 = vmul.f32 %v416, %v429
      %v433 = vmul.f32 %v417, %v429
      %v434 = vmul.f32 %v418, %v429
      %v435 = vmul.f32 %v419, %v429
      %v436 = vmul.f32 %v420, %v429
      %v437 = vmul.f32 %v421, %v429
      %v438 = vmul.f32 %v422, %v429
      %v439 = vadd.f32 %v406, %v431
      %v440 = vadd.f32 %v407, %v432
      %v441 = vadd.f32 %v408, %v433
      %v442 = vadd.f32 %v409, %v434
      %v443 = vadd.f32 %v410, %v435
      %v444 = vadd.f32 %v411, %v436
      %v445 = vadd.f32 %v412, %v437
      %v446 = vadd.f32 %v413, %v438
      %s447 = scalar_lea.vmem %s219, 448
      %v448 = vld [vmem:[%s447] sm:$0xff]
      %v449 = vld [vmem:[%s447 + $0x8] sm:$0xff]
      %v450 = vld [vmem:[%s447 + $0x10] sm:$0xff]
      %v451 = vld [vmem:[%s447 + $0x18] sm:$0xff]
      %v452 = vld [vmem:[%s447 + $0x20] sm:$0xff]
      %v453 = vld [vmem:[%s447 + $0x28] sm:$0xff]
      %v454 = vld [vmem:[%s447 + $0x30] sm:$0xff]
      %v455 = vld [vmem:[%s447 + $0x38] sm:$0xff]
      %s456 = scalar_lea.vmem %s1, 7
      %v457 = vld [vmem:[%s456] sm:$0x1]
      %v459 = vlaneseq
      %v460 = vshrl.u32 %v459, 7
      %v461 = vsub.s32 0, %v460
      %v462 = vrot.slane %v457, %v461
      %v464 = vmul.f32 %v448, %v462
      %v465 = vmul.f32 %v449, %v462
      %v466 = vmul.f32 %v450, %v462
      %v467 = vmul.f32 %v451, %v462
      %v468 = vmul.f32 %v452, %v462
      %v469 = vmul.f32 %v453, %v462
      %v470 = vmul.f32 %v454, %v462
      %v471 = vmul.f32 %v455, %v462
      %v472 = vadd.f32 %v439, %v464
      %v473 = vadd.f32 %v440, %v465
      %v474 = vadd.f32 %v441, %v466
      %v475 = vadd.f32 %v442, %v467
      %v476 = vadd.f32 %v443, %v468
      %v477 = vadd.f32 %v444, %v469
      %v478 = vadd.f32 %v445, %v470
      %v479 = vadd.f32 %v446, %v471
      %s480 = scalar_lea.vmem %s219, 512
      %v481 = vld [vmem:[%s480] sm:$0xff]
      %v482 = vld [vmem:[%s480 + $0x8] sm:$0xff]
      %v483 = vld [vmem:[%s480 + $0x10] sm:$0xff]
      %v484 = vld [vmem:[%s480 + $0x18] sm:$0xff]
      %v485 = vld [vmem:[%s480 + $0x20] sm:$0xff]
      %v486 = vld [vmem:[%s480 + $0x28] sm:$0xff]
      %v487 = vld [vmem:[%s480 + $0x30] sm:$0xff]
      %v488 = vld [vmem:[%s480 + $0x38] sm:$0xff]
      %s489 = scalar_lea.vmem %s1, 8
      %v490 = vld [vmem:[%s489] sm:$0x1]
      %v492 = vlaneseq
      %v493 = vshrl.u32 %v492, 7
      %v494 = vsub.s32 0, %v493
      %v495 = vrot.slane %v490, %v494
      %v497 = vmul.f32 %v481, %v495
      %v498 = vmul.f32 %v482, %v495
      %v499 = vmul.f32 %v483, %v495
      %v500 = vmul.f32 %v484, %v495
      %v501 = vmul.f32 %v485, %v495
      %v502 = vmul.f32 %v486, %v495
      %v503 = vmul.f32 %v487, %v495
      %v504 = vmul.f32 %v488, %v495
      %v505 = vadd.f32 %v472, %v497
      %v506 = vadd.f32 %v473, %v498
      %v507 = vadd.f32 %v474, %v499
      %v508 = vadd.f32 %v475, %v500
      %v509 = vadd.f32 %v476, %v501
      %v510 = vadd.f32 %v477, %v502
      %v511 = vadd.f32 %v478, %v503
      %v512 = vadd.f32 %v479, %v504
      %v513 = vld [vmem:[%s2] sm:$0x1]
      %v515 = vlaneseq
      %v516 = vshrl.u32 %v515, 7
      %v517 = vsub.s32 0, %v516
      %v518 = vrot.slane %v513, %v517
      %v520 = vadd.f32 %v505, %v518
      %v521 = vadd.f32 %v506, %v518
      %v522 = vadd.f32 %v507, %v518
      %v523 = vadd.f32 %v508, %v518
      %v524 = vadd.f32 %v509, %v518
      %v525 = vadd.f32 %v510, %v518
      %v526 = vadd.f32 %v511, %v518
      %v527 = vadd.f32 %v512, %v518
      %v528 = vmax.f32 %v520, 0.0
      %v529 = vmax.f32 %v521, 0.0
      %v530 = vmax.f32 %v522, 0.0
      %v531 = vmax.f32 %v523, 0.0
      %v532 = vmax.f32 %v524, 0.0
      %v533 = vmax.f32 %v525, 0.0
      %v534 = vmax.f32 %v526, 0.0
      %v535 = vmax.f32 %v527, 0.0
      %v536 = vpack.c.bf16 %v529, %v528
      %v537 = vpack.c.bf16 %v531, %v530
      %v538 = vpack.c.bf16 %v533, %v532
      %v539 = vpack.c.bf16 %v535, %v534
      %v540 = vld [vmem:[%s3] sm:$0xf]
      %v541 = vld [vmem:[%s3 + $0x4] sm:$0xf]
      %v542 = vld [vmem:[%s3 + $0x8] sm:$0xf]
      %v543 = vld [vmem:[%s3 + $0xc] sm:$0xf]
      %v544 = vld [vmem:[%s4] sm:$0x1]
      %v546 = vlaneseq
      %v547 = vshrl.u32 %v546, 7
      %v548 = vsub.s32 0, %v547
      %v549 = vrot.slane %v544, %v548
      %v555 = vunpack.c.l.b16 %v540
      %v556 = vunpack.c.l.b16 %v541
      %v557 = vunpack.c.l.b16 %v542
      %v558 = vunpack.c.l.b16 %v543
      %v559 = vpack.c.b16 %v556, %v555
      %v560 = vpack.c.b16 %v558, %v557
      %vm563 = vcmask 261120
      %v565 = vsel %vm563, %v536, 0
      %v568 = vsel %vm563, %v537, 0
      %v571 = vsel %vm563, %v538, 0
      %v574 = vsel %vm563, %v539, 0
      %576 = vmatprep.subr.bf16.mxu0 0
      %577 = vmatpush1.bf16.msra.mxu0 0
      %578 = vmatprep.subr.bf16.mxu0 0
      %579 = vmatpush1.bf16.msra.mxu0 0
      %580 = vmatprep.subr.bf16.mxu0 0
      %581 = vmatpush1.bf16.msra.mxu0 0
      %582 = vmatprep.subr.bf16.mxu0 0
      %583 = vmatpush1.bf16.msra.mxu0 0
      %584 = vmatprep.subr.bf16.mxu0 0
      %585 = vmatpush1.bf16.msra.mxu0 0
      %586 = vmatprep.subr.bf16.mxu0 0
      %587 = vmatpush1.bf16.msra.mxu0 0
      %588 = vmatprep.subr.bf16.mxu0 0
      %589 = vmatpush1.bf16.msra.mxu0 %v560
      %590 = vmatprep.subr.bf16.mxu0 0
      %591 = vmatpush1.bf16.msra.mxu0 %v559
      %592 = vmatprep.subr.bf16.mxu0 0
      %593 = vmatpush2.bf16.msra.mxu0 0
      %594 = vmatprep.subr.bf16.mxu0 0
      %595 = vmatpush2.bf16.msra.mxu0 0
      %596 = vmatprep.subr.bf16.mxu0 0
      %597 = vmatpush2.bf16.msra.mxu0 0
      %598 = vmatprep.subr.bf16.mxu0 0
      %599 = vmatpush2.bf16.msra.mxu0 0
      %600 = vmatprep.subr.bf16.mxu0 0
      %601 = vmatpush2.bf16.msra.mxu0 0
      %602 = vmatprep.subr.bf16.mxu0 0
      %603 = vmatpush2.bf16.msra.mxu0 0
      %604 = vmatprep.subr.bf16.mxu0 0
      %605 = vmatpush2.bf16.msra.mxu0 0
      %606 = vmatprep.subr.bf16.mxu0 0
      %607 = vmatpush2.bf16.msra.mxu0 0
      %608 = vmatprep.mubr.bf16.mxu0 0
      %609 = vmatmul.mubr.bf16.gmra.mxu0 %v565
      %v610 = vpop.f32.mrf.mxu0
      %v611 = vadd.f32 %v549, %v610
      %v612 = vpop.f32.mrf.mxu0
      %v613 = vpop.f32.mrf.mxu0
      %v614 = vadd.f32 %v549, %v613
      %v615 = vpop.f32.mrf.mxu0
      %616 = vmatprep.mubr.bf16.mxu0 0
      %617 = vmatmul.mubr.bf16.gmra.mxu0 %v568
      %v618 = vpop.f32.mrf.mxu0
      %v619 = vadd.f32 %v549, %v618
      %v620 = vpop.f32.mrf.mxu0
      %v621 = vpop.f32.mrf.mxu0
      %v622 = vadd.f32 %v549, %v621
      %v623 = vpop.f32.mrf.mxu0
      %624 = vmatprep.mubr.bf16.mxu0 0
      %625 = vmatmul.mubr.bf16.gmra.mxu0 %v571
      %v626 = vpop.f32.mrf.mxu0
      %v627 = vadd.f32 %v549, %v626
      %v628 = vpop.f32.mrf.mxu0
      %v629 = vpop.f32.mrf.mxu0
      %v630 = vadd.f32 %v549, %v629
      %v631 = vpop.f32.mrf.mxu0
      %632 = vmatprep.mubr.bf16.mxu0 0
      %633 = vmatmul.mubr.bf16.gmra.mxu0 %v574
      %v634 = vpop.f32.mrf.mxu0
      %v635 = vadd.f32 %v549, %v634
      %v636 = vpop.f32.mrf.mxu0
      %v637 = vpop.f32.mrf.mxu0
      %v638 = vadd.f32 %v549, %v637
      %v639 = vpop.f32.mrf.mxu0
      %640 = vdwg.mxu0
      %v641 = vmax.f32 %v611, 0.0
      %v642 = vmax.f32 %v614, 0.0
      %v643 = vmax.f32 %v619, 0.0
      %v644 = vmax.f32 %v622, 0.0
      %v645 = vmax.f32 %v627, 0.0
      %v646 = vmax.f32 %v630, 0.0
      %v647 = vmax.f32 %v635, 0.0
      %v648 = vmax.f32 %v638, 0.0
      %vm649 = vcmask 523264
      %650 = vst.msk [vmem:[%s224] sm:$0xff] %vm649, %v641
      %651 = vst.msk [vmem:[%s224 + $0x8] sm:$0xff] %vm649, %v642
      %652 = vst.msk [vmem:[%s224 + $0x10] sm:$0xff] %vm649, %v643
      %653 = vst.msk [vmem:[%s224 + $0x18] sm:$0xff] %vm649, %v644
      %654 = vst.msk [vmem:[%s224 + $0x20] sm:$0xff] %vm649, %v645
      %655 = vst.msk [vmem:[%s224 + $0x28] sm:$0xff] %vm649, %v646
      %656 = vst.msk [vmem:[%s224 + $0x30] sm:$0xff] %vm649, %v647
      %657 = vst.msk [vmem:[%s224 + $0x38] sm:$0xff] %vm649, %v648
      %p658 = scmp.lt.s32.totalorder %s16, 1
      %s659 = scalar_select %p658, %s16, 1
      %s660 = smul.addr %s659, 8
      %s661 = smul.addr %s660, 8
      %s662 = scalar_lea.vmem %s5, %s661
      // Predicated region
      $region41: #{mobilenet_forward.6} parent=39 // pred_check
        %p663 = pneg %p144
      $region42: #{mobilenet_forward.6} parent=39 // pred_check_branch
        %665 = sbr.rel (%p663) target = $region44
      $region43: #{mobilenet_forward.6} parent=39 // pred_region
        _
      $region44: #{mobilenet_forward.6} parent=39 // pred_fallthru
        _
    $region40: #{mobilenet_forward.6} parent=5 // pred_fallthru
      _
    %p666 = scmp.le.s32.totalorder 2, %s11
    // Predicated region
    $region45: #{mobilenet_forward.6} parent=5 // pred_check
      %p667 = pneg %p666
    $region46: #{mobilenet_forward.6} parent=5 // pred_check_branch
      %669 = sbr.rel (%p667) target = $region48
    $region47: #{mobilenet_forward.6} parent=5 // pred_region
      %s670 = ssub.s32 %s11, 2
      // Predicated region
      $region49: #{mobilenet_forward.6} parent=47 // pred_check
        %p671 = pneg %p150
      $region50: #{mobilenet_forward.6} parent=47 // pred_check_branch
        %673 = sbr.rel (%p671) target = $region52
      $region51: #{mobilenet_forward.6} parent=47 // pred_region
        %p674 = scmp.lt.s32.totalorder %s17, 1
        %s675 = scalar_select %p674, %s17, 1
        %s676 = smul.addr %s675, 8
        %s677 = smul.addr %s676, 8
        %s678 = scalar_lea.vmem %s5, %s677
      $region52: #{mobilenet_forward.6} parent=47 // pred_fallthru
        _
    $region48: #{mobilenet_forward.6} parent=5 // pred_fallthru
      _
  $region6: #{mobilenet_forward.6} parent=0 // loop_footer
    %s15 = sadd.s32 1, %s11
  $region7: #{mobilenet_forward.6} parent=0 // loop_footer_branch
    %10 = sbr.rel target = $region3
  $region8: #{mobilenet_forward.6} parent=0 // loop_exit
    _

// kernel: mobilenet_forward.7
$region0: #{mobilenet_forward.7}
  #allocation0 [shape = 'u32[]', space=smem, size = 0x4, offset = 0x4, fixed_abs, tag = 'smem constant byte address 0x4 - core index']
  #allocation1 [shape = 'u32[144,128]{1,0:T(1,128)}', space=vmem, size = 0x12000, scoped, tag = 'internal scratch']
  %s0 = inlined_call_operand.vmem [shape: f32[2,9,16,64], index: 0, kind: input, shape index: {}]
  %s1 = inlined_call_operand.vmem [shape: f32[9,1,64], index: 1, kind: input, shape index: {}]
  %s2 = inlined_call_operand.vmem [shape: f32[1,64], index: 2, kind: input, shape index: {}]
  %s3 = inlined_call_operand.vmem [shape: bf16[64,128], index: 3, kind: input, shape index: {}]
  %s4 = inlined_call_operand.vmem [shape: f32[1,128], index: 4, kind: input, shape index: {}]
  %s5 = inlined_call_operand.vmem [shape: f32[2,16,128], index: 5, kind: output, shape index: {}]
  %s6 = sld [smem:[#allocation0]]
  $region53: #{mobilenet_forward.7} parent=0
    _
  %s8 = ssub.s32 1, %s6
  %s9 = scalar_select 0, %s8, %s6
  loop: start=0, step=1, limit=4
  $region2: #{mobilenet_forward.7} parent=0 // loop_pre_header
    _
  $region3: #{mobilenet_forward.7} parent=0 // loop_header
    %s11 = sphi 0, %s15
    %p12 = scmp.ge.s32.totalorder %s11, 4
    %s21 = sphi 0, %s23
    %s24 = sphi 0, %s21
    %s25 = sphi 0, %s24
    %s41 = sphi 0, %s25
    %s45 = sphi 0, %s45
    %s47 = sphi 0, %s45
    %s48 = sphi 0, %s47
    %s62 = sphi 0, %s48
    %s66 = sphi 0, %s66
    %s68 = sphi 0, %s66
    %s69 = sphi 0, %s68
    %s83 = sphi 0, %s69
    %s87 = sphi 0, %s87
    %s89 = sphi 0, %s87
    %s90 = sphi 0, %s89
    %s104 = sphi 0, %s90
    %s108 = sphi 0, %s108
    %s110 = sphi 0, %s108
    %s111 = sphi 0, %s110
    %s125 = sphi 0, %s111
    %s131 = sphi 0, %s133
    %s134 = sphi 0, %s131
    %s135 = sphi 0, %s134
    %s151 = sphi 0, %s135
  $region4: #{mobilenet_forward.7} parent=0 // loop_header_branch
    %14 = sbr.rel (%p12) target = $region8
  $region5: #{mobilenet_forward.7} parent=0 // loop_body
    %s16 = ssub.s32 %s11, 1
    %s17 = ssub.s32 %s11, 2
    %s18 = sadd.s32 %s11, 1
    %s19 = ssub.s32 %s11, %s18
    %p20 = scmp.eq.s32.totalorder %s19, 0
    %s22 = sadd.s32 %s21, 1
    %s23 = scalar_select %p20, %s21, %s22
    %p26 = pneg %p20
    %p27 = scmp.eq.s32.totalorder %s11, 1
    %p28 = por %p26, %p27
    %p29 = scmp.ne.s32.totalorder %s21, %s24
    %p30 = scmp.eq.s32.totalorder %s11, 0
    %p31 = por %p29, %p30
    %p32 = scmp.ne.s32.totalorder %s21, %s24
    %p33 = scmp.eq.s32.totalorder %s16, 1
    %p34 = por %p32, %p33
    %p35 = scmp.ne.s32.totalorder %s24, %s25
    %p36 = scmp.eq.s32.totalorder %s16, 0
    %p37 = por %p35, %p36
    %p38 = scmp.ne.s32.totalorder %s24, %s25
    %p39 = scmp.eq.s32.totalorder %s17, 1
    %p40 = por %p38, %p39
    %p42 = scmp.ne.s32.totalorder %s25, %s41
    %p43 = scmp.eq.s32.totalorder %s17, 0
    %p44 = por %p42, %p43
    %s46 = sadd.s32 %s45, 1
    %p49 = scmp.eq.s32.totalorder %s11, 1
    %p50 = scmp.ne.s32.totalorder %s45, %s47
    %p51 = scmp.eq.s32.totalorder %s11, 0
    %p52 = por %p50, %p51
    %p53 = scmp.ne.s32.totalorder %s45, %s47
    %p54 = scmp.eq.s32.totalorder %s16, 1
    %p55 = por %p53, %p54
    %p56 = scmp.ne.s32.totalorder %s47, %s48
    %p57 = scmp.eq.s32.totalorder %s16, 0
    %p58 = por %p56, %p57
    %p59 = scmp.ne.s32.totalorder %s47, %s48
    %p60 = scmp.eq.s32.totalorder %s17, 1
    %p61 = por %p59, %p60
    %p63 = scmp.ne.s32.totalorder %s48, %s62
    %p64 = scmp.eq.s32.totalorder %s17, 0
    %p65 = por %p63, %p64
    %s67 = sadd.s32 %s66, 1
    %p70 = scmp.eq.s32.totalorder %s11, 1
    %p71 = scmp.ne.s32.totalorder %s66, %s68
    %p72 = scmp.eq.s32.totalorder %s11, 0
    %p73 = por %p71, %p72
    %p74 = scmp.ne.s32.totalorder %s66, %s68
    %p75 = scmp.eq.s32.totalorder %s16, 1
    %p76 = por %p74, %p75
    %p77 = scmp.ne.s32.totalorder %s68, %s69
    %p78 = scmp.eq.s32.totalorder %s16, 0
    %p79 = por %p77, %p78
    %p80 = scmp.ne.s32.totalorder %s68, %s69
    %p81 = scmp.eq.s32.totalorder %s17, 1
    %p82 = por %p80, %p81
    %p84 = scmp.ne.s32.totalorder %s69, %s83
    %p85 = scmp.eq.s32.totalorder %s17, 0
    %p86 = por %p84, %p85
    %s88 = sadd.s32 %s87, 1
    %p91 = scmp.eq.s32.totalorder %s11, 1
    %p92 = scmp.ne.s32.totalorder %s87, %s89
    %p93 = scmp.eq.s32.totalorder %s11, 0
    %p94 = por %p92, %p93
    %p95 = scmp.ne.s32.totalorder %s87, %s89
    %p96 = scmp.eq.s32.totalorder %s16, 1
    %p97 = por %p95, %p96
    %p98 = scmp.ne.s32.totalorder %s89, %s90
    %p99 = scmp.eq.s32.totalorder %s16, 0
    %p100 = por %p98, %p99
    %p101 = scmp.ne.s32.totalorder %s89, %s90
    %p102 = scmp.eq.s32.totalorder %s17, 1
    %p103 = por %p101, %p102
    %p105 = scmp.ne.s32.totalorder %s90, %s104
    %p106 = scmp.eq.s32.totalorder %s17, 0
    %p107 = por %p105, %p106
    %s109 = sadd.s32 %s108, 1
    %p112 = scmp.eq.s32.totalorder %s11, 1
    %p113 = scmp.ne.s32.totalorder %s108, %s110
    %p114 = scmp.eq.s32.totalorder %s11, 0
    %p115 = por %p113, %p114
    %p116 = scmp.ne.s32.totalorder %s108, %s110
    %p117 = scmp.eq.s32.totalorder %s16, 1
    %p118 = por %p116, %p117
    %p119 = scmp.ne.s32.totalorder %s110, %s111
    %p120 = scmp.eq.s32.totalorder %s16, 0
    %p121 = por %p119, %p120
    %p122 = scmp.ne.s32.totalorder %s110, %s111
    %p123 = scmp.eq.s32.totalorder %s17, 1
    %p124 = por %p122, %p123
    %p126 = scmp.ne.s32.totalorder %s111, %s125
    %p127 = scmp.eq.s32.totalorder %s17, 0
    %p128 = por %p126, %p127
    %s129 = ssub.s32 %s11, %s18
    %p130 = scmp.eq.s32.totalorder %s129, 0
    %s132 = sadd.s32 %s131, 1
    %s133 = scalar_select %p130, %s131, %s132
    %p136 = pneg %p130
    %p137 = scmp.eq.s32.totalorder %s11, 1
    %p138 = por %p136, %p137
    %p139 = scmp.ne.s32.totalorder %s131, %s134
    %p140 = scmp.eq.s32.totalorder %s11, 0
    %p141 = por %p139, %p140
    %p142 = scmp.ne.s32.totalorder %s131, %s134
    %p143 = scmp.eq.s32.totalorder %s16, 1
    %p144 = por %p142, %p143
    %p145 = scmp.ne.s32.totalorder %s134, %s135
    %p146 = scmp.eq.s32.totalorder %s16, 0
    %p147 = por %p145, %p146
    %p148 = scmp.ne.s32.totalorder %s134, %s135
    %p149 = scmp.eq.s32.totalorder %s17, 1
    %p150 = por %p148, %p149
    %p152 = scmp.ne.s32.totalorder %s135, %s151
    %p153 = scmp.eq.s32.totalorder %s17, 0
    %p154 = por %p152, %p153
    %p155 = scmp.le.s32.totalorder 1, %s11
    %p156 = scmp.lt.s32.totalorder %s11, 3
    %p157 = pnand %p155, %p156
    %p158 = pneg %p157
    // Predicated region
    $region9: #{mobilenet_forward.7} parent=5 // pred_check
      _
    $region10: #{mobilenet_forward.7} parent=5 // pred_check_branch
      %160 = sbr.rel (%p157) target = $region12
    $region11: #{mobilenet_forward.7} parent=5 // pred_region
      %s161 = ssub.s32 %s11, 1
      // Predicated region
      $region13: #{mobilenet_forward.7} parent=11 // pred_check
        %p162 = pneg %p58
      $region14: #{mobilenet_forward.7} parent=11 // pred_check_branch
        %164 = sbr.rel (%p162) target = $region16
      $region15: #{mobilenet_forward.7} parent=11 // pred_region
        _
      $region16: #{mobilenet_forward.7} parent=11 // pred_fallthru
        _
      // Predicated region
      $region17: #{mobilenet_forward.7} parent=11 // pred_check
        %p165 = pneg %p79
      $region18: #{mobilenet_forward.7} parent=11 // pred_check_branch
        %167 = sbr.rel (%p165) target = $region20
      $region19: #{mobilenet_forward.7} parent=11 // pred_region
        _
      $region20: #{mobilenet_forward.7} parent=11 // pred_fallthru
        _
      // Predicated region
      $region21: #{mobilenet_forward.7} parent=11 // pred_check
        %p168 = pneg %p100
      $region22: #{mobilenet_forward.7} parent=11 // pred_check_branch
        %170 = sbr.rel (%p168) target = $region24
      $region23: #{mobilenet_forward.7} parent=11 // pred_region
        _
      $region24: #{mobilenet_forward.7} parent=11 // pred_fallthru
        _
      // Predicated region
      $region25: #{mobilenet_forward.7} parent=11 // pred_check
        %p171 = pneg %p121
      $region26: #{mobilenet_forward.7} parent=11 // pred_check_branch
        %173 = sbr.rel (%p171) target = $region28
      $region27: #{mobilenet_forward.7} parent=11 // pred_region
        _
      $region28: #{mobilenet_forward.7} parent=11 // pred_fallthru
        _
    $region12: #{mobilenet_forward.7} parent=5 // pred_fallthru
      _
    %p174 = scmp.lt.s32.totalorder %s11, 2
    // Predicated region
    $region29: #{mobilenet_forward.7} parent=5 // pred_check
      %p175 = pneg %p174
    $region30: #{mobilenet_forward.7} parent=5 // pred_check_branch
      %177 = sbr.rel (%p175) target = $region32
    $region31: #{mobilenet_forward.7} parent=5 // pred_region
      // Predicated region
      $region33: #{mobilenet_forward.7} parent=31 // pred_check
        %p178 = pneg %p31
      $region34: #{mobilenet_forward.7} parent=31 // pred_check_branch
        %180 = sbr.rel (%p178) target = $region36
      $region35: #{mobilenet_forward.7} parent=31 // pred_region
        %p181 = scmp.lt.s32.totalorder %s11, 1
        %s182 = scalar_select %p181, %s11, 1
        %s183 = smul.addr %s182, 18
        %s184 = smul.addr %s183, 8
        %s185 = scalar_lea.vmem %s0, %s184
      $region36: #{mobilenet_forward.7} parent=31 // pred_fallthru
        _
    $region32: #{mobilenet_forward.7} parent=5 // pred_fallthru
      _
    %p186 = scmp.le.s32.totalorder 1, %s11
    %p187 = scmp.lt.s32.totalorder %s11, 3
    %p188 = pnand %p186, %p187
    %p189 = pneg %p188
    // Predicated region
    $region37: #{mobilenet_forward.7} parent=5 // pred_check
      _
    $region38: #{mobilenet_forward.7} parent=5 // pred_check_branch
      %191 = sbr.rel (%p188) target = $region40
    $region39: #{mobilenet_forward.7} parent=5 // pred_region
      %s192 = ssub.s32 %s11, 1
      %p193 = scmp.lt.s32.totalorder %s16, 1
      %s194 = scalar_select %p193, %s16, 1
      %s195 = smul.addr %s194, 18
      %s196 = smul.addr %s195, 8
      %s197 = scalar_lea.vmem %s0, %s196
      %p198 = pneg %p37
      %p199 = pneg %p34
      %p200 = pneg %p58
      %p201 = pneg %p55
      %p202 = pneg %p79
      %p203 = pneg %p76
      %p204 = pneg %p100
      %p205 = pneg %p97
      %p206 = pneg %p121
      %p207 = pneg %p118
      %p208 = pneg %p147
      %p209 = pneg %p144
      %p210 = scmp.lt.s32.totalorder %s16, 1
      %s211 = scalar_select %p210, %s16, 1
      %s212 = smul.addr %s211, 2
      %s213 = smul.addr %s212, 8
      %s214 = scalar_lea.vmem %s5, %s213
      %p215 = scmp.lt.s32.totalorder %s16, 1
      %s216 = scalar_select %p215, %s16, 1
      %s217 = smul.addr %s216, 18
      %s218 = smul.addr %s217, 8
      %s219 = scalar_lea.vmem %s0, %s218
      %p220 = scmp.lt.s32.totalorder %s16, 1
      %s221 = scalar_select %p220, %s16, 1
      %s222 = smul.addr %s221, 2
      %s223 = smul.addr %s222, 8
      %s224 = scalar_lea.vmem %s5, %s223
      %v226 = vld [vmem:[%s219] sm:$0xff]
      %v227 = vld [vmem:[%s219 + $0x8] sm:$0xff]
      %v228 = vld [vmem:[%s1] sm:$0x1]
      %v230 = vlaneseq
      %v231 = vshrl.u32 %v230, 7
      %v232 = vsub.s32 0, %v231
      %v233 = vrot.slane %v228, %v232
      %v235 = vmul.f32 %v226, %v233
      %v236 = vmul.f32 %v227, %v233
      %s237 = scalar_lea.vmem %s219, 16
      %v238 = vld [vmem:[%s237] sm:$0xff]
      %v239 = vld [vmem:[%s237 + $0x8] sm:$0xff]
      %s240 = scalar_lea.vmem %s1, 1
      %v241 = vld [vmem:[%s240] sm:$0x1]
      %v243 = vlaneseq
      %v244 = vshrl.u32 %v243, 7
      %v245 = vsub.s32 0, %v244
      %v246 = vrot.slane %v241, %v245
      %v248 = vmul.f32 %v238, %v246
      %v249 = vmul.f32 %v239, %v246
      %v250 = vadd.f32 %v235, %v248
      %v251 = vadd.f32 %v236, %v249
      %s252 = scalar_lea.vmem %s219, 32
      %v253 = vld [vmem:[%s252] sm:$0xff]
      %v254 = vld [vmem:[%s252 + $0x8] sm:$0xff]
      %s255 = scalar_lea.vmem %s1, 2
      %v256 = vld [vmem:[%s255] sm:$0x1]
      %v258 = vlaneseq
      %v259 = vshrl.u32 %v258, 7
      %v260 = vsub.s32 0, %v259
      %v261 = vrot.slane %v256, %v260
      %v263 = vmul.f32 %v253, %v261
      %v264 = vmul.f32 %v254, %v261
      %v265 = vadd.f32 %v250, %v263
      %v266 = vadd.f32 %v251, %v264
      %s267 = scalar_lea.vmem %s219, 48
      %v268 = vld [vmem:[%s267] sm:$0xff]
      %v269 = vld [vmem:[%s267 + $0x8] sm:$0xff]
      %s270 = scalar_lea.vmem %s1, 3
      %v271 = vld [vmem:[%s270] sm:$0x1]
      %v273 = vlaneseq
      %v274 = vshrl.u32 %v273, 7
      %v275 = vsub.s32 0, %v274
      %v276 = vrot.slane %v271, %v275
      %v278 = vmul.f32 %v268, %v276
      %v279 = vmul.f32 %v269, %v276
      %v280 = vadd.f32 %v265, %v278
      %v281 = vadd.f32 %v266, %v279
      %s282 = scalar_lea.vmem %s219, 64
      %v283 = vld [vmem:[%s282] sm:$0xff]
      %v284 = vld [vmem:[%s282 + $0x8] sm:$0xff]
      %s285 = scalar_lea.vmem %s1, 4
      %v286 = vld [vmem:[%s285] sm:$0x1]
      %v288 = vlaneseq
      %v289 = vshrl.u32 %v288, 7
      %v290 = vsub.s32 0, %v289
      %v291 = vrot.slane %v286, %v290
      %v293 = vmul.f32 %v283, %v291
      %v294 = vmul.f32 %v284, %v291
      %v295 = vadd.f32 %v280, %v293
      %v296 = vadd.f32 %v281, %v294
      %s297 = scalar_lea.vmem %s219, 80
      %v298 = vld [vmem:[%s297] sm:$0xff]
      %v299 = vld [vmem:[%s297 + $0x8] sm:$0xff]
      %s300 = scalar_lea.vmem %s1, 5
      %v301 = vld [vmem:[%s300] sm:$0x1]
      %v303 = vlaneseq
      %v304 = vshrl.u32 %v303, 7
      %v305 = vsub.s32 0, %v304
      %v306 = vrot.slane %v301, %v305
      %v308 = vmul.f32 %v298, %v306
      %v309 = vmul.f32 %v299, %v306
      %v310 = vadd.f32 %v295, %v308
      %v311 = vadd.f32 %v296, %v309
      %s312 = scalar_lea.vmem %s219, 96
      %v313 = vld [vmem:[%s312] sm:$0xff]
      %v314 = vld [vmem:[%s312 + $0x8] sm:$0xff]
      %s315 = scalar_lea.vmem %s1, 6
      %v316 = vld [vmem:[%s315] sm:$0x1]
      %v318 = vlaneseq
      %v319 = vshrl.u32 %v318, 7
      %v320 = vsub.s32 0, %v319
      %v321 = vrot.slane %v316, %v320
      %v323 = vmul.f32 %v313, %v321
      %v324 = vmul.f32 %v314, %v321
      %v325 = vadd.f32 %v310, %v323
      %v326 = vadd.f32 %v311, %v324
      %s327 = scalar_lea.vmem %s219, 112
      %v328 = vld [vmem:[%s327] sm:$0xff]
      %v329 = vld [vmem:[%s327 + $0x8] sm:$0xff]
      %s330 = scalar_lea.vmem %s1, 7
      %v331 = vld [vmem:[%s330] sm:$0x1]
      %v333 = vlaneseq
      %v334 = vshrl.u32 %v333, 7
      %v335 = vsub.s32 0, %v334
      %v336 = vrot.slane %v331, %v335
      %v338 = vmul.f32 %v328, %v336
      %v339 = vmul.f32 %v329, %v336
      %v340 = vadd.f32 %v325, %v338
      %v341 = vadd.f32 %v326, %v339
      %s342 = scalar_lea.vmem %s219, 128
      %v343 = vld [vmem:[%s342] sm:$0xff]
      %v344 = vld [vmem:[%s342 + $0x8] sm:$0xff]
      %s345 = scalar_lea.vmem %s1, 8
      %v346 = vld [vmem:[%s345] sm:$0x1]
      %v348 = vlaneseq
      %v349 = vshrl.u32 %v348, 7
      %v350 = vsub.s32 0, %v349
      %v351 = vrot.slane %v346, %v350
      %v353 = vmul.f32 %v343, %v351
      %v354 = vmul.f32 %v344, %v351
      %v355 = vadd.f32 %v340, %v353
      %v356 = vadd.f32 %v341, %v354
      %v357 = vld [vmem:[%s2] sm:$0x1]
      %v359 = vlaneseq
      %v360 = vshrl.u32 %v359, 7
      %v361 = vsub.s32 0, %v360
      %v362 = vrot.slane %v357, %v361
      %v364 = vadd.f32 %v355, %v362
      %v365 = vadd.f32 %v356, %v362
      %v366 = vmax.f32 %v364, 0.0
      %v367 = vmax.f32 %v365, 0.0
      %v368 = vpack.c.bf16 %v367, %v366
      %v369 = vld [vmem:[%s3] sm:$0xf]
      %v370 = vld [vmem:[%s3 + $0x4] sm:$0xf]
      %v371 = vld [vmem:[%s3 + $0x8] sm:$0xf]
      %v372 = vld [vmem:[%s3 + $0xc] sm:$0xf]
      %v373 = vld [vmem:[%s3 + $0x10] sm:$0xf]
      %v374 = vld [vmem:[%s3 + $0x14] sm:$0xf]
      %v375 = vld [vmem:[%s3 + $0x18] sm:$0xf]
      %v376 = vld [vmem:[%s3 + $0x1c] sm:$0xf]
      %v377 = vld [vmem:[%s4] sm:$0x1]
      %v379 = vlaneseq
      %v380 = vshrl.u32 %v379, 7
      %v381 = vsub.s32 0, %v380
      %v382 = vrot.slane %v377, %v381
      %v392 = vunpack.c.l.b16 %v369
      %v393 = vunpack.c.l.b16 %v370
      %v394 = vunpack.c.l.b16 %v371
      %v395 = vunpack.c.l.b16 %v372
      %v396 = vunpack.c.l.b16 %v373
      %v397 = vunpack.c.l.b16 %v374
      %v398 = vunpack.c.l.b16 %v375
      %v399 = vunpack.c.l.b16 %v376
      %v400 = vpack.c.b16 %v393, %v392
      %v401 = vpack.c.b16 %v395, %v394
      %v402 = vpack.c.b16 %v397, %v396
      %v403 = vpack.c.b16 %v399, %v398
      %vm408 = vcmask 523264
      %v410 = vsel %vm408, %v368, 0
      %412 = vmatprep.subr.bf16.mxu0 0
      %413 = vmatpush1.bf16.msra.mxu0 0
      %414 = vmatprep.subr.bf16.mxu0 0
      %415 = vmatpush1.bf16.msra.mxu0 0
      %416 = vmatprep.subr.bf16.mxu0 0
      %417 = vmatpush1.bf16.msra.mxu0 0
      %418 = vmatprep.subr.bf16.mxu0 0
      %419 = vmatpush1.bf16.msra.mxu0 0
      %420 = vmatprep.subr.bf16.mxu0 0
      %421 = vmatpush1.bf16.msra.mxu0 %v403
      %422 = vmatprep.subr.bf16.mxu0 0
      %423 = vmatpush1.bf16.msra.mxu0 %v402
      %424 = vmatprep.subr.bf16.mxu0 0
      %425 = vmatpush1.bf16.msra.mxu0 %v401
      %426 = vmatprep.subr.bf16.mxu0 0
      %427 = vmatpush1.bf16.msra.mxu0 %v400
      %428 = vmatprep.subr.bf16.mxu0 0
      %429 = vmatpush2.bf16.msra.mxu0 0
      %430 = vmatprep.subr.bf16.mxu0 0
      %431 = vmatpush2.bf16.msra.mxu0 0
      %432 = vmatprep.subr.bf16.mxu0 0
      %433 = vmatpush2.bf16.msra.mxu0 0
      %434 = vmatprep.subr.bf16.mxu0 0
      %435 = vmatpush2.bf16.msra.mxu0 0
      %436 = vmatprep.subr.bf16.mxu0 0
      %437 = vmatpush2.bf16.msra.mxu0 0
      %438 = vmatprep.subr.bf16.mxu0 0
      %439 = vmatpush2.bf16.msra.mxu0 0
      %440 = vmatprep.subr.bf16.mxu0 0
      %441 = vmatpush2.bf16.msra.mxu0 0
      %442 = vmatprep.subr.bf16.mxu0 0
      %443 = vmatpush2.bf16.msra.mxu0 0
      %444 = vmatprep.mubr.bf16.mxu0 0
      %445 = vmatmul.mubr.bf16.gmra.mxu0 %v410
      %v446 = vpop.f32.mrf.mxu0
      %v447 = vadd.f32 %v382, %v446
      %v448 = vpop.f32.mrf.mxu0
      %v449 = vpop.f32.mrf.mxu0
      %v450 = vadd.f32 %v382, %v449
      %v451 = vpop.f32.mrf.mxu0
      %452 = vdwg.mxu0
      %v453 = vmax.f32 %v447, 0.0
      %v454 = vmax.f32 %v450, 0.0
      %455 = vst [vmem:[%s224] sm:$0xff] %v453
      %456 = vst [vmem:[%s224 + $0x8] sm:$0xff] %v454
      %p457 = scmp.lt.s32.totalorder %s16, 1
      %s458 = scalar_select %p457, %s16, 1
      %s459 = smul.addr %s458, 2
      %s460 = smul.addr %s459, 8
      %s461 = scalar_lea.vmem %s5, %s460
      // Predicated region
      $region41: #{mobilenet_forward.7} parent=39 // pred_check
        %p462 = pneg %p144
      $region42: #{mobilenet_forward.7} parent=39 // pred_check_branch
        %464 = sbr.rel (%p462) target = $region44
      $region43: #{mobilenet_forward.7} parent=39 // pred_region
        _
      $region44: #{mobilenet_forward.7} parent=39 // pred_fallthru
        _
    $region40: #{mobilenet_forward.7} parent=5 // pred_fallthru
      _
    %p465 = scmp.le.s32.totalorder 2, %s11
    // Predicated region
    $region45: #{mobilenet_forward.7} parent=5 // pred_check
      %p466 = pneg %p465
    $region46: #{mobilenet_forward.7} parent=5 // pred_check_branch
      %468 = sbr.rel (%p466) target = $region48
    $region47: #{mobilenet_forward.7} parent=5 // pred_region
      %s469 = ssub.s32 %s11, 2
      // Predicated region
      $region49: #{mobilenet_forward.7} parent=47 // pred_check
        %p470 = pneg %p150
      $region50: #{mobilenet_forward.7} parent=47 // pred_check_branch
        %472 = sbr.rel (%p470) target = $region52
      $region51: #{mobilenet_forward.7} parent=47 // pred_region
        %p473 = scmp.lt.s32.totalorder %s17, 1
        %s474 = scalar_select %p473, %s17, 1
        %s475 = smul.addr %s474, 2
        %s476 = smul.addr %s475, 8
        %s477 = scalar_lea.vmem %s5, %s476
      $region52: #{mobilenet_forward.7} parent=47 // pred_fallthru
        _
    $region48: #{mobilenet_forward.7} parent=5 // pred_fallthru
      _
  $region6: #{mobilenet_forward.7} parent=0 // loop_footer
    %s15 = sadd.s32 1, %s11
  $region7: #{mobilenet_forward.7} parent=0 // loop_footer_branch
    %10 = sbr.rel target = $region3
  $region8: #{mobilenet_forward.7} parent=0 // loop_exit
    _

// kernel: mobilenet_forward.8
$region0: #{mobilenet_forward.8}
  #allocation0 [shape = 'u32[]', space=smem, size = 0x4, offset = 0x4, fixed_abs, tag = 'smem constant byte address 0x4 - core index']
  #allocation1 [shape = 'u32[144,128]{1,0:T(1,128)}', space=vmem, size = 0x12000, scoped, tag = 'internal scratch']
  %s0 = inlined_call_operand.vmem [shape: f32[2,9,4,128], index: 0, kind: input, shape index: {}]
  %s1 = inlined_call_operand.vmem [shape: f32[9,1,128], index: 1, kind: input, shape index: {}]
  %s2 = inlined_call_operand.vmem [shape: f32[1,128], index: 2, kind: input, shape index: {}]
  %s3 = inlined_call_operand.vmem [shape: bf16[128,256], index: 3, kind: input, shape index: {}]
  %s4 = inlined_call_operand.vmem [shape: f32[1,256], index: 4, kind: input, shape index: {}]
  %s5 = inlined_call_operand.vmem [shape: f32[2,4,256], index: 5, kind: output, shape index: {}]
  %s6 = sld [smem:[#allocation0]]
  $region53: #{mobilenet_forward.8} parent=0
    _
  %s8 = ssub.s32 1, %s6
  %s9 = scalar_select 0, %s8, %s6
  loop: start=0, step=1, limit=4
  $region2: #{mobilenet_forward.8} parent=0 // loop_pre_header
    _
  $region3: #{mobilenet_forward.8} parent=0 // loop_header
    %s11 = sphi 0, %s15
    %p12 = scmp.ge.s32.totalorder %s11, 4
    %s21 = sphi 0, %s23
    %s24 = sphi 0, %s21
    %s25 = sphi 0, %s24
    %s41 = sphi 0, %s25
    %s45 = sphi 0, %s45
    %s47 = sphi 0, %s45
    %s48 = sphi 0, %s47
    %s62 = sphi 0, %s48
    %s66 = sphi 0, %s66
    %s68 = sphi 0, %s66
    %s69 = sphi 0, %s68
    %s83 = sphi 0, %s69
    %s87 = sphi 0, %s87
    %s89 = sphi 0, %s87
    %s90 = sphi 0, %s89
    %s104 = sphi 0, %s90
    %s108 = sphi 0, %s108
    %s110 = sphi 0, %s108
    %s111 = sphi 0, %s110
    %s125 = sphi 0, %s111
    %s131 = sphi 0, %s133
    %s134 = sphi 0, %s131
    %s135 = sphi 0, %s134
    %s151 = sphi 0, %s135
  $region4: #{mobilenet_forward.8} parent=0 // loop_header_branch
    %14 = sbr.rel (%p12) target = $region8
  $region5: #{mobilenet_forward.8} parent=0 // loop_body
    %s16 = ssub.s32 %s11, 1
    %s17 = ssub.s32 %s11, 2
    %s18 = sadd.s32 %s11, 1
    %s19 = ssub.s32 %s11, %s18
    %p20 = scmp.eq.s32.totalorder %s19, 0
    %s22 = sadd.s32 %s21, 1
    %s23 = scalar_select %p20, %s21, %s22
    %p26 = pneg %p20
    %p27 = scmp.eq.s32.totalorder %s11, 1
    %p28 = por %p26, %p27
    %p29 = scmp.ne.s32.totalorder %s21, %s24
    %p30 = scmp.eq.s32.totalorder %s11, 0
    %p31 = por %p29, %p30
    %p32 = scmp.ne.s32.totalorder %s21, %s24
    %p33 = scmp.eq.s32.totalorder %s16, 1
    %p34 = por %p32, %p33
    %p35 = scmp.ne.s32.totalorder %s24, %s25
    %p36 = scmp.eq.s32.totalorder %s16, 0
    %p37 = por %p35, %p36
    %p38 = scmp.ne.s32.totalorder %s24, %s25
    %p39 = scmp.eq.s32.totalorder %s17, 1
    %p40 = por %p38, %p39
    %p42 = scmp.ne.s32.totalorder %s25, %s41
    %p43 = scmp.eq.s32.totalorder %s17, 0
    %p44 = por %p42, %p43
    %s46 = sadd.s32 %s45, 1
    %p49 = scmp.eq.s32.totalorder %s11, 1
    %p50 = scmp.ne.s32.totalorder %s45, %s47
    %p51 = scmp.eq.s32.totalorder %s11, 0
    %p52 = por %p50, %p51
    %p53 = scmp.ne.s32.totalorder %s45, %s47
    %p54 = scmp.eq.s32.totalorder %s16, 1
    %p55 = por %p53, %p54
    %p56 = scmp.ne.s32.totalorder %s47, %s48
    %p57 = scmp.eq.s32.totalorder %s16, 0
    %p58 = por %p56, %p57
    %p59 = scmp.ne.s32.totalorder %s47, %s48
    %p60 = scmp.eq.s32.totalorder %s17, 1
    %p61 = por %p59, %p60
    %p63 = scmp.ne.s32.totalorder %s48, %s62
    %p64 = scmp.eq.s32.totalorder %s17, 0
    %p65 = por %p63, %p64
    %s67 = sadd.s32 %s66, 1
    %p70 = scmp.eq.s32.totalorder %s11, 1
    %p71 = scmp.ne.s32.totalorder %s66, %s68
    %p72 = scmp.eq.s32.totalorder %s11, 0
    %p73 = por %p71, %p72
    %p74 = scmp.ne.s32.totalorder %s66, %s68
    %p75 = scmp.eq.s32.totalorder %s16, 1
    %p76 = por %p74, %p75
    %p77 = scmp.ne.s32.totalorder %s68, %s69
    %p78 = scmp.eq.s32.totalorder %s16, 0
    %p79 = por %p77, %p78
    %p80 = scmp.ne.s32.totalorder %s68, %s69
    %p81 = scmp.eq.s32.totalorder %s17, 1
    %p82 = por %p80, %p81
    %p84 = scmp.ne.s32.totalorder %s69, %s83
    %p85 = scmp.eq.s32.totalorder %s17, 0
    %p86 = por %p84, %p85
    %s88 = sadd.s32 %s87, 1
    %p91 = scmp.eq.s32.totalorder %s11, 1
    %p92 = scmp.ne.s32.totalorder %s87, %s89
    %p93 = scmp.eq.s32.totalorder %s11, 0
    %p94 = por %p92, %p93
    %p95 = scmp.ne.s32.totalorder %s87, %s89
    %p96 = scmp.eq.s32.totalorder %s16, 1
    %p97 = por %p95, %p96
    %p98 = scmp.ne.s32.totalorder %s89, %s90
    %p99 = scmp.eq.s32.totalorder %s16, 0
    %p100 = por %p98, %p99
    %p101 = scmp.ne.s32.totalorder %s89, %s90
    %p102 = scmp.eq.s32.totalorder %s17, 1
    %p103 = por %p101, %p102
    %p105 = scmp.ne.s32.totalorder %s90, %s104
    %p106 = scmp.eq.s32.totalorder %s17, 0
    %p107 = por %p105, %p106
    %s109 = sadd.s32 %s108, 1
    %p112 = scmp.eq.s32.totalorder %s11, 1
    %p113 = scmp.ne.s32.totalorder %s108, %s110
    %p114 = scmp.eq.s32.totalorder %s11, 0
    %p115 = por %p113, %p114
    %p116 = scmp.ne.s32.totalorder %s108, %s110
    %p117 = scmp.eq.s32.totalorder %s16, 1
    %p118 = por %p116, %p117
    %p119 = scmp.ne.s32.totalorder %s110, %s111
    %p120 = scmp.eq.s32.totalorder %s16, 0
    %p121 = por %p119, %p120
    %p122 = scmp.ne.s32.totalorder %s110, %s111
    %p123 = scmp.eq.s32.totalorder %s17, 1
    %p124 = por %p122, %p123
    %p126 = scmp.ne.s32.totalorder %s111, %s125
    %p127 = scmp.eq.s32.totalorder %s17, 0
    %p128 = por %p126, %p127
    %s129 = ssub.s32 %s11, %s18
    %p130 = scmp.eq.s32.totalorder %s129, 0
    %s132 = sadd.s32 %s131, 1
    %s133 = scalar_select %p130, %s131, %s132
    %p136 = pneg %p130
    %p137 = scmp.eq.s32.totalorder %s11, 1
    %p138 = por %p136, %p137
    %p139 = scmp.ne.s32.totalorder %s131, %s134
    %p140 = scmp.eq.s32.totalorder %s11, 0
    %p141 = por %p139, %p140
    %p142 = scmp.ne.s32.totalorder %s131, %s134
    %p143 = scmp.eq.s32.totalorder %s16, 1
    %p144 = por %p142, %p143
    %p145 = scmp.ne.s32.totalorder %s134, %s135
    %p146 = scmp.eq.s32.totalorder %s16, 0
    %p147 = por %p145, %p146
    %p148 = scmp.ne.s32.totalorder %s134, %s135
    %p149 = scmp.eq.s32.totalorder %s17, 1
    %p150 = por %p148, %p149
    %p152 = scmp.ne.s32.totalorder %s135, %s151
    %p153 = scmp.eq.s32.totalorder %s17, 0
    %p154 = por %p152, %p153
    %p155 = scmp.le.s32.totalorder 1, %s11
    %p156 = scmp.lt.s32.totalorder %s11, 3
    %p157 = pnand %p155, %p156
    %p158 = pneg %p157
    // Predicated region
    $region9: #{mobilenet_forward.8} parent=5 // pred_check
      _
    $region10: #{mobilenet_forward.8} parent=5 // pred_check_branch
      %160 = sbr.rel (%p157) target = $region12
    $region11: #{mobilenet_forward.8} parent=5 // pred_region
      %s161 = ssub.s32 %s11, 1
      // Predicated region
      $region13: #{mobilenet_forward.8} parent=11 // pred_check
        %p162 = pneg %p58
      $region14: #{mobilenet_forward.8} parent=11 // pred_check_branch
        %164 = sbr.rel (%p162) target = $region16
      $region15: #{mobilenet_forward.8} parent=11 // pred_region
        _
      $region16: #{mobilenet_forward.8} parent=11 // pred_fallthru
        _
      // Predicated region
      $region17: #{mobilenet_forward.8} parent=11 // pred_check
        %p165 = pneg %p79
      $region18: #{mobilenet_forward.8} parent=11 // pred_check_branch
        %167 = sbr.rel (%p165) target = $region20
      $region19: #{mobilenet_forward.8} parent=11 // pred_region
        _
      $region20: #{mobilenet_forward.8} parent=11 // pred_fallthru
        _
      // Predicated region
      $region21: #{mobilenet_forward.8} parent=11 // pred_check
        %p168 = pneg %p100
      $region22: #{mobilenet_forward.8} parent=11 // pred_check_branch
        %170 = sbr.rel (%p168) target = $region24
      $region23: #{mobilenet_forward.8} parent=11 // pred_region
        _
      $region24: #{mobilenet_forward.8} parent=11 // pred_fallthru
        _
      // Predicated region
      $region25: #{mobilenet_forward.8} parent=11 // pred_check
        %p171 = pneg %p121
      $region26: #{mobilenet_forward.8} parent=11 // pred_check_branch
        %173 = sbr.rel (%p171) target = $region28
      $region27: #{mobilenet_forward.8} parent=11 // pred_region
        _
      $region28: #{mobilenet_forward.8} parent=11 // pred_fallthru
        _
    $region12: #{mobilenet_forward.8} parent=5 // pred_fallthru
      _
    %p174 = scmp.lt.s32.totalorder %s11, 2
    // Predicated region
    $region29: #{mobilenet_forward.8} parent=5 // pred_check
      %p175 = pneg %p174
    $region30: #{mobilenet_forward.8} parent=5 // pred_check_branch
      %177 = sbr.rel (%p175) target = $region32
    $region31: #{mobilenet_forward.8} parent=5 // pred_region
      // Predicated region
      $region33: #{mobilenet_forward.8} parent=31 // pred_check
        %p178 = pneg %p31
      $region34: #{mobilenet_forward.8} parent=31 // pred_check_branch
        %180 = sbr.rel (%p178) target = $region36
      $region35: #{mobilenet_forward.8} parent=31 // pred_region
        %p181 = scmp.lt.s32.totalorder %s11, 1
        %s182 = scalar_select %p181, %s11, 1
        %s183 = smul.addr %s182, 9
        %s184 = smul.addr %s183, 4
        %s185 = scalar_lea.vmem %s0, %s184
      $region36: #{mobilenet_forward.8} parent=31 // pred_fallthru
        _
    $region32: #{mobilenet_forward.8} parent=5 // pred_fallthru
      _
    %p186 = scmp.le.s32.totalorder 1, %s11
    %p187 = scmp.lt.s32.totalorder %s11, 3
    %p188 = pnand %p186, %p187
    %p189 = pneg %p188
    // Predicated region
    $region37: #{mobilenet_forward.8} parent=5 // pred_check
      _
    $region38: #{mobilenet_forward.8} parent=5 // pred_check_branch
      %191 = sbr.rel (%p188) target = $region40
    $region39: #{mobilenet_forward.8} parent=5 // pred_region
      %s192 = ssub.s32 %s11, 1
      %p193 = scmp.lt.s32.totalorder %s16, 1
      %s194 = scalar_select %p193, %s16, 1
      %s195 = smul.addr %s194, 9
      %s196 = smul.addr %s195, 4
      %s197 = scalar_lea.vmem %s0, %s196
      %p198 = pneg %p37
      %p199 = pneg %p34
      %p200 = pneg %p58
      %p201 = pneg %p55
      %p202 = pneg %p79
      %p203 = pneg %p76
      %p204 = pneg %p100
      %p205 = pneg %p97
      %p206 = pneg %p121
      %p207 = pneg %p118
      %p208 = pneg %p147
      %p209 = pneg %p144
      %p210 = scmp.lt.s32.totalorder %s16, 1
      %s211 = scalar_select %p210, %s16, 1
      %s212 = smul.addr %s211, 2
      %s213 = smul.addr %s212, 4
      %s214 = scalar_lea.vmem %s5, %s213
      %p215 = scmp.lt.s32.totalorder %s16, 1
      %s216 = scalar_select %p215, %s16, 1
      %s217 = smul.addr %s216, 9
      %s218 = smul.addr %s217, 4
      %s219 = scalar_lea.vmem %s0, %s218
      %p220 = scmp.lt.s32.totalorder %s16, 1
      %s221 = scalar_select %p220, %s16, 1
      %s222 = smul.addr %s221, 2
      %s223 = smul.addr %s222, 4
      %s224 = scalar_lea.vmem %s5, %s223
      %v226 = vld [vmem:[%s219] sm:$0xf]
      %v227 = vld [vmem:[%s1] sm:$0x1]
      %v229 = vlaneseq
      %v230 = vshrl.u32 %v229, 7
      %v231 = vsub.s32 0, %v230
      %v232 = vrot.slane %v227, %v231
      %v234 = vmul.f32 %v226, %v232
      %s235 = scalar_lea.vmem %s219, 4
      %v236 = vld [vmem:[%s235] sm:$0xf]
      %s237 = scalar_lea.vmem %s1, 1
      %v238 = vld [vmem:[%s237] sm:$0x1]
      %v240 = vlaneseq
      %v241 = vshrl.u32 %v240, 7
      %v242 = vsub.s32 0, %v241
      %v243 = vrot.slane %v238, %v242
      %v245 = vmul.f32 %v236, %v243
      %v246 = vadd.f32 %v234, %v245
      %s247 = scalar_lea.vmem %s219, 8
      %v248 = vld [vmem:[%s247] sm:$0xf]
      %s249 = scalar_lea.vmem %s1, 2
      %v250 = vld [vmem:[%s249] sm:$0x1]
      %v252 = vlaneseq
      %v253 = vshrl.u32 %v252, 7
      %v254 = vsub.s32 0, %v253
      %v255 = vrot.slane %v250, %v254
      %v257 = vmul.f32 %v248, %v255
      %v258 = vadd.f32 %v246, %v257
      %s259 = scalar_lea.vmem %s219, 12
      %v260 = vld [vmem:[%s259] sm:$0xf]
      %s261 = scalar_lea.vmem %s1, 3
      %v262 = vld [vmem:[%s261] sm:$0x1]
      %v264 = vlaneseq
      %v265 = vshrl.u32 %v264, 7
      %v266 = vsub.s32 0, %v265
      %v267 = vrot.slane %v262, %v266
      %v269 = vmul.f32 %v260, %v267
      %v270 = vadd.f32 %v258, %v269
      %s271 = scalar_lea.vmem %s219, 16
      %v272 = vld [vmem:[%s271] sm:$0xf]
      %s273 = scalar_lea.vmem %s1, 4
      %v274 = vld [vmem:[%s273] sm:$0x1]
      %v276 = vlaneseq
      %v277 = vshrl.u32 %v276, 7
      %v278 = vsub.s32 0, %v277
      %v279 = vrot.slane %v274, %v278
      %v281 = vmul.f32 %v272, %v279
      %v282 = vadd.f32 %v270, %v281
      %s283 = scalar_lea.vmem %s219, 20
      %v284 = vld [vmem:[%s283] sm:$0xf]
      %s285 = scalar_lea.vmem %s1, 5
      %v286 = vld [vmem:[%s285] sm:$0x1]
      %v288 = vlaneseq
      %v289 = vshrl.u32 %v288, 7
      %v290 = vsub.s32 0, %v289
      %v291 = vrot.slane %v286, %v290
      %v293 = vmul.f32 %v284, %v291
      %v294 = vadd.f32 %v282, %v293
      %s295 = scalar_lea.vmem %s219, 24
      %v296 = vld [vmem:[%s295] sm:$0xf]
      %s297 = scalar_lea.vmem %s1, 6
      %v298 = vld [vmem:[%s297] sm:$0x1]
      %v300 = vlaneseq
      %v301 = vshrl.u32 %v300, 7
      %v302 = vsub.s32 0, %v301
      %v303 = vrot.slane %v298, %v302
      %v305 = vmul.f32 %v296, %v303
      %v306 = vadd.f32 %v294, %v305
      %s307 = scalar_lea.vmem %s219, 28
      %v308 = vld [vmem:[%s307] sm:$0xf]
      %s309 = scalar_lea.vmem %s1, 7
      %v310 = vld [vmem:[%s309] sm:$0x1]
      %v312 = vlaneseq
      %v313 = vshrl.u32 %v312, 7
      %v314 = vsub.s32 0, %v313
      %v315 = vrot.slane %v310, %v314
      %v317 = vmul.f32 %v308, %v315
      %v318 = vadd.f32 %v306, %v317
      %s319 = scalar_lea.vmem %s219, 32
      %v320 = vld [vmem:[%s319] sm:$0xf]
      %s321 = scalar_lea.vmem %s1, 8
      %v322 = vld [vmem:[%s321] sm:$0x1]
      %v324 = vlaneseq
      %v325 = vshrl.u32 %v324, 7
      %v326 = vsub.s32 0, %v325
      %v327 = vrot.slane %v322, %v326
      %v329 = vmul.f32 %v320, %v327
      %v330 = vadd.f32 %v318, %v329
      %v331 = vld [vmem:[%s2] sm:$0x1]
      %v333 = vlaneseq
      %v334 = vshrl.u32 %v333, 7
      %v335 = vsub.s32 0, %v334
      %v336 = vrot.slane %v331, %v335
      %v338 = vadd.f32 %v330, %v336
      %v339 = vmax.f32 %v338, 0.0
      %v340 = vpack.c.bf16 %v339, %v339
      %v341 = vld [vmem:[%s3] sm:$0xff]
      %v342 = vld [vmem:[%s3 + $0x8] sm:$0xff]
      %v343 = vld [vmem:[%s3 + $0x10] sm:$0xff]
      %v344 = vld [vmem:[%s3 + $0x18] sm:$0xff]
      %v345 = vld [vmem:[%s3 + $0x20] sm:$0xff]
      %v346 = vld [vmem:[%s3 + $0x28] sm:$0xff]
      %v347 = vld [vmem:[%s3 + $0x30] sm:$0xff]
      %v348 = vld [vmem:[%s3 + $0x38] sm:$0xff]
      %v349 = vld [vmem:[%s3 + $0x40] sm:$0xff]
      %v350 = vld [vmem:[%s3 + $0x48] sm:$0xff]
      %v351 = vld [vmem:[%s3 + $0x50] sm:$0xff]
      %v352 = vld [vmem:[%s3 + $0x58] sm:$0xff]
      %v353 = vld [vmem:[%s3 + $0x60] sm:$0xff]
      %v354 = vld [vmem:[%s3 + $0x68] sm:$0xff]
      %v355 = vld [vmem:[%s3 + $0x70] sm:$0xff]
      %v356 = vld [vmem:[%s3 + $0x78] sm:$0xff]
      %v357 = vld [vmem:[%s4] sm:$0x3]
      %v359 = vlaneseq
      %v360 = vshrl.u32 %v359, 7
      %v361 = vsub.s32 0, %v360
      %v362 = vrot.slane %v357, %v361
      %v363 = vlaneseq
      %v364 = vshrl.u32 %v363, 7
      %v365 = vsub.s32 1, %v364
      %v366 = vrot.slane %v357, %v365
      %v385 = vunpack.c.l.b16 %v341
      %v386 = vunpack.c.h.b16 %v341
      %v387 = vunpack.c.l.b16 %v342
      %v388 = vunpack.c.h.b16 %v342
      %v389 = vunpack.c.l.b16 %v343
      %v390 = vunpack.c.h.b16 %v343
      %v391 = vunpack.c.l.b16 %v344
      %v392 = vunpack.c.h.b16 %v344
      %v393 = vunpack.c.l.b16 %v345
      %v394 = vunpack.c.h.b16 %v345
      %v395 = vunpack.c.l.b16 %v346
      %v396 = vunpack.c.h.b16 %v346
      %v397 = vunpack.c.l.b16 %v347
      %v398 = vunpack.c.h.b16 %v347
      %v399 = vunpack.c.l.b16 %v348
      %v400 = vunpack.c.h.b16 %v348
      %v401 = vunpack.c.l.b16 %v349
      %v402 = vunpack.c.h.b16 %v349
      %v403 = vunpack.c.l.b16 %v350
      %v404 = vunpack.c.h.b16 %v350
      %v405 = vunpack.c.l.b16 %v351
      %v406 = vunpack.c.h.b16 %v351
      %v407 = vunpack.c.l.b16 %v352
      %v408 = vunpack.c.h.b16 %v352
      %v409 = vunpack.c.l.b16 %v353
      %v410 = vunpack.c.h.b16 %v353
      %v411 = vunpack.c.l.b16 %v354
      %v412 = vunpack.c.h.b16 %v354
      %v413 = vunpack.c.l.b16 %v355
      %v414 = vunpack.c.h.b16 %v355
      %v415 = vunpack.c.l.b16 %v356
      %v416 = vunpack.c.h.b16 %v356
      %v417 = vpack.c.b16 %v387, %v385
      %v418 = vpack.c.b16 %v388, %v386
      %v419 = vpack.c.b16 %v391, %v389
      %v420 = vpack.c.b16 %v392, %v390
      %v421 = vpack.c.b16 %v395, %v393
      %v422 = vpack.c.b16 %v396, %v394
      %v423 = vpack.c.b16 %v399, %v397
      %v424 = vpack.c.b16 %v400, %v398
      %v425 = vpack.c.b16 %v403, %v401
      %v426 = vpack.c.b16 %v404, %v402
      %v427 = vpack.c.b16 %v407, %v405
      %v428 = vpack.c.b16 %v408, %v406
      %v429 = vpack.c.b16 %v411, %v409
      %v430 = vpack.c.b16 %v412, %v410
      %v431 = vpack.c.b16 %v415, %v413
      %v432 = vpack.c.b16 %v416, %v414
      %449 = vmatprep.subr.bf16.mxu0 %v432
      %450 = vmatpush1.bf16.msra.mxu0 %v431
      %451 = vmatprep.subr.bf16.mxu0 %v430
      %452 = vmatpush1.bf16.msra.mxu0 %v429
      %453 = vmatprep.subr.bf16.mxu0 %v428
      %454 = vmatpush1.bf16.msra.mxu0 %v427
      %455 = vmatprep.subr.bf16.mxu0 %v426
      %456 = vmatpush1.bf16.msra.mxu0 %v425
      %457 = vmatprep.subr.bf16.mxu0 %v424
      %458 = vmatpush1.bf16.msra.mxu0 %v423
      %459 = vmatprep.subr.bf16.mxu0 %v422
      %460 = vmatpush1.bf16.msra.mxu0 %v421
      %461 = vmatprep.subr.bf16.mxu0 %v420
      %462 = vmatpush1.bf16.msra.mxu0 %v419
      %463 = vmatprep.subr.bf16.mxu0 %v418
      %464 = vmatpush1.bf16.msra.mxu0 %v417
      %465 = vmatprep.subr.bf16.mxu0 0
      %466 = vmatpush2.bf16.msra.mxu0 0
      %467 = vmatprep.subr.bf16.mxu0 0
      %468 = vmatpush2.bf16.msra.mxu0 0
      %469 = vmatprep.subr.bf16.mxu0 0
      %470 = vmatpush2.bf16.msra.mxu0 0
      %471 = vmatprep.subr.bf16.mxu0 0
      %472 = vmatpush2.bf16.msra.mxu0 0
      %473 = vmatprep.subr.bf16.mxu0 0
      %474 = vmatpush2.bf16.msra.mxu0 0
      %475 = vmatprep.subr.bf16.mxu0 0
      %476 = vmatpush2.bf16.msra.mxu0 0
      %477 = vmatprep.subr.bf16.mxu0 0
      %478 = vmatpush2.bf16.msra.mxu0 0
      %479 = vmatprep.subr.bf16.mxu0 0
      %480 = vmatpush2.bf16.msra.mxu0 0
      %481 = vmatprep.mubr.bf16.mxu0 0
      %482 = vmatmul.mubr.bf16.gmra.mxu0 %v340
      %v483 = vpop.f32.mrf.mxu0
      %v484 = vadd.f32 %v362, %v483
      %v485 = vpop.f32.mrf.mxu0
      %v486 = vadd.f32 %v366, %v485
      %v487 = vpop.f32.mrf.mxu0
      %v488 = vpop.f32.mrf.mxu0
      %489 = vdwg.mxu0
      %v490 = vmax.f32 %v484, 0.0
      %v491 = vmax.f32 %v486, 0.0
      %v494 = vcombine.low %v490, %v491
      %496 = vst [vmem:[%s224] sm:$0xff] %v494
      %p497 = scmp.lt.s32.totalorder %s16, 1
      %s498 = scalar_select %p497, %s16, 1
      %s499 = smul.addr %s498, 2
      %s500 = smul.addr %s499, 4
      %s501 = scalar_lea.vmem %s5, %s500
      // Predicated region
      $region41: #{mobilenet_forward.8} parent=39 // pred_check
        %p502 = pneg %p144
      $region42: #{mobilenet_forward.8} parent=39 // pred_check_branch
        %504 = sbr.rel (%p502) target = $region44
      $region43: #{mobilenet_forward.8} parent=39 // pred_region
        _
      $region44: #{mobilenet_forward.8} parent=39 // pred_fallthru
        _
    $region40: #{mobilenet_forward.8} parent=5 // pred_fallthru
      _
    %p505 = scmp.le.s32.totalorder 2, %s11
    // Predicated region
    $region45: #{mobilenet_forward.8} parent=5 // pred_check
      %p506 = pneg %p505
    $region46: #{mobilenet_forward.8} parent=5 // pred_check_branch
      %508 = sbr.rel (%p506) target = $region48
    $region47: #{mobilenet_forward.8} parent=5 // pred_region
      %s509 = ssub.s32 %s11, 2
      // Predicated region
      $region49: #{mobilenet_forward.8} parent=47 // pred_check
        %p510 = pneg %p150
      $region50: #{mobilenet_forward.8} parent=47 // pred_check_branch
        %512 = sbr.rel (%p510) target = $region52
      $region51: #{mobilenet_forward.8} parent=47 // pred_region
        %p513 = scmp.lt.s32.totalorder %s17, 1
        %s514 = scalar_select %p513, %s17, 1
        %s515 = smul.addr %s514, 2
        %s516 = smul.addr %s515, 4
        %s517 = scalar_lea.vmem %s5, %s516
      $region52: #{mobilenet_forward.8} parent=47 // pred_fallthru
        _
    $region48: #{mobilenet_forward.8} parent=5 // pred_fallthru
      _
  $region6: #{mobilenet_forward.8} parent=0 // loop_footer
    %s15 = sadd.s32 1, %s11
  $region7: #{mobilenet_forward.8} parent=0 // loop_footer_branch
    %10 = sbr.rel target = $region3
  $region8: #{mobilenet_forward.8} parent=0 // loop_exit
    _

// kernel: mobilenet_forward.9
$region0: #{mobilenet_forward.9}
  #allocation0 [shape = 'u32[]', space=smem, size = 0x4, offset = 0x4, fixed_abs, tag = 'smem constant byte address 0x4 - core index']
  #allocation1 [shape = 'u32[144,128]{1,0:T(1,128)}', space=vmem, size = 0x12000, scoped, tag = 'internal scratch']
  %s0 = inlined_call_operand.vmem [shape: f32[2,9,1,256], index: 0, kind: input, shape index: {}]
  %s1 = inlined_call_operand.vmem [shape: f32[9,1,256], index: 1, kind: input, shape index: {}]
  %s2 = inlined_call_operand.vmem [shape: f32[1,256], index: 2, kind: input, shape index: {}]
  %s3 = inlined_call_operand.vmem [shape: bf16[256,512], index: 3, kind: input, shape index: {}]
  %s4 = inlined_call_operand.vmem [shape: f32[1,512], index: 4, kind: input, shape index: {}]
  %s5 = inlined_call_operand.hbm [shape: f32[2,1,512], index: 5, kind: output, shape index: {}]
  %s6 = sld [smem:[#allocation0]]
  $region53: #{mobilenet_forward.9} parent=0
    _
  %s8 = ssub.s32 1, %s6
  %s9 = scalar_select 0, %s8, %s6
  $region1: #{mobilenet_forward.9} parent=0
    #allocation2 [shape = 'u8[4096]{0}', space=vmem, size = 0x1000, scoped, tag = 'output window, operand 0']
    #allocation3 [shape = 's32[2]{0}', space=sflag, size = 0x8, scoped, tag = 'scoped memory for mobilenet_forward.9']
    %10 = vsyncpa [#allocation3], 0
    %s11 = scalar_lea.sflag [#allocation3], 1
    %12 = vsyncpa %s11, 0
    loop: start=0, step=1, limit=4
    $region2: #{mobilenet_forward.9} parent=1 // loop_pre_header
      _
    $region3: #{mobilenet_forward.9} parent=1 // loop_header
      %s14 = sphi 0, %s18
      %p15 = scmp.ge.s32.totalorder %s14, 4
      %s24 = sphi 0, %s26
      %s27 = sphi 0, %s24
      %s28 = sphi 0, %s27
      %s44 = sphi 0, %s28
      %s48 = sphi 0, %s48
      %s50 = sphi 0, %s48
      %s51 = sphi 0, %s50
      %s65 = sphi 0, %s51
      %s69 = sphi 0, %s69
      %s71 = sphi 0, %s69
      %s72 = sphi 0, %s71
      %s86 = sphi 0, %s72
      %s90 = sphi 0, %s90
      %s92 = sphi 0, %s90
      %s93 = sphi 0, %s92
      %s107 = sphi 0, %s93
      %s111 = sphi 0, %s111
      %s113 = sphi 0, %s111
      %s114 = sphi 0, %s113
      %s128 = sphi 0, %s114
      %s134 = sphi 0, %s136
      %s137 = sphi 0, %s134
      %s138 = sphi 0, %s137
      %s154 = sphi 0, %s138
    $region4: #{mobilenet_forward.9} parent=1 // loop_header_branch
      %17 = sbr.rel (%p15) target = $region8
    $region5: #{mobilenet_forward.9} parent=1 // loop_body
      %s19 = ssub.s32 %s14, 1
      %s20 = ssub.s32 %s14, 2
      %s21 = sadd.s32 %s14, 1
      %s22 = ssub.s32 %s14, %s21
      %p23 = scmp.eq.s32.totalorder %s22, 0
      %s25 = sadd.s32 %s24, 1
      %s26 = scalar_select %p23, %s24, %s25
      %p29 = pneg %p23
      %p30 = scmp.eq.s32.totalorder %s14, 1
      %p31 = por %p29, %p30
      %p32 = scmp.ne.s32.totalorder %s24, %s27
      %p33 = scmp.eq.s32.totalorder %s14, 0
      %p34 = por %p32, %p33
      %p35 = scmp.ne.s32.totalorder %s24, %s27
      %p36 = scmp.eq.s32.totalorder %s19, 1
      %p37 = por %p35, %p36
      %p38 = scmp.ne.s32.totalorder %s27, %s28
      %p39 = scmp.eq.s32.totalorder %s19, 0
      %p40 = por %p38, %p39
      %p41 = scmp.ne.s32.totalorder %s27, %s28
      %p42 = scmp.eq.s32.totalorder %s20, 1
      %p43 = por %p41, %p42
      %p45 = scmp.ne.s32.totalorder %s28, %s44
      %p46 = scmp.eq.s32.totalorder %s20, 0
      %p47 = por %p45, %p46
      %s49 = sadd.s32 %s48, 1
      %p52 = scmp.eq.s32.totalorder %s14, 1
      %p53 = scmp.ne.s32.totalorder %s48, %s50
      %p54 = scmp.eq.s32.totalorder %s14, 0
      %p55 = por %p53, %p54
      %p56 = scmp.ne.s32.totalorder %s48, %s50
      %p57 = scmp.eq.s32.totalorder %s19, 1
      %p58 = por %p56, %p57
      %p59 = scmp.ne.s32.totalorder %s50, %s51
      %p60 = scmp.eq.s32.totalorder %s19, 0
      %p61 = por %p59, %p60
      %p62 = scmp.ne.s32.totalorder %s50, %s51
      %p63 = scmp.eq.s32.totalorder %s20, 1
      %p64 = por %p62, %p63
      %p66 = scmp.ne.s32.totalorder %s51, %s65
      %p67 = scmp.eq.s32.totalorder %s20, 0
      %p68 = por %p66, %p67
      %s70 = sadd.s32 %s69, 1
      %p73 = scmp.eq.s32.totalorder %s14, 1
      %p74 = scmp.ne.s32.totalorder %s69, %s71
      %p75 = scmp.eq.s32.totalorder %s14, 0
      %p76 = por %p74, %p75
      %p77 = scmp.ne.s32.totalorder %s69, %s71
      %p78 = scmp.eq.s32.totalorder %s19, 1
      %p79 = por %p77, %p78
      %p80 = scmp.ne.s32.totalorder %s71, %s72
      %p81 = scmp.eq.s32.totalorder %s19, 0
      %p82 = por %p80, %p81
      %p83 = scmp.ne.s32.totalorder %s71, %s72
      %p84 = scmp.eq.s32.totalorder %s20, 1
      %p85 = por %p83, %p84
      %p87 = scmp.ne.s32.totalorder %s72, %s86
      %p88 = scmp.eq.s32.totalorder %s20, 0
      %p89 = por %p87, %p88
      %s91 = sadd.s32 %s90, 1
      %p94 = scmp.eq.s32.totalorder %s14, 1
      %p95 = scmp.ne.s32.totalorder %s90, %s92
      %p96 = scmp.eq.s32.totalorder %s14, 0
      %p97 = por %p95, %p96
      %p98 = scmp.ne.s32.totalorder %s90, %s92
      %p99 = scmp.eq.s32.totalorder %s19, 1
      %p100 = por %p98, %p99
      %p101 = scmp.ne.s32.totalorder %s92, %s93
      %p102 = scmp.eq.s32.totalorder %s19, 0
      %p103 = por %p101, %p102
      %p104 = scmp.ne.s32.totalorder %s92, %s93
      %p105 = scmp.eq.s32.totalorder %s20, 1
      %p106 = por %p104, %p105
      %p108 = scmp.ne.s32.totalorder %s93, %s107
      %p109 = scmp.eq.s32.totalorder %s20, 0
      %p110 = por %p108, %p109
      %s112 = sadd.s32 %s111, 1
      %p115 = scmp.eq.s32.totalorder %s14, 1
      %p116 = scmp.ne.s32.totalorder %s111, %s113
      %p117 = scmp.eq.s32.totalorder %s14, 0
      %p118 = por %p116, %p117
      %p119 = scmp.ne.s32.totalorder %s111, %s113
      %p120 = scmp.eq.s32.totalorder %s19, 1
      %p121 = por %p119, %p120
      %p122 = scmp.ne.s32.totalorder %s113, %s114
      %p123 = scmp.eq.s32.totalorder %s19, 0
      %p124 = por %p122, %p123
      %p125 = scmp.ne.s32.totalorder %s113, %s114
      %p126 = scmp.eq.s32.totalorder %s20, 1
      %p127 = por %p125, %p126
      %p129 = scmp.ne.s32.totalorder %s114, %s128
      %p130 = scmp.eq.s32.totalorder %s20, 0
      %p131 = por %p129, %p130
      %s132 = ssub.s32 %s14, %s21
      %p133 = scmp.eq.s32.totalorder %s132, 0
      %s135 = sadd.s32 %s134, 1
      %s136 = scalar_select %p133, %s134, %s135
      %p139 = pneg %p133
      %p140 = scmp.eq.s32.totalorder %s14, 1
      %p141 = por %p139, %p140
      %p142 = scmp.ne.s32.totalorder %s134, %s137
      %p143 = scmp.eq.s32.totalorder %s14, 0
      %p144 = por %p142, %p143
      %p145 = scmp.ne.s32.totalorder %s134, %s137
      %p146 = scmp.eq.s32.totalorder %s19, 1
      %p147 = por %p145, %p146
      %p148 = scmp.ne.s32.totalorder %s137, %s138
      %p149 = scmp.eq.s32.totalorder %s19, 0
      %p150 = por %p148, %p149
      %p151 = scmp.ne.s32.totalorder %s137, %s138
      %p152 = scmp.eq.s32.totalorder %s20, 1
      %p153 = por %p151, %p152
      %p155 = scmp.ne.s32.totalorder %s138, %s154
      %p156 = scmp.eq.s32.totalorder %s20, 0
      %p157 = por %p155, %p156
      %p158 = scmp.le.s32.totalorder 1, %s14
      %p159 = scmp.lt.s32.totalorder %s14, 3
      %p160 = pnand %p158, %p159
      %p161 = pneg %p160
      // Predicated region
      $region9: #{mobilenet_forward.9} parent=5 // pred_check
        _
      $region10: #{mobilenet_forward.9} parent=5 // pred_check_branch
        %163 = sbr.rel (%p160) target = $region12
      $region11: #{mobilenet_forward.9} parent=5 // pred_region
        %s164 = ssub.s32 %s14, 1
        // Predicated region
        $region13: #{mobilenet_forward.9} parent=11 // pred_check
          %p165 = pneg %p61
        $region14: #{mobilenet_forward.9} parent=11 // pred_check_branch
          %167 = sbr.rel (%p165) target = $region16
        $region15: #{mobilenet_forward.9} parent=11 // pred_region
          _
        $region16: #{mobilenet_forward.9} parent=11 // pred_fallthru
          _
        // Predicated region
        $region17: #{mobilenet_forward.9} parent=11 // pred_check
          %p168 = pneg %p82
        $region18: #{mobilenet_forward.9} parent=11 // pred_check_branch
          %170 = sbr.rel (%p168) target = $region20
        $region19: #{mobilenet_forward.9} parent=11 // pred_region
          _
        $region20: #{mobilenet_forward.9} parent=11 // pred_fallthru
          _
        // Predicated region
        $region21: #{mobilenet_forward.9} parent=11 // pred_check
          %p171 = pneg %p103
        $region22: #{mobilenet_forward.9} parent=11 // pred_check_branch
          %173 = sbr.rel (%p171) target = $region24
        $region23: #{mobilenet_forward.9} parent=11 // pred_region
          _
        $region24: #{mobilenet_forward.9} parent=11 // pred_fallthru
          _
        // Predicated region
        $region25: #{mobilenet_forward.9} parent=11 // pred_check
          %p174 = pneg %p124
        $region26: #{mobilenet_forward.9} parent=11 // pred_check_branch
          %176 = sbr.rel (%p174) target = $region28
        $region27: #{mobilenet_forward.9} parent=11 // pred_region
          _
        $region28: #{mobilenet_forward.9} parent=11 // pred_fallthru
          _
      $region12: #{mobilenet_forward.9} parent=5 // pred_fallthru
        _
      %p177 = scmp.lt.s32.totalorder %s14, 2
      // Predicated region
      $region29: #{mobilenet_forward.9} parent=5 // pred_check
        %p178 = pneg %p177
      $region30: #{mobilenet_forward.9} parent=5 // pred_check_branch
        %180 = sbr.rel (%p178) target = $region32
      $region31: #{mobilenet_forward.9} parent=5 // pred_region
        // Predicated region
        $region33: #{mobilenet_forward.9} parent=31 // pred_check
          %p181 = pneg %p34
        $region34: #{mobilenet_forward.9} parent=31 // pred_check_branch
          %183 = sbr.rel (%p181) target = $region36
        $region35: #{mobilenet_forward.9} parent=31 // pred_region
          %p184 = scmp.lt.s32.totalorder %s14, 1
          %s185 = scalar_select %p184, %s14, 1
          %s186 = smul.addr %s185, 18
          %s187 = scalar_lea.vmem %s0, %s186
        $region36: #{mobilenet_forward.9} parent=31 // pred_fallthru
          _
      $region32: #{mobilenet_forward.9} parent=5 // pred_fallthru
        _
      %p188 = scmp.le.s32.totalorder 1, %s14
      %p189 = scmp.lt.s32.totalorder %s14, 3
      %p190 = pnand %p188, %p189
      %p191 = pneg %p190
      // Predicated region
      $region37: #{mobilenet_forward.9} parent=5 // pred_check
        _
      $region38: #{mobilenet_forward.9} parent=5 // pred_check_branch
        %193 = sbr.rel (%p190) target = $region40
      $region39: #{mobilenet_forward.9} parent=5 // pred_region
        %s194 = ssub.s32 %s14, 1
        %p195 = scmp.lt.s32.totalorder %s19, 1
        %s196 = scalar_select %p195, %s19, 1
        %s197 = smul.addr %s196, 18
        %s198 = scalar_lea.vmem %s0, %s197
        %p199 = pneg %p40
        %p200 = pneg %p37
        %p201 = pneg %p61
        %p202 = pneg %p58
        %p203 = pneg %p82
        %p204 = pneg %p79
        %p205 = pneg %p103
        %p206 = pneg %p100
        %p207 = pneg %p124
        %p208 = pneg %p121
        %p209 = pneg %p150
        %p210 = pneg %p147
        %s211 = sand.u32 %s137, 1
        %s212 = scalar_lea.sflag [#allocation3], %s211
        %s213 = sand.u32 %s137, 1
        %s214 = smul.addr %s213, 4
        %s215 = scalar_lea.vmem [#allocation2], %s214
        %p216 = scmp.lt.s32.totalorder %s19, 1
        %s217 = scalar_select %p216, %s19, 1
        %s218 = smul.addr %s217, 18
        %s219 = scalar_lea.vmem %s0, %s218
        %v220 = vld [vmem:[%s219] sm:$0x3]
        %v221 = vld [vmem:[%s1] sm:$0x3]
        %v222 = vmul.f32 %v220, %v221
        %s223 = scalar_lea.vmem %s219, 2
        %v224 = vld [vmem:[%s223] sm:$0x3]
        %s225 = scalar_lea.vmem %s1, 2
        %v226 = vld [vmem:[%s225] sm:$0x3]
        %v227 = vmul.f32 %v224, %v226
        %v228 = vadd.f32 %v222, %v227
        %s229 = scalar_lea.vmem %s219, 4
        %v230 = vld [vmem:[%s229] sm:$0x3]
        %s231 = scalar_lea.vmem %s1, 4
        %v232 = vld [vmem:[%s231] sm:$0x3]
        %v233 = vmul.f32 %v230, %v232
        %v234 = vadd.f32 %v228, %v233
        %s235 = scalar_lea.vmem %s219, 6
        %v236 = vld [vmem:[%s235] sm:$0x3]
        %s237 = scalar_lea.vmem %s1, 6
        %v238 = vld [vmem:[%s237] sm:$0x3]
        %v239 = vmul.f32 %v236, %v238
        %v240 = vadd.f32 %v234, %v239
        %s241 = scalar_lea.vmem %s219, 8
        %v242 = vld [vmem:[%s241] sm:$0x3]
        %s243 = scalar_lea.vmem %s1, 8
        %v244 = vld [vmem:[%s243] sm:$0x3]
        %v245 = vmul.f32 %v242, %v244
        %v246 = vadd.f32 %v240, %v245
        %s247 = scalar_lea.vmem %s219, 10
        %v248 = vld [vmem:[%s247] sm:$0x3]
        %s249 = scalar_lea.vmem %s1, 10
        %v250 = vld [vmem:[%s249] sm:$0x3]
        %v251 = vmul.f32 %v248, %v250
        %v252 = vadd.f32 %v246, %v251
        %s253 = scalar_lea.vmem %s219, 12
        %v254 = vld [vmem:[%s253] sm:$0x3]
        %s255 = scalar_lea.vmem %s1, 12
        %v256 = vld [vmem:[%s255] sm:$0x3]
        %v257 = vmul.f32 %v254, %v256
        %v258 = vadd.f32 %v252, %v257
        %s259 = scalar_lea.vmem %s219, 14
        %v260 = vld [vmem:[%s259] sm:$0x3]
        %s261 = scalar_lea.vmem %s1, 14
        %v262 = vld [vmem:[%s261] sm:$0x3]
        %v263 = vmul.f32 %v260, %v262
        %v264 = vadd.f32 %v258, %v263
        %s265 = scalar_lea.vmem %s219, 16
        %v266 = vld [vmem:[%s265] sm:$0x3]
        %s267 = scalar_lea.vmem %s1, 16
        %v268 = vld [vmem:[%s267] sm:$0x3]
        %v269 = vmul.f32 %v266, %v268
        %v270 = vadd.f32 %v264, %v269
        %v271 = vld [vmem:[%s2] sm:$0x3]
        %v272 = vadd.f32 %v270, %v271
        %v273 = vmax.f32 %v272, 0.0
        %v275 = vlaneseq
        %v276 = vshrl.u32 %v275, 7
        %v277 = vsub.s32 0, %v276
        %v278 = vrot.slane %v273, %v277
        %v279 = vlaneseq
        %v280 = vshrl.u32 %v279, 7
        %v281 = vsub.s32 1, %v280
        %v282 = vrot.slane %v273, %v281
        %v285 = vpack.c.bf16 %v278, %v278
        %v286 = vpack.c.bf16 %v282, %v282
        %v287 = vld [vmem:[%s3] sm:$0xff]
        %v288 = vld [vmem:[%s3 + $0x8] sm:$0xff]
        %v289 = vld [vmem:[%s3 + $0x10] sm:$0xff]
        %v290 = vld [vmem:[%s3 + $0x18] sm:$0xff]
        %v291 = vld [vmem:[%s3 + $0x20] sm:$0xff]
        %v292 = vld [vmem:[%s3 + $0x28] sm:$0xff]
        %v293 = vld [vmem:[%s3 + $0x30] sm:$0xff]
        %v294 = vld [vmem:[%s3 + $0x38] sm:$0xff]
        %v295 = vld [vmem:[%s3 + $0x40] sm:$0xff]
        %v296 = vld [vmem:[%s3 + $0x48] sm:$0xff]
        %v297 = vld [vmem:[%s3 + $0x50] sm:$0xff]
        %v298 = vld [vmem:[%s3 + $0x58] sm:$0xff]
        %v299 = vld [vmem:[%s3 + $0x60] sm:$0xff]
        %v300 = vld [vmem:[%s3 + $0x68] sm:$0xff]
        %v301 = vld [vmem:[%s3 + $0x70] sm:$0xff]
        %v302 = vld [vmem:[%s3 + $0x78] sm:$0xff]
        %v303 = vld [vmem:[%s3 + $0x80] sm:$0xff]
        %v304 = vld [vmem:[%s3 + $0x88] sm:$0xff]
        %v305 = vld [vmem:[%s3 + $0x90] sm:$0xff]
        %v306 = vld [vmem:[%s3 + $0x98] sm:$0xff]
        %v307 = vld [vmem:[%s3 + $0xa0] sm:$0xff]
        %v308 = vld [vmem:[%s3 + $0xa8] sm:$0xff]
        %v309 = vld [vmem:[%s3 + $0xb0] sm:$0xff]
        %v310 = vld [vmem:[%s3 + $0xb8] sm:$0xff]
        %v311 = vld [vmem:[%s3 + $0xc0] sm:$0xff]
        %v312 = vld [vmem:[%s3 + $0xc8] sm:$0xff]
        %v313 = vld [vmem:[%s3 + $0xd0] sm:$0xff]
        %v314 = vld [vmem:[%s3 + $0xd8] sm:$0xff]
        %v315 = vld [vmem:[%s3 + $0xe0] sm:$0xff]
        %v316 = vld [vmem:[%s3 + $0xe8] sm:$0xff]
        %v317 = vld [vmem:[%s3 + $0xf0] sm:$0xff]
        %v318 = vld [vmem:[%s3 + $0xf8] sm:$0xff]
        %v319 = vld [vmem:[%s3 + $0x100] sm:$0xff]
        %v320 = vld [vmem:[%s3 + $0x108] sm:$0xff]
        %v321 = vld [vmem:[%s3 + $0x110] sm:$0xff]
        %v322 = vld [vmem:[%s3 + $0x118] sm:$0xff]
        %v323 = vld [vmem:[%s3 + $0x120] sm:$0xff]
        %v324 = vld [vmem:[%s3 + $0x128] sm:$0xff]
        %v325 = vld [vmem:[%s3 + $0x130] sm:$0xff]
        %v326 = vld [vmem:[%s3 + $0x138] sm:$0xff]
        %v327 = vld [vmem:[%s3 + $0x140] sm:$0xff]
        %v328 = vld [vmem:[%s3 + $0x148] sm:$0xff]
        %v329 = vld [vmem:[%s3 + $0x150] sm:$0xff]
        %v330 = vld [vmem:[%s3 + $0x158] sm:$0xff]
        %v331 = vld [vmem:[%s3 + $0x160] sm:$0xff]
        %v332 = vld [vmem:[%s3 + $0x168] sm:$0xff]
        %v333 = vld [vmem:[%s3 + $0x170] sm:$0xff]
        %v334 = vld [vmem:[%s3 + $0x178] sm:$0xff]
        %v335 = vld [vmem:[%s3 + $0x180] sm:$0xff]
        %v336 = vld [vmem:[%s3 + $0x188] sm:$0xff]
        %v337 = vld [vmem:[%s3 + $0x190] sm:$0xff]
        %v338 = vld [vmem:[%s3 + $0x198] sm:$0xff]
        %v339 = vld [vmem:[%s3 + $0x1a0] sm:$0xff]
        %v340 = vld [vmem:[%s3 + $0x1a8] sm:$0xff]
        %v341 = vld [vmem:[%s3 + $0x1b0] sm:$0xff]
        %v342 = vld [vmem:[%s3 + $0x1b8] sm:$0xff]
        %v343 = vld [vmem:[%s3 + $0x1c0] sm:$0xff]
        %v344 = vld [vmem:[%s3 + $0x1c8] sm:$0xff]
        %v345 = vld [vmem:[%s3 + $0x1d0] sm:$0xff]
        %v346 = vld [vmem:[%s3 + $0x1d8] sm:$0xff]
        %v347 = vld [vmem:[%s3 + $0x1e0] sm:$0xff]
        %v348 = vld [vmem:[%s3 + $0x1e8] sm:$0xff]
        %v349 = vld [vmem:[%s3 + $0x1f0] sm:$0xff]
        %v350 = vld [vmem:[%s3 + $0x1f8] sm:$0xff]
        %v351 = vld [vmem:[%s4] sm:$0xf]
        %v416 = vunpack.c.l.b16 %v287
        %v417 = vunpack.c.h.b16 %v287
        %v418 = vunpack.c.l.b16 %v288
        %v419 = vunpack.c.h.b16 %v288
        %v420 = vunpack.c.l.b16 %v289
        %v421 = vunpack.c.h.b16 %v289
        %v422 = vunpack.c.l.b16 %v290
        %v423 = vunpack.c.h.b16 %v290
        %v424 = vunpack.c.l.b16 %v291
        %v425 = vunpack.c.h.b16 %v291
        %v426 = vunpack.c.l.b16 %v292
        %v427 = vunpack.c.h.b16 %v292
        %v428 = vunpack.c.l.b16 %v293
        %v429 = vunpack.c.h.b16 %v293
        %v430 = vunpack.c.l.b16 %v294
        %v431 = vunpack.c.h.b16 %v294
        %v432 = vunpack.c.l.b16 %v295
        %v433 = vunpack.c.h.b16 %v295
        %v434 = vunpack.c.l.b16 %v296
        %v435 = vunpack.c.h.b16 %v296
        %v436 = vunpack.c.l.b16 %v297
        %v437 = vunpack.c.h.b16 %v297
        %v438 = vunpack.c.l.b16 %v298
        %v439 = vunpack.c.h.b16 %v298
        %v440 = vunpack.c.l.b16 %v299
        %v441 = vunpack.c.h.b16 %v299
        %v442 = vunpack.c.l.b16 %v300
        %v443 = vunpack.c.h.b16 %v300
        %v444 = vunpack.c.l.b16 %v301
        %v445 = vunpack.c.h.b16 %v301
        %v446 = vunpack.c.l.b16 %v302
        %v447 = vunpack.c.h.b16 %v302
        %v448 = vunpack.c.l.b16 %v303
        %v449 = vunpack.c.h.b16 %v303
        %v450 = vunpack.c.l.b16 %v304
        %v451 = vunpack.c.h.b16 %v304
        %v452 = vunpack.c.l.b16 %v305
        %v453 = vunpack.c.h.b16 %v305
        %v454 = vunpack.c.l.b16 %v306
        %v455 = vunpack.c.h.b16 %v306
        %v456 = vunpack.c.l.b16 %v307
        %v457 = vunpack.c.h.b16 %v307
        %v458 = vunpack.c.l.b16 %v308
        %v459 = vunpack.c.h.b16 %v308
        %v460 = vunpack.c.l.b16 %v309
        %v461 = vunpack.c.h.b16 %v309
        %v462 = vunpack.c.l.b16 %v310
        %v463 = vunpack.c.h.b16 %v310
        %v464 = vunpack.c.l.b16 %v311
        %v465 = vunpack.c.h.b16 %v311
        %v466 = vunpack.c.l.b16 %v312
        %v467 = vunpack.c.h.b16 %v312
        %v468 = vunpack.c.l.b16 %v313
        %v469 = vunpack.c.h.b16 %v313
        %v470 = vunpack.c.l.b16 %v314
        %v471 = vunpack.c.h.b16 %v314
        %v472 = vunpack.c.l.b16 %v315
        %v473 = vunpack.c.h.b16 %v315
        %v474 = vunpack.c.l.b16 %v316
        %v475 = vunpack.c.h.b16 %v316
        %v476 = vunpack.c.l.b16 %v317
        %v477 = vunpack.c.h.b16 %v317
        %v478 = vunpack.c.l.b16 %v318
        %v479 = vunpack.c.h.b16 %v318
        %v480 = vunpack.c.l.b16 %v319
        %v481 = vunpack.c.h.b16 %v319
        %v482 = vunpack.c.l.b16 %v320
        %v483 = vunpack.c.h.b16 %v320
        %v484 = vunpack.c.l.b16 %v321
        %v485 = vunpack.c.h.b16 %v321
        %v486 = vunpack.c.l.b16 %v322
        %v487 = vunpack.c.h.b16 %v322
        %v488 = vunpack.c.l.b16 %v323
        %v489 = vunpack.c.h.b16 %v323
        %v490 = vunpack.c.l.b16 %v324
        %v491 = vunpack.c.h.b16 %v324
        %v492 = vunpack.c.l.b16 %v325
        %v493 = vunpack.c.h.b16 %v325
        %v494 = vunpack.c.l.b16 %v326
        %v495 = vunpack.c.h.b16 %v326
        %v496 = vunpack.c.l.b16 %v327
        %v497 = vunpack.c.h.b16 %v327
        %v498 = vunpack.c.l.b16 %v328
        %v499 = vunpack.c.h.b16 %v328
        %v500 = vunpack.c.l.b16 %v329
        %v501 = vunpack.c.h.b16 %v329
        %v502 = vunpack.c.l.b16 %v330
        %v503 = vunpack.c.h.b16 %v330
        %v504 = vunpack.c.l.b16 %v331
        %v505 = vunpack.c.h.b16 %v331
        %v506 = vunpack.c.l.b16 %v332
        %v507 = vunpack.c.h.b16 %v332
        %v508 = vunpack.c.l.b16 %v333
        %v509 = vunpack.c.h.b16 %v333
        %v510 = vunpack.c.l.b16 %v334
        %v511 = vunpack.c.h.b16 %v334
        %v512 = vunpack.c.l.b16 %v335
        %v513 = vunpack.c.h.b16 %v335
        %v514 = vunpack.c.l.b16 %v336
        %v515 = vunpack.c.h.b16 %v336
        %v516 = vunpack.c.l.b16 %v337
        %v517 = vunpack.c.h.b16 %v337
        %v518 = vunpack.c.l.b16 %v338
        %v519 = vunpack.c.h.b16 %v338
        %v520 = vunpack.c.l.b16 %v339
        %v521 = vunpack.c.h.b16 %v339
        %v522 = vunpack.c.l.b16 %v340
        %v523 = vunpack.c.h.b16 %v340
        %v524 = vunpack.c.l.b16 %v341
        %v525 = vunpack.c.h.b16 %v341
        %v526 = vunpack.c.l.b16 %v342
        %v527 = vunpack.c.h.b16 %v342
        %v528 = vunpack.c.l.b16 %v343
        %v529 = vunpack.c.h.b16 %v343
        %v530 = vunpack.c.l.b16 %v344
        %v531 = vunpack.c.h.b16 %v344
        %v532 = vunpack.c.l.b16 %v345
        %v533 = vunpack.c.h.b16 %v345
        %v534 = vunpack.c.l.b16 %v346
        %v535 = vunpack.c.h.b16 %v346
        %v536 = vunpack.c.l.b16 %v347
        %v537 = vunpack.c.h.b16 %v347
        %v538 = vunpack.c.l.b16 %v348
        %v539 = vunpack.c.h.b16 %v348
        %v540 = vunpack.c.l.b16 %v349
        %v541 = vunpack.c.h.b16 %v349
        %v542 = vunpack.c.l.b16 %v350
        %v543 = vunpack.c.h.b16 %v350
        %v544 = vpack.c.b16 %v420, %v416
        %v545 = vpack.c.b16 %v421, %v417
        %v546 = vpack.c.b16 %v422, %v418
        %v547 = vpack.c.b16 %v423, %v419
        %v548 = vpack.c.b16 %v428, %v424
        %v549 = vpack.c.b16 %v429, %v425
        %v550 = vpack.c.b16 %v430, %v426
        %v551 = vpack.c.b16 %v431, %v427
        %v552 = vpack.c.b16 %v436, %v432
        %v553 = vpack.c.b16 %v437, %v433
        %v554 = vpack.c.b16 %v438, %v434
        %v555 = vpack.c.b16 %v439, %v435
        %v556 = vpack.c.b16 %v444, %v440
        %v557 = vpack.c.b16 %v445, %v441
        %v558 = vpack.c.b16 %v446, %v442
        %v559 = vpack.c.b16 %v447, %v443
        %v560 = vpack.c.b16 %v452, %v448
        %v561 = vpack.c.b16 %v453, %v449
        %v562 = vpack.c.b16 %v454, %v450
        %v563 = vpack.c.b16 %v455, %v451
        %v564 = vpack.c.b16 %v460, %v456
        %v565 = vpack.c.b16 %v461, %v457
        %v566 = vpack.c.b16 %v462, %v458
        %v567 = vpack.c.b16 %v463, %v459
        %v568 = vpack.c.b16 %v468, %v464
        %v569 = vpack.c.b16 %v469, %v465
        %v570 = vpack.c.b16 %v470, %v466
        %v571 = vpack.c.b16 %v471, %v467
        %v572 = vpack.c.b16 %v476, %v472
        %v573 = vpack.c.b16 %v477, %v473
        %v574 = vpack.c.b16 %v478, %v474
        %v575 = vpack.c.b16 %v479, %v475
        %v576 = vpack.c.b16 %v484, %v480
        %v577 = vpack.c.b16 %v485, %v481
        %v578 = vpack.c.b16 %v486, %v482
        %v579 = vpack.c.b16 %v487, %v483
        %v580 = vpack.c.b16 %v492, %v488
        %v581 = vpack.c.b16 %v493, %v489
        %v582 = vpack.c.b16 %v494, %v490
        %v583 = vpack.c.b16 %v495, %v491
        %v584 = vpack.c.b16 %v500, %v496
        %v585 = vpack.c.b16 %v501, %v497
        %v586 = vpack.c.b16 %v502, %v498
        %v587 = vpack.c.b16 %v503, %v499
        %v588 = vpack.c.b16 %v508, %v504
        %v589 = vpack.c.b16 %v509, %v505
        %v590 = vpack.c.b16 %v510, %v506
        %v591 = vpack.c.b16 %v511, %v507
        %v592 = vpack.c.b16 %v516, %v512
        %v593 = vpack.c.b16 %v517, %v513
        %v594 = vpack.c.b16 %v518, %v514
        %v595 = vpack.c.b16 %v519, %v515
        %v596 = vpack.c.b16 %v524, %v520
        %v597 = vpack.c.b16 %v525, %v521
        %v598 = vpack.c.b16 %v526, %v522
        %v599 = vpack.c.b16 %v527, %v523
        %v600 = vpack.c.b16 %v532, %v528
        %v601 = vpack.c.b16 %v533, %v529
        %v602 = vpack.c.b16 %v534, %v530
        %v603 = vpack.c.b16 %v535, %v531
        %v604 = vpack.c.b16 %v540, %v536
        %v605 = vpack.c.b16 %v541, %v537
        %v606 = vpack.c.b16 %v542, %v538
        %v607 = vpack.c.b16 %v543, %v539
        %v673 = vlaneseq
        %v674 = vshrl.u32 %v673, 7
        %v675 = vsub.s32 0, %v674
        %v676 = vrot.slane %v351, %v675
        %v677 = vlaneseq
        %v678 = vshrl.u32 %v677, 7
        %v679 = vsub.s32 1, %v678
        %v680 = vrot.slane %v351, %v679
        %v681 = vlaneseq
        %v682 = vshrl.u32 %v681, 7
        %v683 = vsub.s32 2, %v682
        %v684 = vrot.slane %v351, %v683
        %v685 = vlaneseq
        %v686 = vshrl.u32 %v685, 7
        %v687 = vsub.s32 3, %v686
        %v688 = vrot.slane %v351, %v687
        %693 = vmatprep.subr.bf16.mxu0 %v573
        %694 = vmatpush1.bf16.msra.mxu0 %v572
        %695 = vmatprep.subr.bf16.mxu0 %v569
        %696 = vmatpush1.bf16.msra.mxu0 %v568
        %697 = vmatprep.subr.bf16.mxu0 %v565
        %698 = vmatpush1.bf16.msra.mxu0 %v564
        %699 = vmatprep.subr.bf16.mxu0 %v561
        %700 = vmatpush1.bf16.msra.mxu0 %v560
        %701 = vmatprep.subr.bf16.mxu0 %v557
        %702 = vmatpush1.bf16.msra.mxu0 %v556
        %703 = vmatprep.subr.bf16.mxu0 %v553
        %704 = vmatpush1.bf16.msra.mxu0 %v552
        %705 = vmatprep.subr.bf16.mxu0 %v549
        %706 = vmatpush1.bf16.msra.mxu0 %v548
        %707 = vmatprep.subr.bf16.mxu0 %v545
        %708 = vmatpush1.bf16.msra.mxu0 %v544
        %709 = vmatprep.subr.bf16.mxu0 %v605
        %710 = vmatpush2.bf16.msra.mxu0 %v604
        %711 = vmatprep.subr.bf16.mxu0 %v601
        %712 = vmatpush2.bf16.msra.mxu0 %v600
        %713 = vmatprep.subr.bf16.mxu0 %v597
        %714 = vmatpush2.bf16.msra.mxu0 %v596
        %715 = vmatprep.subr.bf16.mxu0 %v593
        %716 = vmatpush2.bf16.msra.mxu0 %v592
        %717 = vmatprep.subr.bf16.mxu0 %v589
        %718 = vmatpush2.bf16.msra.mxu0 %v588
        %719 = vmatprep.subr.bf16.mxu0 %v585
        %720 = vmatpush2.bf16.msra.mxu0 %v584
        %721 = vmatprep.subr.bf16.mxu0 %v581
        %722 = vmatpush2.bf16.msra.mxu0 %v580
        %723 = vmatprep.subr.bf16.mxu0 %v577
        %724 = vmatpush2.bf16.msra.mxu0 %v576
        %725 = vmatprep.mubr.bf16.mxu0 %v286
        %726 = vmatmul.mubr.bf16.gmra.mxu0 %v285
        %v727 = vpop.f32.mrf.mxu0
        %v728 = vadd.f32 %v676, %v727
        %v729 = vpop.f32.mrf.mxu0
        %v730 = vadd.f32 %v680, %v729
        %v731 = vpop.f32.mrf.mxu0
        %v732 = vpop.f32.mrf.mxu0
        %733 = vdwg.mxu0
        %734 = vmatprep.subr.bf16.mxu0 %v575
        %735 = vmatpush1.bf16.msra.mxu0 %v574
        %736 = vmatprep.subr.bf16.mxu0 %v571
        %737 = vmatpush1.bf16.msra.mxu0 %v570
        %738 = vmatprep.subr.bf16.mxu0 %v567
        %739 = vmatpush1.bf16.msra.mxu0 %v566
        %740 = vmatprep.subr.bf16.mxu0 %v563
        %741 = vmatpush1.bf16.msra.mxu0 %v562
        %742 = vmatprep.subr.bf16.mxu0 %v559
        %743 = vmatpush1.bf16.msra.mxu0 %v558
        %744 = vmatprep.subr.bf16.mxu0 %v555
        %745 = vmatpush1.bf16.msra.mxu0 %v554
        %746 = vmatprep.subr.bf16.mxu0 %v551
        %747 = vmatpush1.bf16.msra.mxu0 %v550
        %748 = vmatprep.subr.bf16.mxu0 %v547
        %749 = vmatpush1.bf16.msra.mxu0 %v546
        %750 = vmatprep.subr.bf16.mxu0 %v607
        %751 = vmatpush2.bf16.msra.mxu0 %v606
        %752 = vmatprep.subr.bf16.mxu0 %v603
        %753 = vmatpush2.bf16.msra.mxu0 %v602
        %754 = vmatprep.subr.bf16.mxu0 %v599
        %755 = vmatpush2.bf16.msra.mxu0 %v598
        %756 = vmatprep.subr.bf16.mxu0 %v595
        %757 = vmatpush2.bf16.msra.mxu0 %v594
        %758 = vmatprep.subr.bf16.mxu0 %v591
        %759 = vmatpush2.bf16.msra.mxu0 %v590
        %760 = vmatprep.subr.bf16.mxu0 %v587
        %761 = vmatpush2.bf16.msra.mxu0 %v586
        %762 = vmatprep.subr.bf16.mxu0 %v583
        %763 = vmatpush2.bf16.msra.mxu0 %v582
        %764 = vmatprep.subr.bf16.mxu0 %v579
        %765 = vmatpush2.bf16.msra.mxu0 %v578
        %766 = vmatprep.mubr.bf16.mxu0 %v286
        %767 = vmatmul.mubr.bf16.gmra.mxu0 %v285
        %v768 = vpop.f32.mrf.mxu0
        %v769 = vadd.f32 %v684, %v768
        %v770 = vpop.f32.mrf.mxu0
        %v771 = vadd.f32 %v688, %v770
        %v772 = vpop.f32.mrf.mxu0
        %v773 = vpop.f32.mrf.mxu0
        %774 = vdwg.mxu0
        %v775 = vmax.f32 %v728, 0.0
        %v776 = vmax.f32 %v730, 0.0
        %v777 = vmax.f32 %v769, 0.0
        %v778 = vmax.f32 %v771, 0.0
        %v783 = vcombine.low %v775, %v776
        %v784 = vcombine.low %v777, %v778
        %v786 = vunpack.c.l.s4 1966171168
        %v787 = vunpack.c.0.s8 %v786
        %v788 = vlaneseq
        %v789 = vshrl.u32 %v788, 7
        %v790 = vsub.s32 %v787, %v789
        %v791 = vrot.slane %v783, %v790
        %v793 = vunpack.c.l.s4 1966171168
        %v794 = vunpack.c.0.s8 %v793
        %v795 = vlaneseq
        %v796 = vshrl.u32 %v795, 7
        %v797 = vsub.s32 %v794, %v796
        %v798 = vrot.slane %v784, %v797
        %v799 = vcombine.low %v791, %v798
        %v801 = vunpack.c.l.s4 1966171168
        %v802 = vunpack.c.0.s8 %v801
        %v803 = vlaneseq
        %v804 = vshrl.u32 %v803, 7
        %v805 = vsub.s32 %v802, %v804
        %v806 = vrot.slane %v799, %v805
        %v808 = vlaneseq
        %vm809 = vcmp.ge.s32.totalorder %v808, 0
        %vm810 = vcmp.lt.s32.totalorder %v808, 512
        %vm811 = vmand %vm809, %vm810
        %812 = vst.msk [vmem:[%s215] sm:$0xf] %vm811, %v806
        %s813 = sand.u32 %s137, 1
        %s814 = scalar_lea.sflag [#allocation3], %s813
        %s815 = sand.u32 %s137, 1
        %s816 = smul.addr %s815, 4
        %s817 = scalar_lea.vmem [#allocation2], %s816
        // Predicated region
        $region41: #{mobilenet_forward.9} parent=39 // pred_check
          %p818 = pneg %p147
        $region42: #{mobilenet_forward.9} parent=39 // pred_check_branch
          %820 = sbr.rel (%p818) target = $region44
        $region43: #{mobilenet_forward.9} parent=39 // pred_region
          %s822 = ssub.s32 64, 64
          %823 = vsyncadd %s814, %s822
          %s824 = smul.addr %s19, 4
          %s825 = smul.addr %s824, 16
          %s826 = scalar_lea.hbm %s5, %s825
          %s828 = sshll.u32 %s817, 4
          %s829 = int_to_ptr.vmem [resolvable:$true] %s828
          %831 = dma.vmem_to_hbm [thread:$0]  %s829, 64, %s826, %s814
        $region44: #{mobilenet_forward.9} parent=39 // pred_fallthru
          _
      $region40: #{mobilenet_forward.9} parent=5 // pred_fallthru
        _
      %p832 = scmp.le.s32.totalorder 2, %s14
      // Predicated region
      $region45: #{mobilenet_forward.9} parent=5 // pred_check
        %p833 = pneg %p832
      $region46: #{mobilenet_forward.9} parent=5 // pred_check_branch
        %835 = sbr.rel (%p833) target = $region48
      $region47: #{mobilenet_forward.9} parent=5 // pred_region
        %s836 = ssub.s32 %s14, 2
        // Predicated region
        $region49: #{mobilenet_forward.9} parent=47 // pred_check
          %p837 = pneg %p153
        $region50: #{mobilenet_forward.9} parent=47 // pred_check_branch
          %839 = sbr.rel (%p837) target = $region52
        $region51: #{mobilenet_forward.9} parent=47 // pred_region
          %s840 = sand.u32 %s138, 1
          %s841 = scalar_lea.sflag [#allocation3], %s840
          %s842 = sand.u32 %s138, 1
          %s843 = smul.addr %s842, 4
          %s844 = scalar_lea.vmem [#allocation2], %s843
          %845 = dma.done %s841, 64
        $region52: #{mobilenet_forward.9} parent=47 // pred_fallthru
          _
      $region48: #{mobilenet_forward.9} parent=5 // pred_fallthru
        _
    $region6: #{mobilenet_forward.9} parent=1 // loop_footer
      %s18 = sadd.s32 1, %s14
    $region7: #{mobilenet_forward.9} parent=1 // loop_footer_branch
      %13 = sbr.rel target = $region3
    $region8: #{mobilenet_forward.9} parent=1 // loop_exit
      _
    %846 = vsyncpa [#allocation3], 1
    %s847 = scalar_lea.sflag [#allocation3], 1
    %848 = vsyncpa %s847, 1

</llo_original>
